<compile_context>
chip_gen: v7x
topology: tpu7x:2x2x1
jax: 0.10.0
libtpu: 0.0.40
codegen_flags: <defaults>
</compile_context>

<pallas_src>
import functools

import jax
import jax.numpy as jnp
from jax import lax
from jax.experimental import pallas as pl
from jax.experimental.pallas import tpu as pltpu

EPS = 1e-5
_TAPS = tuple((dy, dx) for dy in (-1, 0, 1) for dx in (-1, 0, 1))


def _instance_norm(y, hw):
    """Two-pass per-channel norm over the lane (spatial) axis, f32 stats."""
    inv_n = 1.0 / hw
    mean = jnp.sum(y, axis=1, keepdims=True) * inv_n
    centered = y - mean
    var = jnp.sum(centered * centered, axis=1, keepdims=True) * inv_n
    return centered * lax.rsqrt(var + EPS)


def resblock_kernel(x_ref, w1_ref, w2_ref, mask_ref, out_ref, *, H, W, mm_dtype):
    """One image per grid step: out = IN(conv2(relu(IN(conv1(x))))) + x."""
    HW = H * W
    x = x_ref[0].astype(jnp.float32)               # (Cp, H*W), lane-dense

    def conv3x3(inp_f32, w_ref):
        # 9 accumulating (Cp,Cp)x(Cp,HW) MXU matmuls -- no im2col slab.  Taps
        # are XLU lane rolls of the flattened spatial axis; the precomputed
        # 0/1 boundary mask (one VPU multiply) realizes the zero padding.
        # Per-channel conv bias is omitted: InstanceNorm (affine=False)
        # subtracts the per-channel spatial mean, cancelling it exactly.
        inp = inp_f32.astype(mm_dtype)              # cast once before the MXU
        acc = None
        for k, (dy, dx) in enumerate(_TAPS):
            s = dy * W + dx
            if s == 0:
                tap = inp
            else:
                tap = pltpu.roll(inp, shift=(-s) % HW, axis=1) * mask_ref[k]
            part = jnp.dot(w_ref[k], tap, preferred_element_type=jnp.float32)
            acc = part if acc is None else acc + part
        return acc

    y1 = jnp.maximum(_instance_norm(conv3x3(x, w1_ref), HW), 0.0)
    y2 = _instance_norm(conv3x3(y1, w2_ref), HW)
    out_ref[0] = (y2 + x).astype(out_ref.dtype)


def _boundary_masks(H, W, dtype):
    """(9, 1, H*W) 0/1 mask per 3x3 tap: zeros where the roll wraps the border."""
    HW = H * W
    lane = jnp.arange(HW, dtype=jnp.int32)
    col = lane % W
    row = lane // W
    rows = []
    for dy, dx in _TAPS:
        m = jnp.ones((HW,), dtype=bool)
        if dy == 1:
            m = m & (row < H - 1)
        elif dy == -1:
            m = m & (row >= 1)
        if dx == 1:
            m = m & (col < W - 1)
        elif dx == -1:
            m = m & (col >= 1)
        rows.append(m)
    return jnp.stack(rows, axis=0).astype(dtype).reshape(9, 1, HW)


def resblock_pallas(x_nchw, w1_hwio, b1, w2_hwio, b2):
    """x_nchw: (B,C,H,W); w*: (3,3,C,C) HWIO; b*: (C,) (cancelled by InstanceNorm)."""
    del b1, b2  # InstanceNorm(affine=False) cancels per-channel conv bias exactly.
    B, C, H, W = x_nchw.shape
    HW = H * W

    # bf16 MXU operands at realistic widths (v6e/v7x-native); f32 for tiny C.
    mm_dtype = jnp.bfloat16 if C >= 64 else jnp.float32
    mm_bytes = 2 if mm_dtype == jnp.bfloat16 else 4
    sub = 16 if mm_dtype == jnp.bfloat16 else 8    # bf16 packs 2 rows / sublane
    Cp = ((C + sub - 1) // sub) * sub
    cpad = Cp - C

    # NCHW -> (B, C, H*W) is a free contiguous view; pad channels with zeros.
    x_flat = x_nchw.reshape(B, C, HW)
    if cpad:
        x_flat = jnp.pad(x_flat, ((0, 0), (0, cpad), (0, 0)))

    def make_w(w_hwio):
        wt = jnp.transpose(w_hwio, (0, 1, 3, 2))    # (ky, kx, Cout, Cin)
        if cpad:
            wt = jnp.pad(wt, ((0, 0), (0, 0), (0, cpad), (0, cpad)))
        return wt.reshape(9, Cp, Cp).astype(mm_dtype)

    w1m, w2m = make_w(w1_hwio), make_w(w2_hwio)
    masks = _boundary_masks(H, W, mm_dtype)

    # Double-buffered activation blocks + single-buffered constants, 2x
    # headroom; capped at 48 MiB so v7x (64 MiB physical VMEM) keeps slack for
    # compiler-internal scratch.
    x_bytes = x_flat.dtype.itemsize
    footprint = (2 * 2 * Cp * HW * x_bytes          # in + out, double-buffered
                 + 2 * 9 * Cp * Cp * mm_bytes       # w1 + w2 (single-buffered)
                 + 9 * 8 * HW * mm_bytes)           # boundary masks (padded)
    vmem_limit = int(min(48 << 20, max(32 << 20, 2 * footprint)))

    kernel = functools.partial(resblock_kernel, H=H, W=W, mm_dtype=mm_dtype)
    out_shape = jax.ShapeDtypeStruct((B, Cp, HW), x_nchw.dtype)
    x_spec = pl.BlockSpec((1, Cp, HW), lambda b: (b, 0, 0))
    out_spec = pl.BlockSpec((1, Cp, HW), lambda b: (b, 0, 0))

    def run(const_specs):
        return pl.pallas_call(
            kernel,
            out_shape=out_shape,
            grid_spec=pltpu.PrefetchScalarGridSpec(
                num_scalar_prefetch=0,
                grid=(B,),                          # one image per step
                in_specs=[x_spec] + const_specs,
                out_specs=out_spec,
            ),
            compiler_params=pltpu.CompilerParams(
                dimension_semantics=("parallel",),
                vmem_limit_bytes=vmem_limit),
        )(x_flat, w1m, w2m, masks)

    try:
        # Constant-index blocks: single buffer -- a second buffer for an
        # invariant block is pure VMEM waste (~9.4 MB of weights at Cp=256).
        const_specs = [
            pl.BlockSpec((9, Cp, Cp), lambda b: (0, 0, 0),
                         pipeline_mode=pl.Buffered(1)),
            pl.BlockSpec((9, Cp, Cp), lambda b: (0, 0, 0),
                         pipeline_mode=pl.Buffered(1)),
            pl.BlockSpec((9, 1, HW), lambda b: (0, 0, 0),
                         pipeline_mode=pl.Buffered(1)),
        ]
        out = run(const_specs)
    except Exception:
        # Fallback if pipeline_mode/Buffered(1) is unsupported on this build.
        const_specs = [
            pl.BlockSpec((9, Cp, Cp), lambda b: (0, 0, 0)),
            pl.BlockSpec((9, Cp, Cp), lambda b: (0, 0, 0)),
            pl.BlockSpec((9, 1, HW), lambda b: (0, 0, 0)),
        ]
        out = run(const_specs)

    return out[:, :C, :].reshape(B, C, H, W)


def resblocks_pallas(x_nchw, params):
    """ContentEncoder's ResBlocks stack: params = [(w1, b1, w2, b2), ...]."""
    for (w1, b1, w2, b2) in params:
        x_nchw = resblock_pallas(x_nchw, w1, b1, w2, b2)
    return x_nchw


def resblock_ref(x_nchw, w1_hwio, b1, w2_hwio, b2):
    """Pure-JAX reference (NCHW), mirrors PyTorch ResBlock semantics."""
    def conv(x, w, b):
        y = lax.conv_general_dilated(
            x, w, window_strides=(1, 1), padding="SAME",
            dimension_numbers=("NCHW", "HWIO", "NCHW"),
            precision=lax.Precision.HIGHEST)
        return y + b[None, :, None, None]

    def inorm(y):
        m = jnp.mean(y, axis=(2, 3), keepdims=True)
        v = jnp.mean((y - m) ** 2, axis=(2, 3), keepdims=True)
        return (y - m) * lax.rsqrt(v + EPS)

    y1 = jnp.maximum(inorm(conv(x_nchw, w1_hwio, b1)), 0.0)
    y2 = inorm(conv(y1, w2_hwio, b2))
    return y2 + x_nchw


if __name__ == "__main__":
    B, C, H, W = 2, 4, 16, 16
    n_res = 2
    key = jax.random.PRNGKey(0)
    keys = jax.random.split(key, 1 + 4 * n_res)

    x = jax.random.normal(keys[0], (B, C, H, W), jnp.float32)

    params = []
    ki = 1
    for _ in range(n_res):
        w1 = jax.random.normal(keys[ki], (3, 3, C, C), jnp.float32) * 0.1; ki += 1
        b1 = jax.random.normal(keys[ki], (C,), jnp.float32) * 0.1; ki += 1
        w2 = jax.random.normal(keys[ki], (3, 3, C, C), jnp.float32) * 0.1; ki += 1
        b2 = jax.random.normal(keys[ki], (C,), jnp.float32) * 0.1; ki += 1
        params.append((w1, b1, w2, b2))

    # Single ResBlock.
    out1 = jax.block_until_ready(resblock_pallas(x, *params[0]))
    ref1 = resblock_ref(x, *params[0])
    assert out1.shape == (B, C, H, W)
    assert jnp.max(jnp.abs(out1 - ref1)) < 2e-4

    # n_res-deep ResBlocks stack (ContentEncoder's residual body).
    outn = jax.block_until_ready(resblocks_pallas(x, params))
    refn = x
    for p in params:
        refn = resblock_ref(refn, *p)
    assert jnp.max(jnp.abs(outn - refn)) < 1e-3

    print("KERNEL_OK")
</pallas_src>

<mosaic_0001>
module attributes {stable_mosaic.version = 11 : i64} {
  func.func @resblock_kernel(%arg0: i32, %arg1: memref<1x8x256xf32, #tpu.memory_space<vmem>>, %arg2: memref<9x8x8xf32, #tpu.memory_space<vmem>>, %arg3: memref<9x8x8xf32, #tpu.memory_space<vmem>>, %arg4: memref<9x1x256xf32, #tpu.memory_space<vmem>>, %arg5: memref<1x8x256xf32, #tpu.memory_space<vmem>>) attributes {dimension_semantics = [#tpu.dimension_semantics<parallel>], iteration_bounds = array<i64: 2>, scalar_prefetch = 0 : i64, scratch_operands = 0 : i64, tpu.core_type = #tpu.core_type<tc>, window_params = [{transform_indices = @transform_0, window_bounds = array<i64: 1, 8, 256>}, {pipeline_mode = #tpu.pipeline_mode<synchronous>, transform_indices = @transform_1, window_bounds = array<i64: 9, 8, 8>}, {pipeline_mode = #tpu.pipeline_mode<synchronous>, transform_indices = @transform_2, window_bounds = array<i64: 9, 8, 8>}, {pipeline_mode = #tpu.pipeline_mode<synchronous>, transform_indices = @transform_3, window_bounds = array<i64: 9, 1, 256>}, {transform_indices = @transform_4, window_bounds = array<i64: 1, 8, 256>}]} {
    %c0 = arith.constant 0 : index
    %c0_0 = arith.constant 0 : index
    %c0_1 = arith.constant 0 : index
    %0 = vector.load %arg1[%c0, %c0_0, %c0_1] : memref<1x8x256xf32, #tpu.memory_space<vmem>>, vector<1x8x256xf32>
    %1 = vector.shape_cast %0 : vector<1x8x256xf32> to vector<8x256xf32>
    %c17_i32 = arith.constant 17 : i32
    %2 = tpu.dynamic_rotate %1 by %c17_i32 dim 1 : vector<8x256xf32>, i32 -> vector<8x256xf32>
    %c0_2 = arith.constant 0 : index
    %c0_3 = arith.constant 0 : index
    %c0_4 = arith.constant 0 : index
    %3 = vector.load %arg4[%c0_2, %c0_3, %c0_4] : memref<9x1x256xf32, #tpu.memory_space<vmem>>, vector<1x1x256xf32>
    %4 = vector.shape_cast %3 : vector<1x1x256xf32> to vector<1x256xf32>
    %5 = vector.broadcast %4 : vector<1x256xf32> to vector<8x256xf32>
    %6 = arith.mulf %2, %5 : vector<8x256xf32>
    %c0_5 = arith.constant 0 : index
    %c0_6 = arith.constant 0 : index
    %c0_7 = arith.constant 0 : index
    %7 = vector.load %arg2[%c0_5, %c0_6, %c0_7] : memref<9x8x8xf32, #tpu.memory_space<vmem>>, vector<1x8x8xf32>
    %8 = vector.shape_cast %7 : vector<1x8x8xf32> to vector<8x8xf32>
    %cst = arith.constant dense<0.000000e+00> : vector<8x256xf32>
    %9 = tpu.matmul %8, %6, %cst {dimension_numbers = #tpu.dot_dimension_numbers<[1], [0], [0], [1], [0, 0, 1, 1], [], []>} : vector<8x8xf32>, vector<8x256xf32>, vector<8x256xf32> -> vector<8x256xf32>
    %c16_i32 = arith.constant 16 : i32
    %10 = tpu.dynamic_rotate %1 by %c16_i32 dim 1 : vector<8x256xf32>, i32 -> vector<8x256xf32>
    %c1 = arith.constant 1 : index
    %c0_8 = arith.constant 0 : index
    %c0_9 = arith.constant 0 : index
    %11 = vector.load %arg4[%c1, %c0_8, %c0_9] : memref<9x1x256xf32, #tpu.memory_space<vmem>>, vector<1x1x256xf32>
    %12 = vector.shape_cast %11 : vector<1x1x256xf32> to vector<1x256xf32>
    %13 = vector.broadcast %12 : vector<1x256xf32> to vector<8x256xf32>
    %14 = arith.mulf %10, %13 : vector<8x256xf32>
    %c1_10 = arith.constant 1 : index
    %c0_11 = arith.constant 0 : index
    %c0_12 = arith.constant 0 : index
    %15 = vector.load %arg2[%c1_10, %c0_11, %c0_12] : memref<9x8x8xf32, #tpu.memory_space<vmem>>, vector<1x8x8xf32>
    %16 = vector.shape_cast %15 : vector<1x8x8xf32> to vector<8x8xf32>
    %cst_13 = arith.constant dense<0.000000e+00> : vector<8x256xf32>
    %17 = tpu.matmul %16, %14, %cst_13 {dimension_numbers = #tpu.dot_dimension_numbers<[1], [0], [0], [1], [0, 0, 1, 1], [], []>} : vector<8x8xf32>, vector<8x256xf32>, vector<8x256xf32> -> vector<8x256xf32>
    %18 = arith.addf %9, %17 : vector<8x256xf32>
    %c15_i32 = arith.constant 15 : i32
    %19 = tpu.dynamic_rotate %1 by %c15_i32 dim 1 : vector<8x256xf32>, i32 -> vector<8x256xf32>
    %c2 = arith.constant 2 : index
    %c0_14 = arith.constant 0 : index
    %c0_15 = arith.constant 0 : index
    %20 = vector.load %arg4[%c2, %c0_14, %c0_15] : memref<9x1x256xf32, #tpu.memory_space<vmem>>, vector<1x1x256xf32>
    %21 = vector.shape_cast %20 : vector<1x1x256xf32> to vector<1x256xf32>
    %22 = vector.broadcast %21 : vector<1x256xf32> to vector<8x256xf32>
    %23 = arith.mulf %19, %22 : vector<8x256xf32>
    %c2_16 = arith.constant 2 : index
    %c0_17 = arith.constant 0 : index
    %c0_18 = arith.constant 0 : index
    %24 = vector.load %arg2[%c2_16, %c0_17, %c0_18] : memref<9x8x8xf32, #tpu.memory_space<vmem>>, vector<1x8x8xf32>
    %25 = vector.shape_cast %24 : vector<1x8x8xf32> to vector<8x8xf32>
    %cst_19 = arith.constant dense<0.000000e+00> : vector<8x256xf32>
    %26 = tpu.matmul %25, %23, %cst_19 {dimension_numbers = #tpu.dot_dimension_numbers<[1], [0], [0], [1], [0, 0, 1, 1], [], []>} : vector<8x8xf32>, vector<8x256xf32>, vector<8x256xf32> -> vector<8x256xf32>
    %27 = arith.addf %18, %26 : vector<8x256xf32>
    %c1_i32 = arith.constant 1 : i32
    %28 = tpu.dynamic_rotate %1 by %c1_i32 dim 1 : vector<8x256xf32>, i32 -> vector<8x256xf32>
    %c3 = arith.constant 3 : index
    %c0_20 = arith.constant 0 : index
    %c0_21 = arith.constant 0 : index
    %29 = vector.load %arg4[%c3, %c0_20, %c0_21] : memref<9x1x256xf32, #tpu.memory_space<vmem>>, vector<1x1x256xf32>
    %30 = vector.shape_cast %29 : vector<1x1x256xf32> to vector<1x256xf32>
    %31 = vector.broadcast %30 : vector<1x256xf32> to vector<8x256xf32>
    %32 = arith.mulf %28, %31 : vector<8x256xf32>
    %c3_22 = arith.constant 3 : index
    %c0_23 = arith.constant 0 : index
    %c0_24 = arith.constant 0 : index
    %33 = vector.load %arg2[%c3_22, %c0_23, %c0_24] : memref<9x8x8xf32, #tpu.memory_space<vmem>>, vector<1x8x8xf32>
    %34 = vector.shape_cast %33 : vector<1x8x8xf32> to vector<8x8xf32>
    %cst_25 = arith.constant dense<0.000000e+00> : vector<8x256xf32>
    %35 = tpu.matmul %34, %32, %cst_25 {dimension_numbers = #tpu.dot_dimension_numbers<[1], [0], [0], [1], [0, 0, 1, 1], [], []>} : vector<8x8xf32>, vector<8x256xf32>, vector<8x256xf32> -> vector<8x256xf32>
    %36 = arith.addf %27, %35 : vector<8x256xf32>
    %c4 = arith.constant 4 : index
    %c0_26 = arith.constant 0 : index
    %c0_27 = arith.constant 0 : index
    %37 = vector.load %arg2[%c4, %c0_26, %c0_27] : memref<9x8x8xf32, #tpu.memory_space<vmem>>, vector<1x8x8xf32>
    %38 = vector.shape_cast %37 : vector<1x8x8xf32> to vector<8x8xf32>
    %cst_28 = arith.constant dense<0.000000e+00> : vector<8x256xf32>
    %39 = tpu.matmul %38, %1, %cst_28 {dimension_numbers = #tpu.dot_dimension_numbers<[1], [0], [0], [1], [0, 0, 1, 1], [], []>} : vector<8x8xf32>, vector<8x256xf32>, vector<8x256xf32> -> vector<8x256xf32>
    %40 = arith.addf %36, %39 : vector<8x256xf32>
    %c255_i32 = arith.constant 255 : i32
    %41 = tpu.dynamic_rotate %1 by %c255_i32 dim 1 : vector<8x256xf32>, i32 -> vector<8x256xf32>
    %c5 = arith.constant 5 : index
    %c0_29 = arith.constant 0 : index
    %c0_30 = arith.constant 0 : index
    %42 = vector.load %arg4[%c5, %c0_29, %c0_30] : memref<9x1x256xf32, #tpu.memory_space<vmem>>, vector<1x1x256xf32>
    %43 = vector.shape_cast %42 : vector<1x1x256xf32> to vector<1x256xf32>
    %44 = vector.broadcast %43 : vector<1x256xf32> to vector<8x256xf32>
    %45 = arith.mulf %41, %44 : vector<8x256xf32>
    %c5_31 = arith.constant 5 : index
    %c0_32 = arith.constant 0 : index
    %c0_33 = arith.constant 0 : index
    %46 = vector.load %arg2[%c5_31, %c0_32, %c0_33] : memref<9x8x8xf32, #tpu.memory_space<vmem>>, vector<1x8x8xf32>
    %47 = vector.shape_cast %46 : vector<1x8x8xf32> to vector<8x8xf32>
    %cst_34 = arith.constant dense<0.000000e+00> : vector<8x256xf32>
    %48 = tpu.matmul %47, %45, %cst_34 {dimension_numbers = #tpu.dot_dimension_numbers<[1], [0], [0], [1], [0, 0, 1, 1], [], []>} : vector<8x8xf32>, vector<8x256xf32>, vector<8x256xf32> -> vector<8x256xf32>
    %49 = arith.addf %40, %48 : vector<8x256xf32>
    %c241_i32 = arith.constant 241 : i32
    %50 = tpu.dynamic_rotate %1 by %c241_i32 dim 1 : vector<8x256xf32>, i32 -> vector<8x256xf32>
    %c6 = arith.constant 6 : index
    %c0_35 = arith.constant 0 : index
    %c0_36 = arith.constant 0 : index
    %51 = vector.load %arg4[%c6, %c0_35, %c0_36] : memref<9x1x256xf32, #tpu.memory_space<vmem>>, vector<1x1x256xf32>
    %52 = vector.shape_cast %51 : vector<1x1x256xf32> to vector<1x256xf32>
    %53 = vector.broadcast %52 : vector<1x256xf32> to vector<8x256xf32>
    %54 = arith.mulf %50, %53 : vector<8x256xf32>
    %c6_37 = arith.constant 6 : index
    %c0_38 = arith.constant 0 : index
    %c0_39 = arith.constant 0 : index
    %55 = vector.load %arg2[%c6_37, %c0_38, %c0_39] : memref<9x8x8xf32, #tpu.memory_space<vmem>>, vector<1x8x8xf32>
    %56 = vector.shape_cast %55 : vector<1x8x8xf32> to vector<8x8xf32>
    %cst_40 = arith.constant dense<0.000000e+00> : vector<8x256xf32>
    %57 = tpu.matmul %56, %54, %cst_40 {dimension_numbers = #tpu.dot_dimension_numbers<[1], [0], [0], [1], [0, 0, 1, 1], [], []>} : vector<8x8xf32>, vector<8x256xf32>, vector<8x256xf32> -> vector<8x256xf32>
    %58 = arith.addf %49, %57 : vector<8x256xf32>
    %c240_i32 = arith.constant 240 : i32
    %59 = tpu.dynamic_rotate %1 by %c240_i32 dim 1 : vector<8x256xf32>, i32 -> vector<8x256xf32>
    %c7 = arith.constant 7 : index
    %c0_41 = arith.constant 0 : index
    %c0_42 = arith.constant 0 : index
    %60 = vector.load %arg4[%c7, %c0_41, %c0_42] : memref<9x1x256xf32, #tpu.memory_space<vmem>>, vector<1x1x256xf32>
    %61 = vector.shape_cast %60 : vector<1x1x256xf32> to vector<1x256xf32>
    %62 = vector.broadcast %61 : vector<1x256xf32> to vector<8x256xf32>
    %63 = arith.mulf %59, %62 : vector<8x256xf32>
    %c7_43 = arith.constant 7 : index
    %c0_44 = arith.constant 0 : index
    %c0_45 = arith.constant 0 : index
    %64 = vector.load %arg2[%c7_43, %c0_44, %c0_45] : memref<9x8x8xf32, #tpu.memory_space<vmem>>, vector<1x8x8xf32>
    %65 = vector.shape_cast %64 : vector<1x8x8xf32> to vector<8x8xf32>
    %cst_46 = arith.constant dense<0.000000e+00> : vector<8x256xf32>
    %66 = tpu.matmul %65, %63, %cst_46 {dimension_numbers = #tpu.dot_dimension_numbers<[1], [0], [0], [1], [0, 0, 1, 1], [], []>} : vector<8x8xf32>, vector<8x256xf32>, vector<8x256xf32> -> vector<8x256xf32>
    %67 = arith.addf %58, %66 : vector<8x256xf32>
    %c239_i32 = arith.constant 239 : i32
    %68 = tpu.dynamic_rotate %1 by %c239_i32 dim 1 : vector<8x256xf32>, i32 -> vector<8x256xf32>
    %c8 = arith.constant 8 : index
    %c0_47 = arith.constant 0 : index
    %c0_48 = arith.constant 0 : index
    %69 = vector.load %arg4[%c8, %c0_47, %c0_48] : memref<9x1x256xf32, #tpu.memory_space<vmem>>, vector<1x1x256xf32>
    %70 = vector.shape_cast %69 : vector<1x1x256xf32> to vector<1x256xf32>
    %71 = vector.broadcast %70 : vector<1x256xf32> to vector<8x256xf32>
    %72 = arith.mulf %68, %71 : vector<8x256xf32>
    %c8_49 = arith.constant 8 : index
    %c0_50 = arith.constant 0 : index
    %c0_51 = arith.constant 0 : index
    %73 = vector.load %arg2[%c8_49, %c0_50, %c0_51] : memref<9x8x8xf32, #tpu.memory_space<vmem>>, vector<1x8x8xf32>
    %74 = vector.shape_cast %73 : vector<1x8x8xf32> to vector<8x8xf32>
    %cst_52 = arith.constant dense<0.000000e+00> : vector<8x256xf32>
    %75 = tpu.matmul %74, %72, %cst_52 {dimension_numbers = #tpu.dot_dimension_numbers<[1], [0], [0], [1], [0, 0, 1, 1], [], []>} : vector<8x8xf32>, vector<8x256xf32>, vector<8x256xf32> -> vector<8x256xf32>
    %76 = arith.addf %67, %75 : vector<8x256xf32>
    %cst_53 = arith.constant dense<0.000000e+00> : vector<8xf32>
    %77 = vector.multi_reduction <add>, %76, %cst_53 [1] : vector<8x256xf32> to vector<8xf32>
    %78 = vector.shape_cast %77 : vector<8xf32> to vector<8x1xf32>
    %cst_54 = arith.constant 3.906250e-03 : f32
    %79 = vector.broadcast %cst_54 : f32 to vector<8x1xf32>
    %80 = arith.mulf %78, %79 : vector<8x1xf32>
    %81 = vector.broadcast %80 : vector<8x1xf32> to vector<8x256xf32>
    %82 = arith.subf %76, %81 : vector<8x256xf32>
    %83 = arith.mulf %82, %82 : vector<8x256xf32>
    %cst_55 = arith.constant dense<0.000000e+00> : vector<8xf32>
    %84 = vector.multi_reduction <add>, %83, %cst_55 [1] : vector<8x256xf32> to vector<8xf32>
    %85 = vector.shape_cast %84 : vector<8xf32> to vector<8x1xf32>
    %cst_56 = arith.constant 3.906250e-03 : f32
    %86 = vector.broadcast %cst_56 : f32 to vector<8x1xf32>
    %87 = arith.mulf %85, %86 : vector<8x1xf32>
    %cst_57 = arith.constant 9.99999974E-6 : f32
    %88 = vector.broadcast %cst_57 : f32 to vector<8x1xf32>
    %89 = arith.addf %87, %88 : vector<8x1xf32>
    %90 = math.rsqrt %89 : vector<8x1xf32>
    %91 = vector.broadcast %90 : vector<8x1xf32> to vector<8x256xf32>
    %92 = arith.mulf %82, %91 : vector<8x256xf32>
    %cst_58 = arith.constant 0.000000e+00 : f32
    %93 = vector.broadcast %cst_58 : f32 to vector<8x256xf32>
    %94 = arith.maximumf %92, %93 : vector<8x256xf32>
    %c17_i32_59 = arith.constant 17 : i32
    %95 = tpu.dynamic_rotate %94 by %c17_i32_59 dim 1 : vector<8x256xf32>, i32 -> vector<8x256xf32>
    %c0_60 = arith.constant 0 : index
    %c0_61 = arith.constant 0 : index
    %c0_62 = arith.constant 0 : index
    %96 = vector.load %arg4[%c0_60, %c0_61, %c0_62] : memref<9x1x256xf32, #tpu.memory_space<vmem>>, vector<1x1x256xf32>
    %97 = vector.shape_cast %96 : vector<1x1x256xf32> to vector<1x256xf32>
    %98 = vector.broadcast %97 : vector<1x256xf32> to vector<8x256xf32>
    %99 = arith.mulf %95, %98 : vector<8x256xf32>
    %c0_63 = arith.constant 0 : index
    %c0_64 = arith.constant 0 : index
    %c0_65 = arith.constant 0 : index
    %100 = vector.load %arg3[%c0_63, %c0_64, %c0_65] : memref<9x8x8xf32, #tpu.memory_space<vmem>>, vector<1x8x8xf32>
    %101 = vector.shape_cast %100 : vector<1x8x8xf32> to vector<8x8xf32>
    %cst_66 = arith.constant dense<0.000000e+00> : vector<8x256xf32>
    %102 = tpu.matmul %101, %99, %cst_66 {dimension_numbers = #tpu.dot_dimension_numbers<[1], [0], [0], [1], [0, 0, 1, 1], [], []>} : vector<8x8xf32>, vector<8x256xf32>, vector<8x256xf32> -> vector<8x256xf32>
    %c16_i32_67 = arith.constant 16 : i32
    %103 = tpu.dynamic_rotate %94 by %c16_i32_67 dim 1 : vector<8x256xf32>, i32 -> vector<8x256xf32>
    %c1_68 = arith.constant 1 : index
    %c0_69 = arith.constant 0 : index
    %c0_70 = arith.constant 0 : index
    %104 = vector.load %arg4[%c1_68, %c0_69, %c0_70] : memref<9x1x256xf32, #tpu.memory_space<vmem>>, vector<1x1x256xf32>
    %105 = vector.shape_cast %104 : vector<1x1x256xf32> to vector<1x256xf32>
    %106 = vector.broadcast %105 : vector<1x256xf32> to vector<8x256xf32>
    %107 = arith.mulf %103, %106 : vector<8x256xf32>
    %c1_71 = arith.constant 1 : index
    %c0_72 = arith.constant 0 : index
    %c0_73 = arith.constant 0 : index
    %108 = vector.load %arg3[%c1_71, %c0_72, %c0_73] : memref<9x8x8xf32, #tpu.memory_space<vmem>>, vector<1x8x8xf32>
    %109 = vector.shape_cast %108 : vector<1x8x8xf32> to vector<8x8xf32>
    %cst_74 = arith.constant dense<0.000000e+00> : vector<8x256xf32>
    %110 = tpu.matmul %109, %107, %cst_74 {dimension_numbers = #tpu.dot_dimension_numbers<[1], [0], [0], [1], [0, 0, 1, 1], [], []>} : vector<8x8xf32>, vector<8x256xf32>, vector<8x256xf32> -> vector<8x256xf32>
    %111 = arith.addf %102, %110 : vector<8x256xf32>
    %c15_i32_75 = arith.constant 15 : i32
    %112 = tpu.dynamic_rotate %94 by %c15_i32_75 dim 1 : vector<8x256xf32>, i32 -> vector<8x256xf32>
    %c2_76 = arith.constant 2 : index
    %c0_77 = arith.constant 0 : index
    %c0_78 = arith.constant 0 : index
    %113 = vector.load %arg4[%c2_76, %c0_77, %c0_78] : memref<9x1x256xf32, #tpu.memory_space<vmem>>, vector<1x1x256xf32>
    %114 = vector.shape_cast %113 : vector<1x1x256xf32> to vector<1x256xf32>
    %115 = vector.broadcast %114 : vector<1x256xf32> to vector<8x256xf32>
    %116 = arith.mulf %112, %115 : vector<8x256xf32>
    %c2_79 = arith.constant 2 : index
    %c0_80 = arith.constant 0 : index
    %c0_81 = arith.constant 0 : index
    %117 = vector.load %arg3[%c2_79, %c0_80, %c0_81] : memref<9x8x8xf32, #tpu.memory_space<vmem>>, vector<1x8x8xf32>
    %118 = vector.shape_cast %117 : vector<1x8x8xf32> to vector<8x8xf32>
    %cst_82 = arith.constant dense<0.000000e+00> : vector<8x256xf32>
    %119 = tpu.matmul %118, %116, %cst_82 {dimension_numbers = #tpu.dot_dimension_numbers<[1], [0], [0], [1], [0, 0, 1, 1], [], []>} : vector<8x8xf32>, vector<8x256xf32>, vector<8x256xf32> -> vector<8x256xf32>
    %120 = arith.addf %111, %119 : vector<8x256xf32>
    %c1_i32_83 = arith.constant 1 : i32
    %121 = tpu.dynamic_rotate %94 by %c1_i32_83 dim 1 : vector<8x256xf32>, i32 -> vector<8x256xf32>
    %c3_84 = arith.constant 3 : index
    %c0_85 = arith.constant 0 : index
    %c0_86 = arith.constant 0 : index
    %122 = vector.load %arg4[%c3_84, %c0_85, %c0_86] : memref<9x1x256xf32, #tpu.memory_space<vmem>>, vector<1x1x256xf32>
    %123 = vector.shape_cast %122 : vector<1x1x256xf32> to vector<1x256xf32>
    %124 = vector.broadcast %123 : vector<1x256xf32> to vector<8x256xf32>
    %125 = arith.mulf %121, %124 : vector<8x256xf32>
    %c3_87 = arith.constant 3 : index
    %c0_88 = arith.constant 0 : index
    %c0_89 = arith.constant 0 : index
    %126 = vector.load %arg3[%c3_87, %c0_88, %c0_89] : memref<9x8x8xf32, #tpu.memory_space<vmem>>, vector<1x8x8xf32>
    %127 = vector.shape_cast %126 : vector<1x8x8xf32> to vector<8x8xf32>
    %cst_90 = arith.constant dense<0.000000e+00> : vector<8x256xf32>
    %128 = tpu.matmul %127, %125, %cst_90 {dimension_numbers = #tpu.dot_dimension_numbers<[1], [0], [0], [1], [0, 0, 1, 1], [], []>} : vector<8x8xf32>, vector<8x256xf32>, vector<8x256xf32> -> vector<8x256xf32>
    %129 = arith.addf %120, %128 : vector<8x256xf32>
    %c4_91 = arith.constant 4 : index
    %c0_92 = arith.constant 0 : index
    %c0_93 = arith.constant 0 : index
    %130 = vector.load %arg3[%c4_91, %c0_92, %c0_93] : memref<9x8x8xf32, #tpu.memory_space<vmem>>, vector<1x8x8xf32>
    %131 = vector.shape_cast %130 : vector<1x8x8xf32> to vector<8x8xf32>
    %cst_94 = arith.constant dense<0.000000e+00> : vector<8x256xf32>
    %132 = tpu.matmul %131, %94, %cst_94 {dimension_numbers = #tpu.dot_dimension_numbers<[1], [0], [0], [1], [0, 0, 1, 1], [], []>} : vector<8x8xf32>, vector<8x256xf32>, vector<8x256xf32> -> vector<8x256xf32>
    %133 = arith.addf %129, %132 : vector<8x256xf32>
    %c255_i32_95 = arith.constant 255 : i32
    %134 = tpu.dynamic_rotate %94 by %c255_i32_95 dim 1 : vector<8x256xf32>, i32 -> vector<8x256xf32>
    %c5_96 = arith.constant 5 : index
    %c0_97 = arith.constant 0 : index
    %c0_98 = arith.constant 0 : index
    %135 = vector.load %arg4[%c5_96, %c0_97, %c0_98] : memref<9x1x256xf32, #tpu.memory_space<vmem>>, vector<1x1x256xf32>
    %136 = vector.shape_cast %135 : vector<1x1x256xf32> to vector<1x256xf32>
    %137 = vector.broadcast %136 : vector<1x256xf32> to vector<8x256xf32>
    %138 = arith.mulf %134, %137 : vector<8x256xf32>
    %c5_99 = arith.constant 5 : index
    %c0_100 = arith.constant 0 : index
    %c0_101 = arith.constant 0 : index
    %139 = vector.load %arg3[%c5_99, %c0_100, %c0_101] : memref<9x8x8xf32, #tpu.memory_space<vmem>>, vector<1x8x8xf32>
    %140 = vector.shape_cast %139 : vector<1x8x8xf32> to vector<8x8xf32>
    %cst_102 = arith.constant dense<0.000000e+00> : vector<8x256xf32>
    %141 = tpu.matmul %140, %138, %cst_102 {dimension_numbers = #tpu.dot_dimension_numbers<[1], [0], [0], [1], [0, 0, 1, 1], [], []>} : vector<8x8xf32>, vector<8x256xf32>, vector<8x256xf32> -> vector<8x256xf32>
    %142 = arith.addf %133, %141 : vector<8x256xf32>
    %c241_i32_103 = arith.constant 241 : i32
    %143 = tpu.dynamic_rotate %94 by %c241_i32_103 dim 1 : vector<8x256xf32>, i32 -> vector<8x256xf32>
    %c6_104 = arith.constant 6 : index
    %c0_105 = arith.constant 0 : index
    %c0_106 = arith.constant 0 : index
    %144 = vector.load %arg4[%c6_104, %c0_105, %c0_106] : memref<9x1x256xf32, #tpu.memory_space<vmem>>, vector<1x1x256xf32>
    %145 = vector.shape_cast %144 : vector<1x1x256xf32> to vector<1x256xf32>
    %146 = vector.broadcast %145 : vector<1x256xf32> to vector<8x256xf32>
    %147 = arith.mulf %143, %146 : vector<8x256xf32>
    %c6_107 = arith.constant 6 : index
    %c0_108 = arith.constant 0 : index
    %c0_109 = arith.constant 0 : index
    %148 = vector.load %arg3[%c6_107, %c0_108, %c0_109] : memref<9x8x8xf32, #tpu.memory_space<vmem>>, vector<1x8x8xf32>
    %149 = vector.shape_cast %148 : vector<1x8x8xf32> to vector<8x8xf32>
    %cst_110 = arith.constant dense<0.000000e+00> : vector<8x256xf32>
    %150 = tpu.matmul %149, %147, %cst_110 {dimension_numbers = #tpu.dot_dimension_numbers<[1], [0], [0], [1], [0, 0, 1, 1], [], []>} : vector<8x8xf32>, vector<8x256xf32>, vector<8x256xf32> -> vector<8x256xf32>
    %151 = arith.addf %142, %150 : vector<8x256xf32>
    %c240_i32_111 = arith.constant 240 : i32
    %152 = tpu.dynamic_rotate %94 by %c240_i32_111 dim 1 : vector<8x256xf32>, i32 -> vector<8x256xf32>
    %c7_112 = arith.constant 7 : index
    %c0_113 = arith.constant 0 : index
    %c0_114 = arith.constant 0 : index
    %153 = vector.load %arg4[%c7_112, %c0_113, %c0_114] : memref<9x1x256xf32, #tpu.memory_space<vmem>>, vector<1x1x256xf32>
    %154 = vector.shape_cast %153 : vector<1x1x256xf32> to vector<1x256xf32>
    %155 = vector.broadcast %154 : vector<1x256xf32> to vector<8x256xf32>
    %156 = arith.mulf %152, %155 : vector<8x256xf32>
    %c7_115 = arith.constant 7 : index
    %c0_116 = arith.constant 0 : index
    %c0_117 = arith.constant 0 : index
    %157 = vector.load %arg3[%c7_115, %c0_116, %c0_117] : memref<9x8x8xf32, #tpu.memory_space<vmem>>, vector<1x8x8xf32>
    %158 = vector.shape_cast %157 : vector<1x8x8xf32> to vector<8x8xf32>
    %cst_118 = arith.constant dense<0.000000e+00> : vector<8x256xf32>
    %159 = tpu.matmul %158, %156, %cst_118 {dimension_numbers = #tpu.dot_dimension_numbers<[1], [0], [0], [1], [0, 0, 1, 1], [], []>} : vector<8x8xf32>, vector<8x256xf32>, vector<8x256xf32> -> vector<8x256xf32>
    %160 = arith.addf %151, %159 : vector<8x256xf32>
    %c239_i32_119 = arith.constant 239 : i32
    %161 = tpu.dynamic_rotate %94 by %c239_i32_119 dim 1 : vector<8x256xf32>, i32 -> vector<8x256xf32>
    %c8_120 = arith.constant 8 : index
    %c0_121 = arith.constant 0 : index
    %c0_122 = arith.constant 0 : index
    %162 = vector.load %arg4[%c8_120, %c0_121, %c0_122] : memref<9x1x256xf32, #tpu.memory_space<vmem>>, vector<1x1x256xf32>
    %163 = vector.shape_cast %162 : vector<1x1x256xf32> to vector<1x256xf32>
    %164 = vector.broadcast %163 : vector<1x256xf32> to vector<8x256xf32>
    %165 = arith.mulf %161, %164 : vector<8x256xf32>
    %c8_123 = arith.constant 8 : index
    %c0_124 = arith.constant 0 : index
    %c0_125 = arith.constant 0 : index
    %166 = vector.load %arg3[%c8_123, %c0_124, %c0_125] : memref<9x8x8xf32, #tpu.memory_space<vmem>>, vector<1x8x8xf32>
    %167 = vector.shape_cast %166 : vector<1x8x8xf32> to vector<8x8xf32>
    %cst_126 = arith.constant dense<0.000000e+00> : vector<8x256xf32>
    %168 = tpu.matmul %167, %165, %cst_126 {dimension_numbers = #tpu.dot_dimension_numbers<[1], [0], [0], [1], [0, 0, 1, 1], [], []>} : vector<8x8xf32>, vector<8x256xf32>, vector<8x256xf32> -> vector<8x256xf32>
    %169 = arith.addf %160, %168 : vector<8x256xf32>
    %cst_127 = arith.constant dense<0.000000e+00> : vector<8xf32>
    %170 = vector.multi_reduction <add>, %169, %cst_127 [1] : vector<8x256xf32> to vector<8xf32>
    %171 = vector.shape_cast %170 : vector<8xf32> to vector<8x1xf32>
    %cst_128 = arith.constant 3.906250e-03 : f32
    %172 = vector.broadcast %cst_128 : f32 to vector<8x1xf32>
    %173 = arith.mulf %171, %172 : vector<8x1xf32>
    %174 = vector.broadcast %173 : vector<8x1xf32> to vector<8x256xf32>
    %175 = arith.subf %169, %174 : vector<8x256xf32>
    %176 = arith.mulf %175, %175 : vector<8x256xf32>
    %cst_129 = arith.constant dense<0.000000e+00> : vector<8xf32>
    %177 = vector.multi_reduction <add>, %176, %cst_129 [1] : vector<8x256xf32> to vector<8xf32>
    %178 = vector.shape_cast %177 : vector<8xf32> to vector<8x1xf32>
    %cst_130 = arith.constant 3.906250e-03 : f32
    %179 = vector.broadcast %cst_130 : f32 to vector<8x1xf32>
    %180 = arith.mulf %178, %179 : vector<8x1xf32>
    %cst_131 = arith.constant 9.99999974E-6 : f32
    %181 = vector.broadcast %cst_131 : f32 to vector<8x1xf32>
    %182 = arith.addf %180, %181 : vector<8x1xf32>
    %183 = math.rsqrt %182 : vector<8x1xf32>
    %184 = vector.broadcast %183 : vector<8x1xf32> to vector<8x256xf32>
    %185 = arith.mulf %175, %184 : vector<8x256xf32>
    %186 = arith.addf %185, %1 : vector<8x256xf32>
    %c0_132 = arith.constant 0 : index
    %c0_133 = arith.constant 0 : index
    %c0_134 = arith.constant 0 : index
    %187 = vector.load %arg5[%c0_132, %c0_133, %c0_134] : memref<1x8x256xf32, #tpu.memory_space<vmem>>, vector<1x8x256xf32>
    %188 = vector.shape_cast %187 : vector<1x8x256xf32> to vector<8x256xf32>
    %189 = vector.shape_cast %186 : vector<8x256xf32> to vector<1x8x256xf32>
    tpu.vector_store %arg5[%c0_132, %c0_133, %c0_134], %189 {strides = array<i32>} : memref<1x8x256xf32, #tpu.memory_space<vmem>>, vector<1x8x256xf32>,
    return
  }
  func.func @transform_0(%arg0: i32) -> (i32, i32, i32) {
    %c0_i32 = arith.constant 0 : i32
    %c0_i32_0 = arith.constant 0 : i32
    %c0_i32_1 = arith.constant 0 : i32
    return %arg0, %c0_i32, %c0_i32_0 : i32, i32, i32
  }
  func.func @transform_1(%arg0: i32) -> (i32, i32, i32) {
    %c0_i32 = arith.constant 0 : i32
    %c0_i32_0 = arith.constant 0 : i32
    %c0_i32_1 = arith.constant 0 : i32
    %c0_i32_2 = arith.constant 0 : i32
    return %c0_i32, %c0_i32_0, %c0_i32_1 : i32, i32, i32
  }
  func.func @transform_2(%arg0: i32) -> (i32, i32, i32) {
    %c0_i32 = arith.constant 0 : i32
    %c0_i32_0 = arith.constant 0 : i32
    %c0_i32_1 = arith.constant 0 : i32
    %c0_i32_2 = arith.constant 0 : i32
    return %c0_i32, %c0_i32_0, %c0_i32_1 : i32, i32, i32
  }
  func.func @transform_3(%arg0: i32) -> (i32, i32, i32) {
    %c0_i32 = arith.constant 0 : i32
    %c0_i32_0 = arith.constant 0 : i32
    %c0_i32_1 = arith.constant 0 : i32
    %c0_i32_2 = arith.constant 0 : i32
    return %c0_i32, %c0_i32_0, %c0_i32_1 : i32, i32, i32
  }
  func.func @transform_4(%arg0: i32) -> (i32, i32, i32) {
    %c0_i32 = arith.constant 0 : i32
    %c0_i32_0 = arith.constant 0 : i32
    %c0_i32_1 = arith.constant 0 : i32
    return %arg0, %c0_i32, %c0_i32_0 : i32, i32, i32
  }
}

module attributes {stable_mosaic.version = 11 : i64} {
  func.func @resblock_kernel(%arg0: i32, %arg1: memref<1x8x256xf32, #tpu.memory_space<vmem>>, %arg2: memref<9x8x8xf32, #tpu.memory_space<vmem>>, %arg3: memref<9x8x8xf32, #tpu.memory_space<vmem>>, %arg4: memref<9x1x256xf32, #tpu.memory_space<vmem>>, %arg5: memref<1x8x256xf32, #tpu.memory_space<vmem>>) attributes {dimension_semantics = [#tpu.dimension_semantics<parallel>], iteration_bounds = array<i64: 2>, scalar_prefetch = 0 : i64, scratch_operands = 0 : i64, tpu.core_type = #tpu.core_type<tc>, window_params = [{transform_indices = @transform_0, window_bounds = array<i64: 1, 8, 256>}, {pipeline_mode = #tpu.pipeline_mode<synchronous>, transform_indices = @transform_1, window_bounds = array<i64: 9, 8, 8>}, {pipeline_mode = #tpu.pipeline_mode<synchronous>, transform_indices = @transform_2, window_bounds = array<i64: 9, 8, 8>}, {pipeline_mode = #tpu.pipeline_mode<synchronous>, transform_indices = @transform_3, window_bounds = array<i64: 9, 1, 256>}, {transform_indices = @transform_4, window_bounds = array<i64: 1, 8, 256>}]} {
    %c0 = arith.constant 0 : index
    %c0_0 = arith.constant 0 : index
    %c0_1 = arith.constant 0 : index
    %0 = vector.load %arg1[%c0, %c0_0, %c0_1] : memref<1x8x256xf32, #tpu.memory_space<vmem>>, vector<1x8x256xf32>
    %1 = vector.shape_cast %0 : vector<1x8x256xf32> to vector<8x256xf32>
    %c17_i32 = arith.constant 17 : i32
    %2 = tpu.dynamic_rotate %1 by %c17_i32 dim 1 : vector<8x256xf32>, i32 -> vector<8x256xf32>
    %c0_2 = arith.constant 0 : index
    %c0_3 = arith.constant 0 : index
    %c0_4 = arith.constant 0 : index
    %3 = vector.load %arg4[%c0_2, %c0_3, %c0_4] : memref<9x1x256xf32, #tpu.memory_space<vmem>>, vector<1x1x256xf32>
    %4 = vector.shape_cast %3 : vector<1x1x256xf32> to vector<1x256xf32>
    %5 = vector.broadcast %4 : vector<1x256xf32> to vector<8x256xf32>
    %6 = arith.mulf %2, %5 : vector<8x256xf32>
    %c0_5 = arith.constant 0 : index
    %c0_6 = arith.constant 0 : index
    %c0_7 = arith.constant 0 : index
    %7 = vector.load %arg2[%c0_5, %c0_6, %c0_7] : memref<9x8x8xf32, #tpu.memory_space<vmem>>, vector<1x8x8xf32>
    %8 = vector.shape_cast %7 : vector<1x8x8xf32> to vector<8x8xf32>
    %cst = arith.constant dense<0.000000e+00> : vector<8x256xf32>
    %9 = tpu.matmul %8, %6, %cst {dimension_numbers = #tpu.dot_dimension_numbers<[1], [0], [0], [1], [0, 0, 1, 1], [], []>} : vector<8x8xf32>, vector<8x256xf32>, vector<8x256xf32> -> vector<8x256xf32>
    %c16_i32 = arith.constant 16 : i32
    %10 = tpu.dynamic_rotate %1 by %c16_i32 dim 1 : vector<8x256xf32>, i32 -> vector<8x256xf32>
    %c1 = arith.constant 1 : index
    %c0_8 = arith.constant 0 : index
    %c0_9 = arith.constant 0 : index
    %11 = vector.load %arg4[%c1, %c0_8, %c0_9] : memref<9x1x256xf32, #tpu.memory_space<vmem>>, vector<1x1x256xf32>
    %12 = vector.shape_cast %11 : vector<1x1x256xf32> to vector<1x256xf32>
    %13 = vector.broadcast %12 : vector<1x256xf32> to vector<8x256xf32>
    %14 = arith.mulf %10, %13 : vector<8x256xf32>
    %c1_10 = arith.constant 1 : index
    %c0_11 = arith.constant 0 : index
    %c0_12 = arith.constant 0 : index
    %15 = vector.load %arg2[%c1_10, %c0_11, %c0_12] : memref<9x8x8xf32, #tpu.memory_space<vmem>>, vector<1x8x8xf32>
    %16 = vector.shape_cast %15 : vector<1x8x8xf32> to vector<8x8xf32>
    %cst_13 = arith.constant dense<0.000000e+00> : vector<8x256xf32>
    %17 = tpu.matmul %16, %14, %cst_13 {dimension_numbers = #tpu.dot_dimension_numbers<[1], [0], [0], [1], [0, 0, 1, 1], [], []>} : vector<8x8xf32>, vector<8x256xf32>, vector<8x256xf32> -> vector<8x256xf32>
    %18 = arith.addf %9, %17 : vector<8x256xf32>
    %c15_i32 = arith.constant 15 : i32
    %19 = tpu.dynamic_rotate %1 by %c15_i32 dim 1 : vector<8x256xf32>, i32 -> vector<8x256xf32>
    %c2 = arith.constant 2 : index
    %c0_14 = arith.constant 0 : index
    %c0_15 = arith.constant 0 : index
    %20 = vector.load %arg4[%c2, %c0_14, %c0_15] : memref<9x1x256xf32, #tpu.memory_space<vmem>>, vector<1x1x256xf32>
    %21 = vector.shape_cast %20 : vector<1x1x256xf32> to vector<1x256xf32>
    %22 = vector.broadcast %21 : vector<1x256xf32> to vector<8x256xf32>
    %23 = arith.mulf %19, %22 : vector<8x256xf32>
    %c2_16 = arith.constant 2 : index
    %c0_17 = arith.constant 0 : index
    %c0_18 = arith.constant 0 : index
    %24 = vector.load %arg2[%c2_16, %c0_17, %c0_18] : memref<9x8x8xf32, #tpu.memory_space<vmem>>, vector<1x8x8xf32>
    %25 = vector.shape_cast %24 : vector<1x8x8xf32> to vector<8x8xf32>
    %cst_19 = arith.constant dense<0.000000e+00> : vector<8x256xf32>
    %26 = tpu.matmul %25, %23, %cst_19 {dimension_numbers = #tpu.dot_dimension_numbers<[1], [0], [0], [1], [0, 0, 1, 1], [], []>} : vector<8x8xf32>, vector<8x256xf32>, vector<8x256xf32> -> vector<8x256xf32>
    %27 = arith.addf %18, %26 : vector<8x256xf32>
    %c1_i32 = arith.constant 1 : i32
    %28 = tpu.dynamic_rotate %1 by %c1_i32 dim 1 : vector<8x256xf32>, i32 -> vector<8x256xf32>
    %c3 = arith.constant 3 : index
    %c0_20 = arith.constant 0 : index
    %c0_21 = arith.constant 0 : index
    %29 = vector.load %arg4[%c3, %c0_20, %c0_21] : memref<9x1x256xf32, #tpu.memory_space<vmem>>, vector<1x1x256xf32>
    %30 = vector.shape_cast %29 : vector<1x1x256xf32> to vector<1x256xf32>
    %31 = vector.broadcast %30 : vector<1x256xf32> to vector<8x256xf32>
    %32 = arith.mulf %28, %31 : vector<8x256xf32>
    %c3_22 = arith.constant 3 : index
    %c0_23 = arith.constant 0 : index
    %c0_24 = arith.constant 0 : index
    %33 = vector.load %arg2[%c3_22, %c0_23, %c0_24] : memref<9x8x8xf32, #tpu.memory_space<vmem>>, vector<1x8x8xf32>
    %34 = vector.shape_cast %33 : vector<1x8x8xf32> to vector<8x8xf32>
    %cst_25 = arith.constant dense<0.000000e+00> : vector<8x256xf32>
    %35 = tpu.matmul %34, %32, %cst_25 {dimension_numbers = #tpu.dot_dimension_numbers<[1], [0], [0], [1], [0, 0, 1, 1], [], []>} : vector<8x8xf32>, vector<8x256xf32>, vector<8x256xf32> -> vector<8x256xf32>
    %36 = arith.addf %27, %35 : vector<8x256xf32>
    %c4 = arith.constant 4 : index
    %c0_26 = arith.constant 0 : index
    %c0_27 = arith.constant 0 : index
    %37 = vector.load %arg2[%c4, %c0_26, %c0_27] : memref<9x8x8xf32, #tpu.memory_space<vmem>>, vector<1x8x8xf32>
    %38 = vector.shape_cast %37 : vector<1x8x8xf32> to vector<8x8xf32>
    %cst_28 = arith.constant dense<0.000000e+00> : vector<8x256xf32>
    %39 = tpu.matmul %38, %1, %cst_28 {dimension_numbers = #tpu.dot_dimension_numbers<[1], [0], [0], [1], [0, 0, 1, 1], [], []>} : vector<8x8xf32>, vector<8x256xf32>, vector<8x256xf32> -> vector<8x256xf32>
    %40 = arith.addf %36, %39 : vector<8x256xf32>
    %c255_i32 = arith.constant 255 : i32
    %41 = tpu.dynamic_rotate %1 by %c255_i32 dim 1 : vector<8x256xf32>, i32 -> vector<8x256xf32>
    %c5 = arith.constant 5 : index
    %c0_29 = arith.constant 0 : index
    %c0_30 = arith.constant 0 : index
    %42 = vector.load %arg4[%c5, %c0_29, %c0_30] : memref<9x1x256xf32, #tpu.memory_space<vmem>>, vector<1x1x256xf32>
    %43 = vector.shape_cast %42 : vector<1x1x256xf32> to vector<1x256xf32>
    %44 = vector.broadcast %43 : vector<1x256xf32> to vector<8x256xf32>
    %45 = arith.mulf %41, %44 : vector<8x256xf32>
    %c5_31 = arith.constant 5 : index
    %c0_32 = arith.constant 0 : index
    %c0_33 = arith.constant 0 : index
    %46 = vector.load %arg2[%c5_31, %c0_32, %c0_33] : memref<9x8x8xf32, #tpu.memory_space<vmem>>, vector<1x8x8xf32>
    %47 = vector.shape_cast %46 : vector<1x8x8xf32> to vector<8x8xf32>
    %cst_34 = arith.constant dense<0.000000e+00> : vector<8x256xf32>
    %48 = tpu.matmul %47, %45, %cst_34 {dimension_numbers = #tpu.dot_dimension_numbers<[1], [0], [0], [1], [0, 0, 1, 1], [], []>} : vector<8x8xf32>, vector<8x256xf32>, vector<8x256xf32> -> vector<8x256xf32>
    %49 = arith.addf %40, %48 : vector<8x256xf32>
    %c241_i32 = arith.constant 241 : i32
    %50 = tpu.dynamic_rotate %1 by %c241_i32 dim 1 : vector<8x256xf32>, i32 -> vector<8x256xf32>
    %c6 = arith.constant 6 : index
    %c0_35 = arith.constant 0 : index
    %c0_36 = arith.constant 0 : index
    %51 = vector.load %arg4[%c6, %c0_35, %c0_36] : memref<9x1x256xf32, #tpu.memory_space<vmem>>, vector<1x1x256xf32>
    %52 = vector.shape_cast %51 : vector<1x1x256xf32> to vector<1x256xf32>
    %53 = vector.broadcast %52 : vector<1x256xf32> to vector<8x256xf32>
    %54 = arith.mulf %50, %53 : vector<8x256xf32>
    %c6_37 = arith.constant 6 : index
    %c0_38 = arith.constant 0 : index
    %c0_39 = arith.constant 0 : index
    %55 = vector.load %arg2[%c6_37, %c0_38, %c0_39] : memref<9x8x8xf32, #tpu.memory_space<vmem>>, vector<1x8x8xf32>
    %56 = vector.shape_cast %55 : vector<1x8x8xf32> to vector<8x8xf32>
    %cst_40 = arith.constant dense<0.000000e+00> : vector<8x256xf32>
    %57 = tpu.matmul %56, %54, %cst_40 {dimension_numbers = #tpu.dot_dimension_numbers<[1], [0], [0], [1], [0, 0, 1, 1], [], []>} : vector<8x8xf32>, vector<8x256xf32>, vector<8x256xf32> -> vector<8x256xf32>
    %58 = arith.addf %49, %57 : vector<8x256xf32>
    %c240_i32 = arith.constant 240 : i32
    %59 = tpu.dynamic_rotate %1 by %c240_i32 dim 1 : vector<8x256xf32>, i32 -> vector<8x256xf32>
    %c7 = arith.constant 7 : index
    %c0_41 = arith.constant 0 : index
    %c0_42 = arith.constant 0 : index
    %60 = vector.load %arg4[%c7, %c0_41, %c0_42] : memref<9x1x256xf32, #tpu.memory_space<vmem>>, vector<1x1x256xf32>
    %61 = vector.shape_cast %60 : vector<1x1x256xf32> to vector<1x256xf32>
    %62 = vector.broadcast %61 : vector<1x256xf32> to vector<8x256xf32>
    %63 = arith.mulf %59, %62 : vector<8x256xf32>
    %c7_43 = arith.constant 7 : index
    %c0_44 = arith.constant 0 : index
    %c0_45 = arith.constant 0 : index
    %64 = vector.load %arg2[%c7_43, %c0_44, %c0_45] : memref<9x8x8xf32, #tpu.memory_space<vmem>>, vector<1x8x8xf32>
    %65 = vector.shape_cast %64 : vector<1x8x8xf32> to vector<8x8xf32>
    %cst_46 = arith.constant dense<0.000000e+00> : vector<8x256xf32>
    %66 = tpu.matmul %65, %63, %cst_46 {dimension_numbers = #tpu.dot_dimension_numbers<[1], [0], [0], [1], [0, 0, 1, 1], [], []>} : vector<8x8xf32>, vector<8x256xf32>, vector<8x256xf32> -> vector<8x256xf32>
    %67 = arith.addf %58, %66 : vector<8x256xf32>
    %c239_i32 = arith.constant 239 : i32
    %68 = tpu.dynamic_rotate %1 by %c239_i32 dim 1 : vector<8x256xf32>, i32 -> vector<8x256xf32>
    %c8 = arith.constant 8 : index
    %c0_47 = arith.constant 0 : index
    %c0_48 = arith.constant 0 : index
    %69 = vector.load %arg4[%c8, %c0_47, %c0_48] : memref<9x1x256xf32, #tpu.memory_space<vmem>>, vector<1x1x256xf32>
    %70 = vector.shape_cast %69 : vector<1x1x256xf32> to vector<1x256xf32>
    %71 = vector.broadcast %70 : vector<1x256xf32> to vector<8x256xf32>
    %72 = arith.mulf %68, %71 : vector<8x256xf32>
    %c8_49 = arith.constant 8 : index
    %c0_50 = arith.constant 0 : index
    %c0_51 = arith.constant 0 : index
    %73 = vector.load %arg2[%c8_49, %c0_50, %c0_51] : memref<9x8x8xf32, #tpu.memory_space<vmem>>, vector<1x8x8xf32>
    %74 = vector.shape_cast %73 : vector<1x8x8xf32> to vector<8x8xf32>
    %cst_52 = arith.constant dense<0.000000e+00> : vector<8x256xf32>
    %75 = tpu.matmul %74, %72, %cst_52 {dimension_numbers = #tpu.dot_dimension_numbers<[1], [0], [0], [1], [0, 0, 1, 1], [], []>} : vector<8x8xf32>, vector<8x256xf32>, vector<8x256xf32> -> vector<8x256xf32>
    %76 = arith.addf %67, %75 : vector<8x256xf32>
    %cst_53 = arith.constant dense<0.000000e+00> : vector<8xf32>
    %77 = vector.multi_reduction <add>, %76, %cst_53 [1] : vector<8x256xf32> to vector<8xf32>
    %78 = vector.shape_cast %77 : vector<8xf32> to vector<8x1xf32>
    %cst_54 = arith.constant 3.906250e-03 : f32
    %79 = vector.broadcast %cst_54 : f32 to vector<8x1xf32>
    %80 = arith.mulf %78, %79 : vector<8x1xf32>
    %81 = vector.broadcast %80 : vector<8x1xf32> to vector<8x256xf32>
    %82 = arith.subf %76, %81 : vector<8x256xf32>
    %83 = arith.mulf %82, %82 : vector<8x256xf32>
    %cst_55 = arith.constant dense<0.000000e+00> : vector<8xf32>
    %84 = vector.multi_reduction <add>, %83, %cst_55 [1] : vector<8x256xf32> to vector<8xf32>
    %85 = vector.shape_cast %84 : vector<8xf32> to vector<8x1xf32>
    %cst_56 = arith.constant 3.906250e-03 : f32
    %86 = vector.broadcast %cst_56 : f32 to vector<8x1xf32>
    %87 = arith.mulf %85, %86 : vector<8x1xf32>
    %cst_57 = arith.constant 9.99999974E-6 : f32
    %88 = vector.broadcast %cst_57 : f32 to vector<8x1xf32>
    %89 = arith.addf %87, %88 : vector<8x1xf32>
    %90 = math.rsqrt %89 : vector<8x1xf32>
    %91 = vector.broadcast %90 : vector<8x1xf32> to vector<8x256xf32>
    %92 = arith.mulf %82, %91 : vector<8x256xf32>
    %cst_58 = arith.constant 0.000000e+00 : f32
    %93 = vector.broadcast %cst_58 : f32 to vector<8x256xf32>
    %94 = arith.maximumf %92, %93 : vector<8x256xf32>
    %c17_i32_59 = arith.constant 17 : i32
    %95 = tpu.dynamic_rotate %94 by %c17_i32_59 dim 1 : vector<8x256xf32>, i32 -> vector<8x256xf32>
    %c0_60 = arith.constant 0 : index
    %c0_61 = arith.constant 0 : index
    %c0_62 = arith.constant 0 : index
    %96 = vector.load %arg4[%c0_60, %c0_61, %c0_62] : memref<9x1x256xf32, #tpu.memory_space<vmem>>, vector<1x1x256xf32>
    %97 = vector.shape_cast %96 : vector<1x1x256xf32> to vector<1x256xf32>
    %98 = vector.broadcast %97 : vector<1x256xf32> to vector<8x256xf32>
    %99 = arith.mulf %95, %98 : vector<8x256xf32>
    %c0_63 = arith.constant 0 : index
    %c0_64 = arith.constant 0 : index
    %c0_65 = arith.constant 0 : index
    %100 = vector.load %arg3[%c0_63, %c0_64, %c0_65] : memref<9x8x8xf32, #tpu.memory_space<vmem>>, vector<1x8x8xf32>
    %101 = vector.shape_cast %100 : vector<1x8x8xf32> to vector<8x8xf32>
    %cst_66 = arith.constant dense<0.000000e+00> : vector<8x256xf32>
    %102 = tpu.matmul %101, %99, %cst_66 {dimension_numbers = #tpu.dot_dimension_numbers<[1], [0], [0], [1], [0, 0, 1, 1], [], []>} : vector<8x8xf32>, vector<8x256xf32>, vector<8x256xf32> -> vector<8x256xf32>
    %c16_i32_67 = arith.constant 16 : i32
    %103 = tpu.dynamic_rotate %94 by %c16_i32_67 dim 1 : vector<8x256xf32>, i32 -> vector<8x256xf32>
    %c1_68 = arith.constant 1 : index
    %c0_69 = arith.constant 0 : index
    %c0_70 = arith.constant 0 : index
    %104 = vector.load %arg4[%c1_68, %c0_69, %c0_70] : memref<9x1x256xf32, #tpu.memory_space<vmem>>, vector<1x1x256xf32>
    %105 = vector.shape_cast %104 : vector<1x1x256xf32> to vector<1x256xf32>
    %106 = vector.broadcast %105 : vector<1x256xf32> to vector<8x256xf32>
    %107 = arith.mulf %103, %106 : vector<8x256xf32>
    %c1_71 = arith.constant 1 : index
    %c0_72 = arith.constant 0 : index
    %c0_73 = arith.constant 0 : index
    %108 = vector.load %arg3[%c1_71, %c0_72, %c0_73] : memref<9x8x8xf32, #tpu.memory_space<vmem>>, vector<1x8x8xf32>
    %109 = vector.shape_cast %108 : vector<1x8x8xf32> to vector<8x8xf32>
    %cst_74 = arith.constant dense<0.000000e+00> : vector<8x256xf32>
    %110 = tpu.matmul %109, %107, %cst_74 {dimension_numbers = #tpu.dot_dimension_numbers<[1], [0], [0], [1], [0, 0, 1, 1], [], []>} : vector<8x8xf32>, vector<8x256xf32>, vector<8x256xf32> -> vector<8x256xf32>
    %111 = arith.addf %102, %110 : vector<8x256xf32>
    %c15_i32_75 = arith.constant 15 : i32
    %112 = tpu.dynamic_rotate %94 by %c15_i32_75 dim 1 : vector<8x256xf32>, i32 -> vector<8x256xf32>
    %c2_76 = arith.constant 2 : index
    %c0_77 = arith.constant 0 : index
    %c0_78 = arith.constant 0 : index
    %113 = vector.load %arg4[%c2_76, %c0_77, %c0_78] : memref<9x1x256xf32, #tpu.memory_space<vmem>>, vector<1x1x256xf32>
    %114 = vector.shape_cast %113 : vector<1x1x256xf32> to vector<1x256xf32>
    %115 = vector.broadcast %114 : vector<1x256xf32> to vector<8x256xf32>
    %116 = arith.mulf %112, %115 : vector<8x256xf32>
    %c2_79 = arith.constant 2 : index
    %c0_80 = arith.constant 0 : index
    %c0_81 = arith.constant 0 : index
    %117 = vector.load %arg3[%c2_79, %c0_80, %c0_81] : memref<9x8x8xf32, #tpu.memory_space<vmem>>, vector<1x8x8xf32>
    %118 = vector.shape_cast %117 : vector<1x8x8xf32> to vector<8x8xf32>
    %cst_82 = arith.constant dense<0.000000e+00> : vector<8x256xf32>
    %119 = tpu.matmul %118, %116, %cst_82 {dimension_numbers = #tpu.dot_dimension_numbers<[1], [0], [0], [1], [0, 0, 1, 1], [], []>} : vector<8x8xf32>, vector<8x256xf32>, vector<8x256xf32> -> vector<8x256xf32>
    %120 = arith.addf %111, %119 : vector<8x256xf32>
    %c1_i32_83 = arith.constant 1 : i32
    %121 = tpu.dynamic_rotate %94 by %c1_i32_83 dim 1 : vector<8x256xf32>, i32 -> vector<8x256xf32>
    %c3_84 = arith.constant 3 : index
    %c0_85 = arith.constant 0 : index
    %c0_86 = arith.constant 0 : index
    %122 = vector.load %arg4[%c3_84, %c0_85, %c0_86] : memref<9x1x256xf32, #tpu.memory_space<vmem>>, vector<1x1x256xf32>
    %123 = vector.shape_cast %122 : vector<1x1x256xf32> to vector<1x256xf32>
    %124 = vector.broadcast %123 : vector<1x256xf32> to vector<8x256xf32>
    %125 = arith.mulf %121, %124 : vector<8x256xf32>
    %c3_87 = arith.constant 3 : index
    %c0_88 = arith.constant 0 : index
    %c0_89 = arith.constant 0 : index
    %126 = vector.load %arg3[%c3_87, %c0_88, %c0_89] : memref<9x8x8xf32, #tpu.memory_space<vmem>>, vector<1x8x8xf32>
    %127 = vector.shape_cast %126 : vector<1x8x8xf32> to vector<8x8xf32>
    %cst_90 = arith.constant dense<0.000000e+00> : vector<8x256xf32>
    %128 = tpu.matmul %127, %125, %cst_90 {dimension_numbers = #tpu.dot_dimension_numbers<[1], [0], [0], [1], [0, 0, 1, 1], [], []>} : vector<8x8xf32>, vector<8x256xf32>, vector<8x256xf32> -> vector<8x256xf32>
    %129 = arith.addf %120, %128 : vector<8x256xf32>
    %c4_91 = arith.constant 4 : index
    %c0_92 = arith.constant 0 : index
    %c0_93 = arith.constant 0 : index
    %130 = vector.load %arg3[%c4_91, %c0_92, %c0_93] : memref<9x8x8xf32, #tpu.memory_space<vmem>>, vector<1x8x8xf32>
    %131 = vector.shape_cast %130 : vector<1x8x8xf32> to vector<8x8xf32>
    %cst_94 = arith.constant dense<0.000000e+00> : vector<8x256xf32>
    %132 = tpu.matmul %131, %94, %cst_94 {dimension_numbers = #tpu.dot_dimension_numbers<[1], [0], [0], [1], [0, 0, 1, 1], [], []>} : vector<8x8xf32>, vector<8x256xf32>, vector<8x256xf32> -> vector<8x256xf32>
    %133 = arith.addf %129, %132 : vector<8x256xf32>
    %c255_i32_95 = arith.constant 255 : i32
    %134 = tpu.dynamic_rotate %94 by %c255_i32_95 dim 1 : vector<8x256xf32>, i32 -> vector<8x256xf32>
    %c5_96 = arith.constant 5 : index
    %c0_97 = arith.constant 0 : index
    %c0_98 = arith.constant 0 : index
    %135 = vector.load %arg4[%c5_96, %c0_97, %c0_98] : memref<9x1x256xf32, #tpu.memory_space<vmem>>, vector<1x1x256xf32>
    %136 = vector.shape_cast %135 : vector<1x1x256xf32> to vector<1x256xf32>
    %137 = vector.broadcast %136 : vector<1x256xf32> to vector<8x256xf32>
    %138 = arith.mulf %134, %137 : vector<8x256xf32>
    %c5_99 = arith.constant 5 : index
    %c0_100 = arith.constant 0 : index
    %c0_101 = arith.constant 0 : index
    %139 = vector.load %arg3[%c5_99, %c0_100, %c0_101] : memref<9x8x8xf32, #tpu.memory_space<vmem>>, vector<1x8x8xf32>
    %140 = vector.shape_cast %139 : vector<1x8x8xf32> to vector<8x8xf32>
    %cst_102 = arith.constant dense<0.000000e+00> : vector<8x256xf32>
    %141 = tpu.matmul %140, %138, %cst_102 {dimension_numbers = #tpu.dot_dimension_numbers<[1], [0], [0], [1], [0, 0, 1, 1], [], []>} : vector<8x8xf32>, vector<8x256xf32>, vector<8x256xf32> -> vector<8x256xf32>
    %142 = arith.addf %133, %141 : vector<8x256xf32>
    %c241_i32_103 = arith.constant 241 : i32
    %143 = tpu.dynamic_rotate %94 by %c241_i32_103 dim 1 : vector<8x256xf32>, i32 -> vector<8x256xf32>
    %c6_104 = arith.constant 6 : index
    %c0_105 = arith.constant 0 : index
    %c0_106 = arith.constant 0 : index
    %144 = vector.load %arg4[%c6_104, %c0_105, %c0_106] : memref<9x1x256xf32, #tpu.memory_space<vmem>>, vector<1x1x256xf32>
    %145 = vector.shape_cast %144 : vector<1x1x256xf32> to vector<1x256xf32>
    %146 = vector.broadcast %145 : vector<1x256xf32> to vector<8x256xf32>
    %147 = arith.mulf %143, %146 : vector<8x256xf32>
    %c6_107 = arith.constant 6 : index
    %c0_108 = arith.constant 0 : index
    %c0_109 = arith.constant 0 : index
    %148 = vector.load %arg3[%c6_107, %c0_108, %c0_109] : memref<9x8x8xf32, #tpu.memory_space<vmem>>, vector<1x8x8xf32>
    %149 = vector.shape_cast %148 : vector<1x8x8xf32> to vector<8x8xf32>
    %cst_110 = arith.constant dense<0.000000e+00> : vector<8x256xf32>
    %150 = tpu.matmul %149, %147, %cst_110 {dimension_numbers = #tpu.dot_dimension_numbers<[1], [0], [0], [1], [0, 0, 1, 1], [], []>} : vector<8x8xf32>, vector<8x256xf32>, vector<8x256xf32> -> vector<8x256xf32>
    %151 = arith.addf %142, %150 : vector<8x256xf32>
    %c240_i32_111 = arith.constant 240 : i32
    %152 = tpu.dynamic_rotate %94 by %c240_i32_111 dim 1 : vector<8x256xf32>, i32 -> vector<8x256xf32>
    %c7_112 = arith.constant 7 : index
    %c0_113 = arith.constant 0 : index
    %c0_114 = arith.constant 0 : index
    %153 = vector.load %arg4[%c7_112, %c0_113, %c0_114] : memref<9x1x256xf32, #tpu.memory_space<vmem>>, vector<1x1x256xf32>
    %154 = vector.shape_cast %153 : vector<1x1x256xf32> to vector<1x256xf32>
    %155 = vector.broadcast %154 : vector<1x256xf32> to vector<8x256xf32>
    %156 = arith.mulf %152, %155 : vector<8x256xf32>
    %c7_115 = arith.constant 7 : index
    %c0_116 = arith.constant 0 : index
    %c0_117 = arith.constant 0 : index
    %157 = vector.load %arg3[%c7_115, %c0_116, %c0_117] : memref<9x8x8xf32, #tpu.memory_space<vmem>>, vector<1x8x8xf32>
    %158 = vector.shape_cast %157 : vector<1x8x8xf32> to vector<8x8xf32>
    %cst_118 = arith.constant dense<0.000000e+00> : vector<8x256xf32>
    %159 = tpu.matmul %158, %156, %cst_118 {dimension_numbers = #tpu.dot_dimension_numbers<[1], [0], [0], [1], [0, 0, 1, 1], [], []>} : vector<8x8xf32>, vector<8x256xf32>, vector<8x256xf32> -> vector<8x256xf32>
    %160 = arith.addf %151, %159 : vector<8x256xf32>
    %c239_i32_119 = arith.constant 239 : i32
    %161 = tpu.dynamic_rotate %94 by %c239_i32_119 dim 1 : vector<8x256xf32>, i32 -> vector<8x256xf32>
    %c8_120 = arith.constant 8 : index
    %c0_121 = arith.constant 0 : index
    %c0_122 = arith.constant 0 : index
    %162 = vector.load %arg4[%c8_120, %c0_121, %c0_122] : memref<9x1x256xf32, #tpu.memory_space<vmem>>, vector<1x1x256xf32>
    %163 = vector.shape_cast %162 : vector<1x1x256xf32> to vector<1x256xf32>
    %164 = vector.broadcast %163 : vector<1x256xf32> to vector<8x256xf32>
    %165 = arith.mulf %161, %164 : vector<8x256xf32>
    %c8_123 = arith.constant 8 : index
    %c0_124 = arith.constant 0 : index
    %c0_125 = arith.constant 0 : index
    %166 = vector.load %arg3[%c8_123, %c0_124, %c0_125] : memref<9x8x8xf32, #tpu.memory_space<vmem>>, vector<1x8x8xf32>
    %167 = vector.shape_cast %166 : vector<1x8x8xf32> to vector<8x8xf32>
    %cst_126 = arith.constant dense<0.000000e+00> : vector<8x256xf32>
    %168 = tpu.matmul %167, %165, %cst_126 {dimension_numbers = #tpu.dot_dimension_numbers<[1], [0], [0], [1], [0, 0, 1, 1], [], []>} : vector<8x8xf32>, vector<8x256xf32>, vector<8x256xf32> -> vector<8x256xf32>
    %169 = arith.addf %160, %168 : vector<8x256xf32>
    %cst_127 = arith.constant dense<0.000000e+00> : vector<8xf32>
    %170 = vector.multi_reduction <add>, %169, %cst_127 [1] : vector<8x256xf32> to vector<8xf32>
    %171 = vector.shape_cast %170 : vector<8xf32> to vector<8x1xf32>
    %cst_128 = arith.constant 3.906250e-03 : f32
    %172 = vector.broadcast %cst_128 : f32 to vector<8x1xf32>
    %173 = arith.mulf %171, %172 : vector<8x1xf32>
    %174 = vector.broadcast %173 : vector<8x1xf32> to vector<8x256xf32>
    %175 = arith.subf %169, %174 : vector<8x256xf32>
    %176 = arith.mulf %175, %175 : vector<8x256xf32>
    %cst_129 = arith.constant dense<0.000000e+00> : vector<8xf32>
    %177 = vector.multi_reduction <add>, %176, %cst_129 [1] : vector<8x256xf32> to vector<8xf32>
    %178 = vector.shape_cast %177 : vector<8xf32> to vector<8x1xf32>
    %cst_130 = arith.constant 3.906250e-03 : f32
    %179 = vector.broadcast %cst_130 : f32 to vector<8x1xf32>
    %180 = arith.mulf %178, %179 : vector<8x1xf32>
    %cst_131 = arith.constant 9.99999974E-6 : f32
    %181 = vector.broadcast %cst_131 : f32 to vector<8x1xf32>
    %182 = arith.addf %180, %181 : vector<8x1xf32>
    %183 = math.rsqrt %182 : vector<8x1xf32>
    %184 = vector.broadcast %183 : vector<8x1xf32> to vector<8x256xf32>
    %185 = arith.mulf %175, %184 : vector<8x256xf32>
    %186 = arith.addf %185, %1 : vector<8x256xf32>
    %c0_132 = arith.constant 0 : index
    %c0_133 = arith.constant 0 : index
    %c0_134 = arith.constant 0 : index
    %187 = vector.load %arg5[%c0_132, %c0_133, %c0_134] : memref<1x8x256xf32, #tpu.memory_space<vmem>>, vector<1x8x256xf32>
    %188 = vector.shape_cast %187 : vector<1x8x256xf32> to vector<8x256xf32>
    %189 = vector.shape_cast %186 : vector<8x256xf32> to vector<1x8x256xf32>
    tpu.vector_store %arg5[%c0_132, %c0_133, %c0_134], %189 {strides = array<i32>} : memref<1x8x256xf32, #tpu.memory_space<vmem>>, vector<1x8x256xf32>,
    return
  }
  func.func @transform_0(%arg0: i32) -> (i32, i32, i32) {
    %c0_i32 = arith.constant 0 : i32
    %c0_i32_0 = arith.constant 0 : i32
    %c0_i32_1 = arith.constant 0 : i32
    return %arg0, %c0_i32, %c0_i32_0 : i32, i32, i32
  }
  func.func @transform_1(%arg0: i32) -> (i32, i32, i32) {
    %c0_i32 = arith.constant 0 : i32
    %c0_i32_0 = arith.constant 0 : i32
    %c0_i32_1 = arith.constant 0 : i32
    %c0_i32_2 = arith.constant 0 : i32
    return %c0_i32, %c0_i32_0, %c0_i32_1 : i32, i32, i32
  }
  func.func @transform_2(%arg0: i32) -> (i32, i32, i32) {
    %c0_i32 = arith.constant 0 : i32
    %c0_i32_0 = arith.constant 0 : i32
    %c0_i32_1 = arith.constant 0 : i32
    %c0_i32_2 = arith.constant 0 : i32
    return %c0_i32, %c0_i32_0, %c0_i32_1 : i32, i32, i32
  }
  func.func @transform_3(%arg0: i32) -> (i32, i32, i32) {
    %c0_i32 = arith.constant 0 : i32
    %c0_i32_0 = arith.constant 0 : i32
    %c0_i32_1 = arith.constant 0 : i32
    %c0_i32_2 = arith.constant 0 : i32
    return %c0_i32, %c0_i32_0, %c0_i32_1 : i32, i32, i32
  }
  func.func @transform_4(%arg0: i32) -> (i32, i32, i32) {
    %c0_i32 = arith.constant 0 : i32
    %c0_i32_0 = arith.constant 0 : i32
    %c0_i32_1 = arith.constant 0 : i32
    return %arg0, %c0_i32, %c0_i32_0 : i32, i32, i32
  }
}

</mosaic_0001>

<llo_original>
// kernel: tpu_custom_call.1
$region0: #{tpu_custom_call.1}
  #allocation0 [shape = 'u32[]', space=smem, size = 0x4, offset = 0x4, fixed_abs, tag = 'smem constant byte address 0x4 - core index']
  #allocation1 [shape = 'u32[144,128]{1,0:T(1,128)}', space=vmem, size = 0x12000, scoped, tag = 'internal scratch']
  %s0 = inlined_call_operand.vmem [shape: f32[2,8,256], index: 0, kind: input, shape index: {}]
  %s1 = inlined_call_operand.vmem [shape: f32[9,8,8], index: 1, kind: input, shape index: {}]
  %s2 = inlined_call_operand.vmem [shape: f32[9,8,8], index: 2, kind: input, shape index: {}]
  %s3 = inlined_call_operand.vmem [shape: f32[9,1,256], index: 3, kind: input, shape index: {}]
  %s4 = inlined_call_operand.hbm [shape: f32[2,8,256], index: 4, kind: output, shape index: {}]
  %s5 = sld [smem:[#allocation0]]
  $region49: #{tpu_custom_call.1} parent=0
    _
  %s7 = ssub.s32 1, %s5
  %s8 = scalar_select 0, %s7, %s5
  $region1: #{tpu_custom_call.1} parent=0
    #allocation2 [shape = 'u8[16384]{0}', space=vmem, size = 0x4000, scoped, tag = 'output window, operand 0']
    #allocation3 [shape = 's32[2]{0}', space=sflag, size = 0x8, scoped, tag = 'scoped memory for tpu_custom_call.1']
    %9 = vsyncpa [#allocation3], 0
    %s10 = scalar_lea.sflag [#allocation3], 1
    %11 = vsyncpa %s10, 0
    loop: start=0, step=1, limit=4
    $region2: #{tpu_custom_call.1} parent=1 // loop_pre_header
      _
    $region3: #{tpu_custom_call.1} parent=1 // loop_header
      %s13 = sphi 0, %s17
      %p14 = scmp.ge.s32.totalorder %s13, 4
      %s23 = sphi 0, %s25
      %s26 = sphi 0, %s23
      %s27 = sphi 0, %s26
      %s43 = sphi 0, %s27
      %s47 = sphi 0, %s47
      %s49 = sphi 0, %s47
      %s50 = sphi 0, %s49
      %s64 = sphi 0, %s50
      %s68 = sphi 0, %s68
      %s70 = sphi 0, %s68
      %s71 = sphi 0, %s70
      %s85 = sphi 0, %s71
      %s89 = sphi 0, %s89
      %s91 = sphi 0, %s89
      %s92 = sphi 0, %s91
      %s106 = sphi 0, %s92
      %s112 = sphi 0, %s114
      %s115 = sphi 0, %s112
      %s116 = sphi 0, %s115
      %s132 = sphi 0, %s116
    $region4: #{tpu_custom_call.1} parent=1 // loop_header_branch
      %16 = sbr.rel (%p14) target = $region8
    $region5: #{tpu_custom_call.1} parent=1 // loop_body
      %s18 = ssub.s32 %s13, 1
      %s19 = ssub.s32 %s13, 2
      %s20 = sadd.s32 %s13, 1
      %s21 = ssub.s32 %s13, %s20
      %p22 = scmp.eq.s32.totalorder %s21, 0
      %s24 = sadd.s32 %s23, 1
      %s25 = scalar_select %p22, %s23, %s24
      %p28 = pneg %p22
      %p29 = scmp.eq.s32.totalorder %s13, 1
      %p30 = por %p28, %p29
      %p31 = scmp.ne.s32.totalorder %s23, %s26
      %p32 = scmp.eq.s32.totalorder %s13, 0
      %p33 = por %p31, %p32
      %p34 = scmp.ne.s32.totalorder %s23, %s26
      %p35 = scmp.eq.s32.totalorder %s18, 1
      %p36 = por %p34, %p35
      %p37 = scmp.ne.s32.totalorder %s26, %s27
      %p38 = scmp.eq.s32.totalorder %s18, 0
      %p39 = por %p37, %p38
      %p40 = scmp.ne.s32.totalorder %s26, %s27
      %p41 = scmp.eq.s32.totalorder %s19, 1
      %p42 = por %p40, %p41
      %p44 = scmp.ne.s32.totalorder %s27, %s43
      %p45 = scmp.eq.s32.totalorder %s19, 0
      %p46 = por %p44, %p45
      %s48 = sadd.s32 %s47, 1
      %p51 = scmp.eq.s32.totalorder %s13, 1
      %p52 = scmp.ne.s32.totalorder %s47, %s49
      %p53 = scmp.eq.s32.totalorder %s13, 0
      %p54 = por %p52, %p53
      %p55 = scmp.ne.s32.totalorder %s47, %s49
      %p56 = scmp.eq.s32.totalorder %s18, 1
      %p57 = por %p55, %p56
      %p58 = scmp.ne.s32.totalorder %s49, %s50
      %p59 = scmp.eq.s32.totalorder %s18, 0
      %p60 = por %p58, %p59
      %p61 = scmp.ne.s32.totalorder %s49, %s50
      %p62 = scmp.eq.s32.totalorder %s19, 1
      %p63 = por %p61, %p62
      %p65 = scmp.ne.s32.totalorder %s50, %s64
      %p66 = scmp.eq.s32.totalorder %s19, 0
      %p67 = por %p65, %p66
      %s69 = sadd.s32 %s68, 1
      %p72 = scmp.eq.s32.totalorder %s13, 1
      %p73 = scmp.ne.s32.totalorder %s68, %s70
      %p74 = scmp.eq.s32.totalorder %s13, 0
      %p75 = por %p73, %p74
      %p76 = scmp.ne.s32.totalorder %s68, %s70
      %p77 = scmp.eq.s32.totalorder %s18, 1
      %p78 = por %p76, %p77
      %p79 = scmp.ne.s32.totalorder %s70, %s71
      %p80 = scmp.eq.s32.totalorder %s18, 0
      %p81 = por %p79, %p80
      %p82 = scmp.ne.s32.totalorder %s70, %s71
      %p83 = scmp.eq.s32.totalorder %s19, 1
      %p84 = por %p82, %p83
      %p86 = scmp.ne.s32.totalorder %s71, %s85
      %p87 = scmp.eq.s32.totalorder %s19, 0
      %p88 = por %p86, %p87
      %s90 = sadd.s32 %s89, 1
      %p93 = scmp.eq.s32.totalorder %s13, 1
      %p94 = scmp.ne.s32.totalorder %s89, %s91
      %p95 = scmp.eq.s32.totalorder %s13, 0
      %p96 = por %p94, %p95
      %p97 = scmp.ne.s32.totalorder %s89, %s91
      %p98 = scmp.eq.s32.totalorder %s18, 1
      %p99 = por %p97, %p98
      %p100 = scmp.ne.s32.totalorder %s91, %s92
      %p101 = scmp.eq.s32.totalorder %s18, 0
      %p102 = por %p100, %p101
      %p103 = scmp.ne.s32.totalorder %s91, %s92
      %p104 = scmp.eq.s32.totalorder %s19, 1
      %p105 = por %p103, %p104
      %p107 = scmp.ne.s32.totalorder %s92, %s106
      %p108 = scmp.eq.s32.totalorder %s19, 0
      %p109 = por %p107, %p108
      %s110 = ssub.s32 %s13, %s20
      %p111 = scmp.eq.s32.totalorder %s110, 0
      %s113 = sadd.s32 %s112, 1
      %s114 = scalar_select %p111, %s112, %s113
      %p117 = pneg %p111
      %p118 = scmp.eq.s32.totalorder %s13, 1
      %p119 = por %p117, %p118
      %p120 = scmp.ne.s32.totalorder %s112, %s115
      %p121 = scmp.eq.s32.totalorder %s13, 0
      %p122 = por %p120, %p121
      %p123 = scmp.ne.s32.totalorder %s112, %s115
      %p124 = scmp.eq.s32.totalorder %s18, 1
      %p125 = por %p123, %p124
      %p126 = scmp.ne.s32.totalorder %s115, %s116
      %p127 = scmp.eq.s32.totalorder %s18, 0
      %p128 = por %p126, %p127
      %p129 = scmp.ne.s32.totalorder %s115, %s116
      %p130 = scmp.eq.s32.totalorder %s19, 1
      %p131 = por %p129, %p130
      %p133 = scmp.ne.s32.totalorder %s116, %s132
      %p134 = scmp.eq.s32.totalorder %s19, 0
      %p135 = por %p133, %p134
      %p136 = scmp.le.s32.totalorder 1, %s13
      %p137 = scmp.lt.s32.totalorder %s13, 3
      %p138 = pnand %p136, %p137
      %p139 = pneg %p138
      // Predicated region
      $region9: #{tpu_custom_call.1} parent=5 // pred_check
        _
      $region10: #{tpu_custom_call.1} parent=5 // pred_check_branch
        %141 = sbr.rel (%p138) target = $region12
      $region11: #{tpu_custom_call.1} parent=5 // pred_region
        %s142 = ssub.s32 %s13, 1
        // Predicated region
        $region13: #{tpu_custom_call.1} parent=11 // pred_check
          %p143 = pneg %p60
        $region14: #{tpu_custom_call.1} parent=11 // pred_check_branch
          %145 = sbr.rel (%p143) target = $region16
        $region15: #{tpu_custom_call.1} parent=11 // pred_region
          _
        $region16: #{tpu_custom_call.1} parent=11 // pred_fallthru
          _
        // Predicated region
        $region17: #{tpu_custom_call.1} parent=11 // pred_check
          %p146 = pneg %p81
        $region18: #{tpu_custom_call.1} parent=11 // pred_check_branch
          %148 = sbr.rel (%p146) target = $region20
        $region19: #{tpu_custom_call.1} parent=11 // pred_region
          _
        $region20: #{tpu_custom_call.1} parent=11 // pred_fallthru
          _
        // Predicated region
        $region21: #{tpu_custom_call.1} parent=11 // pred_check
          %p149 = pneg %p102
        $region22: #{tpu_custom_call.1} parent=11 // pred_check_branch
          %151 = sbr.rel (%p149) target = $region24
        $region23: #{tpu_custom_call.1} parent=11 // pred_region
          _
        $region24: #{tpu_custom_call.1} parent=11 // pred_fallthru
          _
      $region12: #{tpu_custom_call.1} parent=5 // pred_fallthru
        _
      %p152 = scmp.lt.s32.totalorder %s13, 2
      // Predicated region
      $region25: #{tpu_custom_call.1} parent=5 // pred_check
        %p153 = pneg %p152
      $region26: #{tpu_custom_call.1} parent=5 // pred_check_branch
        %155 = sbr.rel (%p153) target = $region28
      $region27: #{tpu_custom_call.1} parent=5 // pred_region
        // Predicated region
        $region29: #{tpu_custom_call.1} parent=27 // pred_check
          %p156 = pneg %p33
        $region30: #{tpu_custom_call.1} parent=27 // pred_check_branch
          %158 = sbr.rel (%p156) target = $region32
        $region31: #{tpu_custom_call.1} parent=27 // pred_region
          %p159 = scmp.lt.s32.totalorder %s13, 1
          %s160 = scalar_select %p159, %s13, 1
          %s161 = smul.addr %s160, 2
          %s162 = smul.addr %s161, 8
          %s163 = scalar_lea.vmem %s0, %s162
        $region32: #{tpu_custom_call.1} parent=27 // pred_fallthru
          _
      $region28: #{tpu_custom_call.1} parent=5 // pred_fallthru
        _
      %p164 = scmp.le.s32.totalorder 1, %s13
      %p165 = scmp.lt.s32.totalorder %s13, 3
      %p166 = pnand %p164, %p165
      %p167 = pneg %p166
      // Predicated region
      $region33: #{tpu_custom_call.1} parent=5 // pred_check
        _
      $region34: #{tpu_custom_call.1} parent=5 // pred_check_branch
        %169 = sbr.rel (%p166) target = $region36
      $region35: #{tpu_custom_call.1} parent=5 // pred_region
        %s170 = ssub.s32 %s13, 1
        %p171 = scmp.lt.s32.totalorder %s18, 1
        %s172 = scalar_select %p171, %s18, 1
        %s173 = smul.addr %s172, 2
        %s174 = smul.addr %s173, 8
        %s175 = scalar_lea.vmem %s0, %s174
        %p176 = pneg %p39
        %p177 = pneg %p36
        %p178 = pneg %p60
        %p179 = pneg %p57
        %p180 = pneg %p81
        %p181 = pneg %p78
        %p182 = pneg %p102
        %p183 = pneg %p99
        %p184 = pneg %p128
        %p185 = pneg %p125
        %s186 = sand.u32 %s115, 1
        %s187 = scalar_lea.sflag [#allocation3], %s186
        %s188 = sand.u32 %s115, 1
        %s189 = smul.addr %s188, 16
        %s190 = scalar_lea.vmem [#allocation2], %s189
        %p191 = scmp.lt.s32.totalorder %s18, 1
        %s192 = scalar_select %p191, %s18, 1
        %s193 = smul.addr %s192, 2
        %s194 = smul.addr %s193, 8
        %s195 = scalar_lea.vmem %s0, %s194
        %v196 = vld [vmem:[%s195] sm:$0xff]
        %v197 = vld [vmem:[%s195 + $0x8] sm:$0xff]
        %198 = vrot.lane.b32.xlu0 %v196, 17
        %v199 = vpop.permute.xlu0 %198
        %200 = vrot.lane.b32.xlu0 %v197, 17
        %v201 = vpop.permute.xlu0 %200
        %v202 = vlaneseq
        %v203 = vand.u32 %v202, 127
        %vm204 = vcmp.lt.s32.totalorder %v203, 17
        %v205 = vsel %vm204, %v199, %v201
        %v206 = vsel %vm204, %v201, %v199
        %v207 = vld [vmem:[%s3] sm:$0x3]
        %v209 = vlaneseq
        %v210 = vshrl.u32 %v209, 7
        %v211 = vsub.s32 0, %v210
        %v212 = vrot.slane %v207, %v211
        %v213 = vlaneseq
        %v214 = vshrl.u32 %v213, 7
        %v215 = vsub.s32 1, %v214
        %v216 = vrot.slane %v207, %v215
        %v219 = vmul.f32 %v206, %v212
        %v220 = vmul.f32 %v205, %v216
        %v221 = vld [vmem:[%s1] sm:$0xff]
        %222 = vrot.lane.b32.xlu0 %v196, 16
        %v223 = vpop.permute.xlu0 %222
        %224 = vrot.lane.b32.xlu0 %v197, 16
        %v225 = vpop.permute.xlu0 %224
        %vm226 = vcmp.lt.s32.totalorder %v203, 16
        %v227 = vsel %vm226, %v223, %v225
        %v228 = vsel %vm226, %v225, %v223
        %s229 = scalar_lea.vmem %s3, 2
        %v230 = vld [vmem:[%s229] sm:$0x3]
        %v232 = vlaneseq
        %v233 = vshrl.u32 %v232, 7
        %v234 = vsub.s32 0, %v233
        %v235 = vrot.slane %v230, %v234
        %v236 = vlaneseq
        %v237 = vshrl.u32 %v236, 7
        %v238 = vsub.s32 1, %v237
        %v239 = vrot.slane %v230, %v238
        %v242 = vmul.f32 %v228, %v235
        %v243 = vmul.f32 %v227, %v239
        %s244 = scalar_lea.vmem %s1, 8
        %v245 = vld [vmem:[%s244] sm:$0xff]
        %vm246 = vcmask 64512
        %v248 = vsel %vm246, %v245, 0
        %250 = vmatprep.subr.mxu0 %v243
        %251 = vmatpush1.msra.mxu0 %v242
        %252 = vmatprep.subr.mxu0 0.0
        %253 = vmatpush1.msra.mxu0 0.0
        %254 = vmatprep.subr.mxu0 0.0
        %255 = vmatpush1.msra.mxu0 0.0
        %256 = vmatprep.subr.mxu0 0.0
        %257 = vmatpush1.msra.mxu0 0.0
        %258 = vmatprep.subr.mxu0 0.0
        %259 = vmatpush1.msra.mxu0 0.0
        %260 = vmatprep.subr.mxu0 0.0
        %261 = vmatpush1.msra.mxu0 0.0
        %262 = vmatprep.subr.mxu0 0.0
        %263 = vmatpush1.msra.mxu0 0.0
        %264 = vmatprep.subr.mxu0 0.0
        %265 = vmatpush1.msra.mxu0 0.0
        %266 = vmatprep.subr.mxu0 0.0
        %267 = vmatpush1.msra.mxu0 0.0
        %268 = vmatprep.subr.mxu0 0.0
        %269 = vmatpush1.msra.mxu0 0.0
        %270 = vmatprep.subr.mxu0 0.0
        %271 = vmatpush1.msra.mxu0 0.0
        %272 = vmatprep.subr.mxu0 0.0
        %273 = vmatpush1.msra.mxu0 0.0
        %274 = vmatprep.subr.mxu0 0.0
        %275 = vmatpush1.msra.mxu0 0.0
        %276 = vmatprep.subr.mxu0 0.0
        %277 = vmatpush1.msra.mxu0 0.0
        %278 = vmatprep.subr.mxu0 0.0
        %279 = vmatpush1.msra.mxu0 0.0
        %280 = vmatprep.subr.mxu0 0.0
        %281 = vmatpush1.msra.mxu0 0.0
        %282 = vmatprep.subr.mxu0 0.0
        %283 = vmatpush1.msra.mxu0 0.0
        %284 = vmatprep.subr.mxu0 0.0
        %285 = vmatpush1.msra.mxu0 0.0
        %286 = vmatprep.subr.mxu0 0.0
        %287 = vmatpush1.msra.mxu0 0.0
        %288 = vmatprep.subr.mxu0 0.0
        %289 = vmatpush1.msra.mxu0 0.0
        %290 = vmatprep.subr.mxu0 0.0
        %291 = vmatpush1.msra.mxu0 0.0
        %292 = vmatprep.subr.mxu0 0.0
        %293 = vmatpush1.msra.mxu0 0.0
        %294 = vmatprep.subr.mxu0 0.0
        %295 = vmatpush1.msra.mxu0 0.0
        %296 = vmatprep.subr.mxu0 0.0
        %297 = vmatpush1.msra.mxu0 0.0
        %298 = vmatprep.subr.mxu0 0.0
        %299 = vmatpush1.msra.mxu0 0.0
        %300 = vmatprep.subr.mxu0 0.0
        %301 = vmatpush1.msra.mxu0 0.0
        %302 = vmatprep.subr.mxu0 0.0
        %303 = vmatpush1.msra.mxu0 0.0
        %304 = vmatprep.subr.mxu0 0.0
        %305 = vmatpush1.msra.mxu0 0.0
        %306 = vmatprep.subr.mxu0 0.0
        %307 = vmatpush1.msra.mxu0 0.0
        %308 = vmatprep.subr.mxu0 0.0
        %309 = vmatpush1.msra.mxu0 0.0
        %310 = vmatprep.subr.mxu0 0.0
        %311 = vmatpush1.msra.mxu0 0.0
        %312 = vmatprep.subr.mxu0 0.0
        %313 = vmatpush1.msra.mxu0 0.0
        %314 = vmatprep.mubr.f32.mxu0 0.0
        %315 = vmatmul.mubr.f32.gmra.mrb[0].mxu0 %v248
        %v316 = vpop.f32.mrb[0].mxu0
        %v317 = vadd.f32 0.0, %v316
        %v318 = vpop.f32.mrb[0].mxu0
        %v319 = vadd.f32 0.0, %v318
        %320 = vdwg.mxu0
        %v322 = vsel %vm246, %v221, 0
        %324 = vmatprep.subr.mxu0 %v220
        %325 = vmatpush1.msra.mxu0 %v219
        %326 = vmatprep.subr.mxu0 0.0
        %327 = vmatpush1.msra.mxu0 0.0
        %328 = vmatprep.subr.mxu0 0.0
        %329 = vmatpush1.msra.mxu0 0.0
        %330 = vmatprep.subr.mxu0 0.0
        %331 = vmatpush1.msra.mxu0 0.0
        %332 = vmatprep.subr.mxu0 0.0
        %333 = vmatpush1.msra.mxu0 0.0
        %334 = vmatprep.subr.mxu0 0.0
        %335 = vmatpush1.msra.mxu0 0.0
        %336 = vmatprep.subr.mxu0 0.0
        %337 = vmatpush1.msra.mxu0 0.0
        %338 = vmatprep.subr.mxu0 0.0
        %339 = vmatpush1.msra.mxu0 0.0
        %340 = vmatprep.subr.mxu0 0.0
        %341 = vmatpush1.msra.mxu0 0.0
        %342 = vmatprep.subr.mxu0 0.0
        %343 = vmatpush1.msra.mxu0 0.0
        %344 = vmatprep.subr.mxu0 0.0
        %345 = vmatpush1.msra.mxu0 0.0
        %346 = vmatprep.subr.mxu0 0.0
        %347 = vmatpush1.msra.mxu0 0.0
        %348 = vmatprep.subr.mxu0 0.0
        %349 = vmatpush1.msra.mxu0 0.0
        %350 = vmatprep.subr.mxu0 0.0
        %351 = vmatpush1.msra.mxu0 0.0
        %352 = vmatprep.subr.mxu0 0.0
        %353 = vmatpush1.msra.mxu0 0.0
        %354 = vmatprep.subr.mxu0 0.0
        %355 = vmatpush1.msra.mxu0 0.0
        %356 = vmatprep.subr.mxu0 0.0
        %357 = vmatpush1.msra.mxu0 0.0
        %358 = vmatprep.subr.mxu0 0.0
        %359 = vmatpush1.msra.mxu0 0.0
        %360 = vmatprep.subr.mxu0 0.0
        %361 = vmatpush1.msra.mxu0 0.0
        %362 = vmatprep.subr.mxu0 0.0
        %363 = vmatpush1.msra.mxu0 0.0
        %364 = vmatprep.subr.mxu0 0.0
        %365 = vmatpush1.msra.mxu0 0.0
        %366 = vmatprep.subr.mxu0 0.0
        %367 = vmatpush1.msra.mxu0 0.0
        %368 = vmatprep.subr.mxu0 0.0
        %369 = vmatpush1.msra.mxu0 0.0
        %370 = vmatprep.subr.mxu0 0.0
        %371 = vmatpush1.msra.mxu0 0.0
        %372 = vmatprep.subr.mxu0 0.0
        %373 = vmatpush1.msra.mxu0 0.0
        %374 = vmatprep.subr.mxu0 0.0
        %375 = vmatpush1.msra.mxu0 0.0
        %376 = vmatprep.subr.mxu0 0.0
        %377 = vmatpush1.msra.mxu0 0.0
        %378 = vmatprep.subr.mxu0 0.0
        %379 = vmatpush1.msra.mxu0 0.0
        %380 = vmatprep.subr.mxu0 0.0
        %381 = vmatpush1.msra.mxu0 0.0
        %382 = vmatprep.subr.mxu0 0.0
        %383 = vmatpush1.msra.mxu0 0.0
        %384 = vmatprep.subr.mxu0 0.0
        %385 = vmatpush1.msra.mxu0 0.0
        %386 = vmatprep.subr.mxu0 0.0
        %387 = vmatpush1.msra.mxu0 0.0
        %388 = vmatprep.mubr.f32.mxu0 0.0
        %389 = vmatmul.mubr.f32.gmra.mrb[0].mxu0 %v322
        %v390 = vpop.f32.mrb[0].mxu0
        %v391 = vadd.f32 %v317, %v390
        %v392 = vpop.f32.mrb[0].mxu0
        %v393 = vadd.f32 %v319, %v392
        %394 = vdwg.mxu0
        %395 = vrot.lane.b32.xlu0 %v196, 15
        %v396 = vpop.permute.xlu0 %395
        %397 = vrot.lane.b32.xlu0 %v197, 15
        %v398 = vpop.permute.xlu0 %397
        %vm399 = vcmp.lt.s32.totalorder %v203, 15
        %v400 = vsel %vm399, %v396, %v398
        %v401 = vsel %vm399, %v398, %v396
        %s402 = scalar_lea.vmem %s3, 4
        %v403 = vld [vmem:[%s402] sm:$0x3]
        %v405 = vlaneseq
        %v406 = vshrl.u32 %v405, 7
        %v407 = vsub.s32 0, %v406
        %v408 = vrot.slane %v403, %v407
        %v409 = vlaneseq
        %v410 = vshrl.u32 %v409, 7
        %v411 = vsub.s32 1, %v410
        %v412 = vrot.slane %v403, %v411
        %v415 = vmul.f32 %v401, %v408
        %v416 = vmul.f32 %v400, %v412
        %s417 = scalar_lea.vmem %s1, 16
        %v418 = vld [vmem:[%s417] sm:$0xff]
        %v420 = vsel %vm246, %v418, 0
        %422 = vmatprep.subr.mxu0 %v416
        %423 = vmatpush1.msra.mxu0 %v415
        %424 = vmatprep.subr.mxu0 0.0
        %425 = vmatpush1.msra.mxu0 0.0
        %426 = vmatprep.subr.mxu0 0.0
        %427 = vmatpush1.msra.mxu0 0.0
        %428 = vmatprep.subr.mxu0 0.0
        %429 = vmatpush1.msra.mxu0 0.0
        %430 = vmatprep.subr.mxu0 0.0
        %431 = vmatpush1.msra.mxu0 0.0
        %432 = vmatprep.subr.mxu0 0.0
        %433 = vmatpush1.msra.mxu0 0.0
        %434 = vmatprep.subr.mxu0 0.0
        %435 = vmatpush1.msra.mxu0 0.0
        %436 = vmatprep.subr.mxu0 0.0
        %437 = vmatpush1.msra.mxu0 0.0
        %438 = vmatprep.subr.mxu0 0.0
        %439 = vmatpush1.msra.mxu0 0.0
        %440 = vmatprep.subr.mxu0 0.0
        %441 = vmatpush1.msra.mxu0 0.0
        %442 = vmatprep.subr.mxu0 0.0
        %443 = vmatpush1.msra.mxu0 0.0
        %444 = vmatprep.subr.mxu0 0.0
        %445 = vmatpush1.msra.mxu0 0.0
        %446 = vmatprep.subr.mxu0 0.0
        %447 = vmatpush1.msra.mxu0 0.0
        %448 = vmatprep.subr.mxu0 0.0
        %449 = vmatpush1.msra.mxu0 0.0
        %450 = vmatprep.subr.mxu0 0.0
        %451 = vmatpush1.msra.mxu0 0.0
        %452 = vmatprep.subr.mxu0 0.0
        %453 = vmatpush1.msra.mxu0 0.0
        %454 = vmatprep.subr.mxu0 0.0
        %455 = vmatpush1.msra.mxu0 0.0
        %456 = vmatprep.subr.mxu0 0.0
        %457 = vmatpush1.msra.mxu0 0.0
        %458 = vmatprep.subr.mxu0 0.0
        %459 = vmatpush1.msra.mxu0 0.0
        %460 = vmatprep.subr.mxu0 0.0
        %461 = vmatpush1.msra.mxu0 0.0
        %462 = vmatprep.subr.mxu0 0.0
        %463 = vmatpush1.msra.mxu0 0.0
        %464 = vmatprep.subr.mxu0 0.0
        %465 = vmatpush1.msra.mxu0 0.0
        %466 = vmatprep.subr.mxu0 0.0
        %467 = vmatpush1.msra.mxu0 0.0
        %468 = vmatprep.subr.mxu0 0.0
        %469 = vmatpush1.msra.mxu0 0.0
        %470 = vmatprep.subr.mxu0 0.0
        %471 = vmatpush1.msra.mxu0 0.0
        %472 = vmatprep.subr.mxu0 0.0
        %473 = vmatpush1.msra.mxu0 0.0
        %474 = vmatprep.subr.mxu0 0.0
        %475 = vmatpush1.msra.mxu0 0.0
        %476 = vmatprep.subr.mxu0 0.0
        %477 = vmatpush1.msra.mxu0 0.0
        %478 = vmatprep.subr.mxu0 0.0
        %479 = vmatpush1.msra.mxu0 0.0
        %480 = vmatprep.subr.mxu0 0.0
        %481 = vmatpush1.msra.mxu0 0.0
        %482 = vmatprep.subr.mxu0 0.0
        %483 = vmatpush1.msra.mxu0 0.0
        %484 = vmatprep.subr.mxu0 0.0
        %485 = vmatpush1.msra.mxu0 0.0
        %486 = vmatprep.mubr.f32.mxu0 0.0
        %487 = vmatmul.mubr.f32.gmra.mrb[0].mxu0 %v420
        %v488 = vpop.f32.mrb[0].mxu0
        %v489 = vadd.f32 0.0, %v488
        %v490 = vpop.f32.mrb[0].mxu0
        %v491 = vadd.f32 0.0, %v490
        %492 = vdwg.mxu0
        %v493 = vadd.f32 %v391, %v489
        %v494 = vadd.f32 %v393, %v491
        %495 = vrot.lane.b32.xlu0 %v196, 1
        %v496 = vpop.permute.xlu0 %495
        %497 = vrot.lane.b32.xlu0 %v197, 1
        %v498 = vpop.permute.xlu0 %497
        %vm499 = vcmp.lt.s32.totalorder %v203, 1
        %v500 = vsel %vm499, %v496, %v498
        %v501 = vsel %vm499, %v498, %v496
        %s502 = scalar_lea.vmem %s3, 6
        %v503 = vld [vmem:[%s502] sm:$0x3]
        %v505 = vlaneseq
        %v506 = vshrl.u32 %v505, 7
        %v507 = vsub.s32 0, %v506
        %v508 = vrot.slane %v503, %v507
        %v509 = vlaneseq
        %v510 = vshrl.u32 %v509, 7
        %v511 = vsub.s32 1, %v510
        %v512 = vrot.slane %v503, %v511
        %v515 = vmul.f32 %v501, %v508
        %v516 = vmul.f32 %v500, %v512
        %s517 = scalar_lea.vmem %s1, 24
        %v518 = vld [vmem:[%s517] sm:$0xff]
        %v520 = vsel %vm246, %v518, 0
        %522 = vmatprep.subr.mxu0 %v516
        %523 = vmatpush1.msra.mxu0 %v515
        %524 = vmatprep.subr.mxu0 0.0
        %525 = vmatpush1.msra.mxu0 0.0
        %526 = vmatprep.subr.mxu0 0.0
        %527 = vmatpush1.msra.mxu0 0.0
        %528 = vmatprep.subr.mxu0 0.0
        %529 = vmatpush1.msra.mxu0 0.0
        %530 = vmatprep.subr.mxu0 0.0
        %531 = vmatpush1.msra.mxu0 0.0
        %532 = vmatprep.subr.mxu0 0.0
        %533 = vmatpush1.msra.mxu0 0.0
        %534 = vmatprep.subr.mxu0 0.0
        %535 = vmatpush1.msra.mxu0 0.0
        %536 = vmatprep.subr.mxu0 0.0
        %537 = vmatpush1.msra.mxu0 0.0
        %538 = vmatprep.subr.mxu0 0.0
        %539 = vmatpush1.msra.mxu0 0.0
        %540 = vmatprep.subr.mxu0 0.0
        %541 = vmatpush1.msra.mxu0 0.0
        %542 = vmatprep.subr.mxu0 0.0
        %543 = vmatpush1.msra.mxu0 0.0
        %544 = vmatprep.subr.mxu0 0.0
        %545 = vmatpush1.msra.mxu0 0.0
        %546 = vmatprep.subr.mxu0 0.0
        %547 = vmatpush1.msra.mxu0 0.0
        %548 = vmatprep.subr.mxu0 0.0
        %549 = vmatpush1.msra.mxu0 0.0
        %550 = vmatprep.subr.mxu0 0.0
        %551 = vmatpush1.msra.mxu0 0.0
        %552 = vmatprep.subr.mxu0 0.0
        %553 = vmatpush1.msra.mxu0 0.0
        %554 = vmatprep.subr.mxu0 0.0
        %555 = vmatpush1.msra.mxu0 0.0
        %556 = vmatprep.subr.mxu0 0.0
        %557 = vmatpush1.msra.mxu0 0.0
        %558 = vmatprep.subr.mxu0 0.0
        %559 = vmatpush1.msra.mxu0 0.0
        %560 = vmatprep.subr.mxu0 0.0
        %561 = vmatpush1.msra.mxu0 0.0
        %562 = vmatprep.subr.mxu0 0.0
        %563 = vmatpush1.msra.mxu0 0.0
        %564 = vmatprep.subr.mxu0 0.0
        %565 = vmatpush1.msra.mxu0 0.0
        %566 = vmatprep.subr.mxu0 0.0
        %567 = vmatpush1.msra.mxu0 0.0
        %568 = vmatprep.subr.mxu0 0.0
        %569 = vmatpush1.msra.mxu0 0.0
        %570 = vmatprep.subr.mxu0 0.0
        %571 = vmatpush1.msra.mxu0 0.0
        %572 = vmatprep.subr.mxu0 0.0
        %573 = vmatpush1.msra.mxu0 0.0
        %574 = vmatprep.subr.mxu0 0.0
        %575 = vmatpush1.msra.mxu0 0.0
        %576 = vmatprep.subr.mxu0 0.0
        %577 = vmatpush1.msra.mxu0 0.0
        %578 = vmatprep.subr.mxu0 0.0
        %579 = vmatpush1.msra.mxu0 0.0
        %580 = vmatprep.subr.mxu0 0.0
        %581 = vmatpush1.msra.mxu0 0.0
        %582 = vmatprep.subr.mxu0 0.0
        %583 = vmatpush1.msra.mxu0 0.0
        %584 = vmatprep.subr.mxu0 0.0
        %585 = vmatpush1.msra.mxu0 0.0
        %586 = vmatprep.mubr.f32.mxu0 0.0
        %587 = vmatmul.mubr.f32.gmra.mrb[0].mxu0 %v520
        %v588 = vpop.f32.mrb[0].mxu0
        %v589 = vadd.f32 0.0, %v588
        %v590 = vpop.f32.mrb[0].mxu0
        %v591 = vadd.f32 0.0, %v590
        %592 = vdwg.mxu0
        %v593 = vadd.f32 %v493, %v589
        %v594 = vadd.f32 %v494, %v591
        %s595 = scalar_lea.vmem %s1, 32
        %v596 = vld [vmem:[%s595] sm:$0xff]
        %v598 = vsel %vm246, %v596, 0
        %600 = vmatprep.subr.mxu0 %v197
        %601 = vmatpush1.msra.mxu0 %v196
        %602 = vmatprep.subr.mxu0 0.0
        %603 = vmatpush1.msra.mxu0 0.0
        %604 = vmatprep.subr.mxu0 0.0
        %605 = vmatpush1.msra.mxu0 0.0
        %606 = vmatprep.subr.mxu0 0.0
        %607 = vmatpush1.msra.mxu0 0.0
        %608 = vmatprep.subr.mxu0 0.0
        %609 = vmatpush1.msra.mxu0 0.0
        %610 = vmatprep.subr.mxu0 0.0
        %611 = vmatpush1.msra.mxu0 0.0
        %612 = vmatprep.subr.mxu0 0.0
        %613 = vmatpush1.msra.mxu0 0.0
        %614 = vmatprep.subr.mxu0 0.0
        %615 = vmatpush1.msra.mxu0 0.0
        %616 = vmatprep.subr.mxu0 0.0
        %617 = vmatpush1.msra.mxu0 0.0
        %618 = vmatprep.subr.mxu0 0.0
        %619 = vmatpush1.msra.mxu0 0.0
        %620 = vmatprep.subr.mxu0 0.0
        %621 = vmatpush1.msra.mxu0 0.0
        %622 = vmatprep.subr.mxu0 0.0
        %623 = vmatpush1.msra.mxu0 0.0
        %624 = vmatprep.subr.mxu0 0.0
        %625 = vmatpush1.msra.mxu0 0.0
        %626 = vmatprep.subr.mxu0 0.0
        %627 = vmatpush1.msra.mxu0 0.0
        %628 = vmatprep.subr.mxu0 0.0
        %629 = vmatpush1.msra.mxu0 0.0
        %630 = vmatprep.subr.mxu0 0.0
        %631 = vmatpush1.msra.mxu0 0.0
        %632 = vmatprep.subr.mxu0 0.0
        %633 = vmatpush1.msra.mxu0 0.0
        %634 = vmatprep.subr.mxu0 0.0
        %635 = vmatpush1.msra.mxu0 0.0
        %636 = vmatprep.subr.mxu0 0.0
        %637 = vmatpush1.msra.mxu0 0.0
        %638 = vmatprep.subr.mxu0 0.0
        %639 = vmatpush1.msra.mxu0 0.0
        %640 = vmatprep.subr.mxu0 0.0
        %641 = vmatpush1.msra.mxu0 0.0
        %642 = vmatprep.subr.mxu0 0.0
        %643 = vmatpush1.msra.mxu0 0.0
        %644 = vmatprep.subr.mxu0 0.0
        %645 = vmatpush1.msra.mxu0 0.0
        %646 = vmatprep.subr.mxu0 0.0
        %647 = vmatpush1.msra.mxu0 0.0
        %648 = vmatprep.subr.mxu0 0.0
        %649 = vmatpush1.msra.mxu0 0.0
        %650 = vmatprep.subr.mxu0 0.0
        %651 = vmatpush1.msra.mxu0 0.0
        %652 = vmatprep.subr.mxu0 0.0
        %653 = vmatpush1.msra.mxu0 0.0
        %654 = vmatprep.subr.mxu0 0.0
        %655 = vmatpush1.msra.mxu0 0.0
        %656 = vmatprep.subr.mxu0 0.0
        %657 = vmatpush1.msra.mxu0 0.0
        %658 = vmatprep.subr.mxu0 0.0
        %659 = vmatpush1.msra.mxu0 0.0
        %660 = vmatprep.subr.mxu0 0.0
        %661 = vmatpush1.msra.mxu0 0.0
        %662 = vmatprep.subr.mxu0 0.0
        %663 = vmatpush1.msra.mxu0 0.0
        %664 = vmatprep.mubr.f32.mxu0 0.0
        %665 = vmatmul.mubr.f32.gmra.mrb[0].mxu0 %v598
        %v666 = vpop.f32.mrb[0].mxu0
        %v667 = vadd.f32 0.0, %v666
        %v668 = vpop.f32.mrb[0].mxu0
        %v669 = vadd.f32 0.0, %v668
        %670 = vdwg.mxu0
        %v671 = vadd.f32 %v593, %v667
        %v672 = vadd.f32 %v594, %v669
        %673 = vrot.lane.b32.xlu0 %v196, 127
        %v674 = vpop.permute.xlu0 %673
        %675 = vrot.lane.b32.xlu0 %v197, 127
        %v676 = vpop.permute.xlu0 %675
        %vm677 = vcmp.lt.s32.totalorder %v203, 127
        %v678 = vsel %vm677, %v674, %v676
        %v679 = vsel %vm677, %v676, %v674
        %s680 = scalar_lea.vmem %s3, 10
        %v681 = vld [vmem:[%s680] sm:$0x3]
        %v683 = vlaneseq
        %v684 = vshrl.u32 %v683, 7
        %v685 = vsub.s32 0, %v684
        %v686 = vrot.slane %v681, %v685
        %v687 = vlaneseq
        %v688 = vshrl.u32 %v687, 7
        %v689 = vsub.s32 1, %v688
        %v690 = vrot.slane %v681, %v689
        %v693 = vmul.f32 %v678, %v686
        %v694 = vmul.f32 %v679, %v690
        %s695 = scalar_lea.vmem %s1, 40
        %v696 = vld [vmem:[%s695] sm:$0xff]
        %v698 = vsel %vm246, %v696, 0
        %700 = vmatprep.subr.mxu0 %v694
        %701 = vmatpush1.msra.mxu0 %v693
        %702 = vmatprep.subr.mxu0 0.0
        %703 = vmatpush1.msra.mxu0 0.0
        %704 = vmatprep.subr.mxu0 0.0
        %705 = vmatpush1.msra.mxu0 0.0
        %706 = vmatprep.subr.mxu0 0.0
        %707 = vmatpush1.msra.mxu0 0.0
        %708 = vmatprep.subr.mxu0 0.0
        %709 = vmatpush1.msra.mxu0 0.0
        %710 = vmatprep.subr.mxu0 0.0
        %711 = vmatpush1.msra.mxu0 0.0
        %712 = vmatprep.subr.mxu0 0.0
        %713 = vmatpush1.msra.mxu0 0.0
        %714 = vmatprep.subr.mxu0 0.0
        %715 = vmatpush1.msra.mxu0 0.0
        %716 = vmatprep.subr.mxu0 0.0
        %717 = vmatpush1.msra.mxu0 0.0
        %718 = vmatprep.subr.mxu0 0.0
        %719 = vmatpush1.msra.mxu0 0.0
        %720 = vmatprep.subr.mxu0 0.0
        %721 = vmatpush1.msra.mxu0 0.0
        %722 = vmatprep.subr.mxu0 0.0
        %723 = vmatpush1.msra.mxu0 0.0
        %724 = vmatprep.subr.mxu0 0.0
        %725 = vmatpush1.msra.mxu0 0.0
        %726 = vmatprep.subr.mxu0 0.0
        %727 = vmatpush1.msra.mxu0 0.0
        %728 = vmatprep.subr.mxu0 0.0
        %729 = vmatpush1.msra.mxu0 0.0
        %730 = vmatprep.subr.mxu0 0.0
        %731 = vmatpush1.msra.mxu0 0.0
        %732 = vmatprep.subr.mxu0 0.0
        %733 = vmatpush1.msra.mxu0 0.0
        %734 = vmatprep.subr.mxu0 0.0
        %735 = vmatpush1.msra.mxu0 0.0
        %736 = vmatprep.subr.mxu0 0.0
        %737 = vmatpush1.msra.mxu0 0.0
        %738 = vmatprep.subr.mxu0 0.0
        %739 = vmatpush1.msra.mxu0 0.0
        %740 = vmatprep.subr.mxu0 0.0
        %741 = vmatpush1.msra.mxu0 0.0
        %742 = vmatprep.subr.mxu0 0.0
        %743 = vmatpush1.msra.mxu0 0.0
        %744 = vmatprep.subr.mxu0 0.0
        %745 = vmatpush1.msra.mxu0 0.0
        %746 = vmatprep.subr.mxu0 0.0
        %747 = vmatpush1.msra.mxu0 0.0
        %748 = vmatprep.subr.mxu0 0.0
        %749 = vmatpush1.msra.mxu0 0.0
        %750 = vmatprep.subr.mxu0 0.0
        %751 = vmatpush1.msra.mxu0 0.0
        %752 = vmatprep.subr.mxu0 0.0
        %753 = vmatpush1.msra.mxu0 0.0
        %754 = vmatprep.subr.mxu0 0.0
        %755 = vmatpush1.msra.mxu0 0.0
        %756 = vmatprep.subr.mxu0 0.0
        %757 = vmatpush1.msra.mxu0 0.0
        %758 = vmatprep.subr.mxu0 0.0
        %759 = vmatpush1.msra.mxu0 0.0
        %760 = vmatprep.subr.mxu0 0.0
        %761 = vmatpush1.msra.mxu0 0.0
        %762 = vmatprep.subr.mxu0 0.0
        %763 = vmatpush1.msra.mxu0 0.0
        %764 = vmatprep.mubr.f32.mxu0 0.0
        %765 = vmatmul.mubr.f32.gmra.mrb[0].mxu0 %v698
        %v766 = vpop.f32.mrb[0].mxu0
        %v767 = vadd.f32 0.0, %v766
        %v768 = vpop.f32.mrb[0].mxu0
        %v769 = vadd.f32 0.0, %v768
        %770 = vdwg.mxu0
        %v771 = vadd.f32 %v671, %v767
        %v772 = vadd.f32 %v672, %v769
        %773 = vrot.lane.b32.xlu0 %v196, 113
        %v774 = vpop.permute.xlu0 %773
        %775 = vrot.lane.b32.xlu0 %v197, 113
        %v776 = vpop.permute.xlu0 %775
        %vm777 = vcmp.lt.s32.totalorder %v203, 113
        %v778 = vsel %vm777, %v774, %v776
        %v779 = vsel %vm777, %v776, %v774
        %s780 = scalar_lea.vmem %s3, 12
        %v781 = vld [vmem:[%s780] sm:$0x3]
        %v783 = vlaneseq
        %v784 = vshrl.u32 %v783, 7
        %v785 = vsub.s32 0, %v784
        %v786 = vrot.slane %v781, %v785
        %v787 = vlaneseq
        %v788 = vshrl.u32 %v787, 7
        %v789 = vsub.s32 1, %v788
        %v790 = vrot.slane %v781, %v789
        %v793 = vmul.f32 %v778, %v786
        %v794 = vmul.f32 %v779, %v790
        %s795 = scalar_lea.vmem %s1, 48
        %v796 = vld [vmem:[%s795] sm:$0xff]
        %v798 = vsel %vm246, %v796, 0
        %800 = vmatprep.subr.mxu0 %v794
        %801 = vmatpush1.msra.mxu0 %v793
        %802 = vmatprep.subr.mxu0 0.0
        %803 = vmatpush1.msra.mxu0 0.0
        %804 = vmatprep.subr.mxu0 0.0
        %805 = vmatpush1.msra.mxu0 0.0
        %806 = vmatprep.subr.mxu0 0.0
        %807 = vmatpush1.msra.mxu0 0.0
        %808 = vmatprep.subr.mxu0 0.0
        %809 = vmatpush1.msra.mxu0 0.0
        %810 = vmatprep.subr.mxu0 0.0
        %811 = vmatpush1.msra.mxu0 0.0
        %812 = vmatprep.subr.mxu0 0.0
        %813 = vmatpush1.msra.mxu0 0.0
        %814 = vmatprep.subr.mxu0 0.0
        %815 = vmatpush1.msra.mxu0 0.0
        %816 = vmatprep.subr.mxu0 0.0
        %817 = vmatpush1.msra.mxu0 0.0
        %818 = vmatprep.subr.mxu0 0.0
        %819 = vmatpush1.msra.mxu0 0.0
        %820 = vmatprep.subr.mxu0 0.0
        %821 = vmatpush1.msra.mxu0 0.0
        %822 = vmatprep.subr.mxu0 0.0
        %823 = vmatpush1.msra.mxu0 0.0
        %824 = vmatprep.subr.mxu0 0.0
        %825 = vmatpush1.msra.mxu0 0.0
        %826 = vmatprep.subr.mxu0 0.0
        %827 = vmatpush1.msra.mxu0 0.0
        %828 = vmatprep.subr.mxu0 0.0
        %829 = vmatpush1.msra.mxu0 0.0
        %830 = vmatprep.subr.mxu0 0.0
        %831 = vmatpush1.msra.mxu0 0.0
        %832 = vmatprep.subr.mxu0 0.0
        %833 = vmatpush1.msra.mxu0 0.0
        %834 = vmatprep.subr.mxu0 0.0
        %835 = vmatpush1.msra.mxu0 0.0
        %836 = vmatprep.subr.mxu0 0.0
        %837 = vmatpush1.msra.mxu0 0.0
        %838 = vmatprep.subr.mxu0 0.0
        %839 = vmatpush1.msra.mxu0 0.0
        %840 = vmatprep.subr.mxu0 0.0
        %841 = vmatpush1.msra.mxu0 0.0
        %842 = vmatprep.subr.mxu0 0.0
        %843 = vmatpush1.msra.mxu0 0.0
        %844 = vmatprep.subr.mxu0 0.0
        %845 = vmatpush1.msra.mxu0 0.0
        %846 = vmatprep.subr.mxu0 0.0
        %847 = vmatpush1.msra.mxu0 0.0
        %848 = vmatprep.subr.mxu0 0.0
        %849 = vmatpush1.msra.mxu0 0.0
        %850 = vmatprep.subr.mxu0 0.0
        %851 = vmatpush1.msra.mxu0 0.0
        %852 = vmatprep.subr.mxu0 0.0
        %853 = vmatpush1.msra.mxu0 0.0
        %854 = vmatprep.subr.mxu0 0.0
        %855 = vmatpush1.msra.mxu0 0.0
        %856 = vmatprep.subr.mxu0 0.0
        %857 = vmatpush1.msra.mxu0 0.0
        %858 = vmatprep.subr.mxu0 0.0
        %859 = vmatpush1.msra.mxu0 0.0
        %860 = vmatprep.subr.mxu0 0.0
        %861 = vmatpush1.msra.mxu0 0.0
        %862 = vmatprep.subr.mxu0 0.0
        %863 = vmatpush1.msra.mxu0 0.0
        %864 = vmatprep.mubr.f32.mxu0 0.0
        %865 = vmatmul.mubr.f32.gmra.mrb[0].mxu0 %v798
        %v866 = vpop.f32.mrb[0].mxu0
        %v867 = vadd.f32 0.0, %v866
        %v868 = vpop.f32.mrb[0].mxu0
        %v869 = vadd.f32 0.0, %v868
        %870 = vdwg.mxu0
        %v871 = vadd.f32 %v771, %v867
        %v872 = vadd.f32 %v772, %v869
        %873 = vrot.lane.b32.xlu0 %v196, 112
        %v874 = vpop.permute.xlu0 %873
        %875 = vrot.lane.b32.xlu0 %v197, 112
        %v876 = vpop.permute.xlu0 %875
        %vm877 = vcmp.lt.s32.totalorder %v203, 112
        %v878 = vsel %vm877, %v874, %v876
        %v879 = vsel %vm877, %v876, %v874
        %s880 = scalar_lea.vmem %s3, 14
        %v881 = vld [vmem:[%s880] sm:$0x3]
        %v883 = vlaneseq
        %v884 = vshrl.u32 %v883, 7
        %v885 = vsub.s32 0, %v884
        %v886 = vrot.slane %v881, %v885
        %v887 = vlaneseq
        %v888 = vshrl.u32 %v887, 7
        %v889 = vsub.s32 1, %v888
        %v890 = vrot.slane %v881, %v889
        %v893 = vmul.f32 %v878, %v886
        %v894 = vmul.f32 %v879, %v890
        %s895 = scalar_lea.vmem %s1, 56
        %v896 = vld [vmem:[%s895] sm:$0xff]
        %v898 = vsel %vm246, %v896, 0
        %900 = vmatprep.subr.mxu0 %v894
        %901 = vmatpush1.msra.mxu0 %v893
        %902 = vmatprep.subr.mxu0 0.0
        %903 = vmatpush1.msra.mxu0 0.0
        %904 = vmatprep.subr.mxu0 0.0
        %905 = vmatpush1.msra.mxu0 0.0
        %906 = vmatprep.subr.mxu0 0.0
        %907 = vmatpush1.msra.mxu0 0.0
        %908 = vmatprep.subr.mxu0 0.0
        %909 = vmatpush1.msra.mxu0 0.0
        %910 = vmatprep.subr.mxu0 0.0
        %911 = vmatpush1.msra.mxu0 0.0
        %912 = vmatprep.subr.mxu0 0.0
        %913 = vmatpush1.msra.mxu0 0.0
        %914 = vmatprep.subr.mxu0 0.0
        %915 = vmatpush1.msra.mxu0 0.0
        %916 = vmatprep.subr.mxu0 0.0
        %917 = vmatpush1.msra.mxu0 0.0
        %918 = vmatprep.subr.mxu0 0.0
        %919 = vmatpush1.msra.mxu0 0.0
        %920 = vmatprep.subr.mxu0 0.0
        %921 = vmatpush1.msra.mxu0 0.0
        %922 = vmatprep.subr.mxu0 0.0
        %923 = vmatpush1.msra.mxu0 0.0
        %924 = vmatprep.subr.mxu0 0.0
        %925 = vmatpush1.msra.mxu0 0.0
        %926 = vmatprep.subr.mxu0 0.0
        %927 = vmatpush1.msra.mxu0 0.0
        %928 = vmatprep.subr.mxu0 0.0
        %929 = vmatpush1.msra.mxu0 0.0
        %930 = vmatprep.subr.mxu0 0.0
        %931 = vmatpush1.msra.mxu0 0.0
        %932 = vmatprep.subr.mxu0 0.0
        %933 = vmatpush1.msra.mxu0 0.0
        %934 = vmatprep.subr.mxu0 0.0
        %935 = vmatpush1.msra.mxu0 0.0
        %936 = vmatprep.subr.mxu0 0.0
        %937 = vmatpush1.msra.mxu0 0.0
        %938 = vmatprep.subr.mxu0 0.0
        %939 = vmatpush1.msra.mxu0 0.0
        %940 = vmatprep.subr.mxu0 0.0
        %941 = vmatpush1.msra.mxu0 0.0
        %942 = vmatprep.subr.mxu0 0.0
        %943 = vmatpush1.msra.mxu0 0.0
        %944 = vmatprep.subr.mxu0 0.0
        %945 = vmatpush1.msra.mxu0 0.0
        %946 = vmatprep.subr.mxu0 0.0
        %947 = vmatpush1.msra.mxu0 0.0
        %948 = vmatprep.subr.mxu0 0.0
        %949 = vmatpush1.msra.mxu0 0.0
        %950 = vmatprep.subr.mxu0 0.0
        %951 = vmatpush1.msra.mxu0 0.0
        %952 = vmatprep.subr.mxu0 0.0
        %953 = vmatpush1.msra.mxu0 0.0
        %954 = vmatprep.subr.mxu0 0.0
        %955 = vmatpush1.msra.mxu0 0.0
        %956 = vmatprep.subr.mxu0 0.0
        %957 = vmatpush1.msra.mxu0 0.0
        %958 = vmatprep.subr.mxu0 0.0
        %959 = vmatpush1.msra.mxu0 0.0
        %960 = vmatprep.subr.mxu0 0.0
        %961 = vmatpush1.msra.mxu0 0.0
        %962 = vmatprep.subr.mxu0 0.0
        %963 = vmatpush1.msra.mxu0 0.0
        %964 = vmatprep.mubr.f32.mxu0 0.0
        %965 = vmatmul.mubr.f32.gmra.mrb[0].mxu0 %v898
        %v966 = vpop.f32.mrb[0].mxu0
        %v967 = vadd.f32 0.0, %v966
        %v968 = vpop.f32.mrb[0].mxu0
        %v969 = vadd.f32 0.0, %v968
        %970 = vdwg.mxu0
        %v971 = vadd.f32 %v871, %v967
        %v972 = vadd.f32 %v872, %v969
        %973 = vrot.lane.b32.xlu0 %v196, 111
        %v974 = vpop.permute.xlu0 %973
        %975 = vrot.lane.b32.xlu0 %v197, 111
        %v976 = vpop.permute.xlu0 %975
        %vm977 = vcmp.lt.s32.totalorder %v203, 111
        %v978 = vsel %vm977, %v974, %v976
        %v979 = vsel %vm977, %v976, %v974
        %s980 = scalar_lea.vmem %s3, 16
        %v981 = vld [vmem:[%s980] sm:$0x3]
        %v983 = vlaneseq
        %v984 = vshrl.u32 %v983, 7
        %v985 = vsub.s32 0, %v984
        %v986 = vrot.slane %v981, %v985
        %v987 = vlaneseq
        %v988 = vshrl.u32 %v987, 7
        %v989 = vsub.s32 1, %v988
        %v990 = vrot.slane %v981, %v989
        %v993 = vmul.f32 %v978, %v986
        %v994 = vmul.f32 %v979, %v990
        %s995 = scalar_lea.vmem %s1, 64
        %v996 = vld [vmem:[%s995] sm:$0xff]
        %v998 = vsel %vm246, %v996, 0
        %1000 = vmatprep.subr.mxu0 %v994
        %1001 = vmatpush1.msra.mxu0 %v993
        %1002 = vmatprep.subr.mxu0 0.0
        %1003 = vmatpush1.msra.mxu0 0.0
        %1004 = vmatprep.subr.mxu0 0.0
        %1005 = vmatpush1.msra.mxu0 0.0
        %1006 = vmatprep.subr.mxu0 0.0
        %1007 = vmatpush1.msra.mxu0 0.0
        %1008 = vmatprep.subr.mxu0 0.0
        %1009 = vmatpush1.msra.mxu0 0.0
        %1010 = vmatprep.subr.mxu0 0.0
        %1011 = vmatpush1.msra.mxu0 0.0
        %1012 = vmatprep.subr.mxu0 0.0
        %1013 = vmatpush1.msra.mxu0 0.0
        %1014 = vmatprep.subr.mxu0 0.0
        %1015 = vmatpush1.msra.mxu0 0.0
        %1016 = vmatprep.subr.mxu0 0.0
        %1017 = vmatpush1.msra.mxu0 0.0
        %1018 = vmatprep.subr.mxu0 0.0
        %1019 = vmatpush1.msra.mxu0 0.0
        %1020 = vmatprep.subr.mxu0 0.0
        %1021 = vmatpush1.msra.mxu0 0.0
        %1022 = vmatprep.subr.mxu0 0.0
        %1023 = vmatpush1.msra.mxu0 0.0
        %1024 = vmatprep.subr.mxu0 0.0
        %1025 = vmatpush1.msra.mxu0 0.0
        %1026 = vmatprep.subr.mxu0 0.0
        %1027 = vmatpush1.msra.mxu0 0.0
        %1028 = vmatprep.subr.mxu0 0.0
        %1029 = vmatpush1.msra.mxu0 0.0
        %1030 = vmatprep.subr.mxu0 0.0
        %1031 = vmatpush1.msra.mxu0 0.0
        %1032 = vmatprep.subr.mxu0 0.0
        %1033 = vmatpush1.msra.mxu0 0.0
        %1034 = vmatprep.subr.mxu0 0.0
        %1035 = vmatpush1.msra.mxu0 0.0
        %1036 = vmatprep.subr.mxu0 0.0
        %1037 = vmatpush1.msra.mxu0 0.0
        %1038 = vmatprep.subr.mxu0 0.0
        %1039 = vmatpush1.msra.mxu0 0.0
        %1040 = vmatprep.subr.mxu0 0.0
        %1041 = vmatpush1.msra.mxu0 0.0
        %1042 = vmatprep.subr.mxu0 0.0
        %1043 = vmatpush1.msra.mxu0 0.0
        %1044 = vmatprep.subr.mxu0 0.0
        %1045 = vmatpush1.msra.mxu0 0.0
        %1046 = vmatprep.subr.mxu0 0.0
        %1047 = vmatpush1.msra.mxu0 0.0
        %1048 = vmatprep.subr.mxu0 0.0
        %1049 = vmatpush1.msra.mxu0 0.0
        %1050 = vmatprep.subr.mxu0 0.0
        %1051 = vmatpush1.msra.mxu0 0.0
        %1052 = vmatprep.subr.mxu0 0.0
        %1053 = vmatpush1.msra.mxu0 0.0
        %1054 = vmatprep.subr.mxu0 0.0
        %1055 = vmatpush1.msra.mxu0 0.0
        %1056 = vmatprep.subr.mxu0 0.0
        %1057 = vmatpush1.msra.mxu0 0.0
        %1058 = vmatprep.subr.mxu0 0.0
        %1059 = vmatpush1.msra.mxu0 0.0
        %1060 = vmatprep.subr.mxu0 0.0
        %1061 = vmatpush1.msra.mxu0 0.0
        %1062 = vmatprep.subr.mxu0 0.0
        %1063 = vmatpush1.msra.mxu0 0.0
        %1064 = vmatprep.mubr.f32.mxu0 0.0
        %1065 = vmatmul.mubr.f32.gmra.mrb[0].mxu0 %v998
        %v1066 = vpop.f32.mrb[0].mxu0
        %v1067 = vadd.f32 0.0, %v1066
        %v1068 = vpop.f32.mrb[0].mxu0
        %v1069 = vadd.f32 0.0, %v1068
        %1070 = vdwg.mxu0
        %v1071 = vadd.f32 %v971, %v1067
        %v1072 = vadd.f32 %v972, %v1069
        %v1073 = vadd.f32 %v1071, %v1072
        %1074 = vadd.xlane.f32.xlu0 %v1073
        %v1075 = vpop.xlane.xlu0 %1074
        %v1076 = vmul.f32 %v1075, 0.00390625
        %v1077 = vsub.f32 %v1071, %v1076
        %v1078 = vsub.f32 %v1072, %v1076
        %v1079 = vmul.f32 %v1077, %v1077
        %v1080 = vmul.f32 %v1078, %v1078
        %v1081 = vadd.f32 %v1079, %v1080
        %1082 = vadd.xlane.f32.xlu0 %v1081
        %v1083 = vpop.xlane.xlu0 %1082
        %v1084 = vmul.f32 %v1083, 0.00390625
        %v1085 = vadd.f32 %v1084, 1e-05
        %v1086 = vrsqrt.pop %v1085
        %v1087 = vmul.f32 %v1077, %v1086
        %v1088 = vmul.f32 %v1078, %v1086
        %v1089 = vmax.f32 %v1087, 0.0
        %v1090 = vmax.f32 %v1088, 0.0
        %1091 = vrot.lane.b32.xlu0 %v1089, 17
        %v1092 = vpop.permute.xlu0 %1091
        %1093 = vrot.lane.b32.xlu0 %v1090, 17
        %v1094 = vpop.permute.xlu0 %1093
        %v1095 = vsel %vm204, %v1092, %v1094
        %v1096 = vsel %vm204, %v1094, %v1092
        %v1097 = vmul.f32 %v1096, %v212
        %v1098 = vmul.f32 %v1095, %v216
        %v1099 = vld [vmem:[%s2] sm:$0xff]
        %1100 = vrot.lane.b32.xlu0 %v1089, 16
        %v1101 = vpop.permute.xlu0 %1100
        %1102 = vrot.lane.b32.xlu0 %v1090, 16
        %v1103 = vpop.permute.xlu0 %1102
        %v1104 = vsel %vm226, %v1101, %v1103
        %v1105 = vsel %vm226, %v1103, %v1101
        %v1106 = vmul.f32 %v1105, %v235
        %v1107 = vmul.f32 %v1104, %v239
        %s1108 = scalar_lea.vmem %s2, 8
        %v1109 = vld [vmem:[%s1108] sm:$0xff]
        %v1111 = vsel %vm246, %v1109, 0
        %1113 = vmatprep.subr.mxu0 %v1107
        %1114 = vmatpush1.msra.mxu0 %v1106
        %1115 = vmatprep.subr.mxu0 0.0
        %1116 = vmatpush1.msra.mxu0 0.0
        %1117 = vmatprep.subr.mxu0 0.0
        %1118 = vmatpush1.msra.mxu0 0.0
        %1119 = vmatprep.subr.mxu0 0.0
        %1120 = vmatpush1.msra.mxu0 0.0
        %1121 = vmatprep.subr.mxu0 0.0
        %1122 = vmatpush1.msra.mxu0 0.0
        %1123 = vmatprep.subr.mxu0 0.0
        %1124 = vmatpush1.msra.mxu0 0.0
        %1125 = vmatprep.subr.mxu0 0.0
        %1126 = vmatpush1.msra.mxu0 0.0
        %1127 = vmatprep.subr.mxu0 0.0
        %1128 = vmatpush1.msra.mxu0 0.0
        %1129 = vmatprep.subr.mxu0 0.0
        %1130 = vmatpush1.msra.mxu0 0.0
        %1131 = vmatprep.subr.mxu0 0.0
        %1132 = vmatpush1.msra.mxu0 0.0
        %1133 = vmatprep.subr.mxu0 0.0
        %1134 = vmatpush1.msra.mxu0 0.0
        %1135 = vmatprep.subr.mxu0 0.0
        %1136 = vmatpush1.msra.mxu0 0.0
        %1137 = vmatprep.subr.mxu0 0.0
        %1138 = vmatpush1.msra.mxu0 0.0
        %1139 = vmatprep.subr.mxu0 0.0
        %1140 = vmatpush1.msra.mxu0 0.0
        %1141 = vmatprep.subr.mxu0 0.0
        %1142 = vmatpush1.msra.mxu0 0.0
        %1143 = vmatprep.subr.mxu0 0.0
        %1144 = vmatpush1.msra.mxu0 0.0
        %1145 = vmatprep.subr.mxu0 0.0
        %1146 = vmatpush1.msra.mxu0 0.0
        %1147 = vmatprep.subr.mxu0 0.0
        %1148 = vmatpush1.msra.mxu0 0.0
        %1149 = vmatprep.subr.mxu0 0.0
        %1150 = vmatpush1.msra.mxu0 0.0
        %1151 = vmatprep.subr.mxu0 0.0
        %1152 = vmatpush1.msra.mxu0 0.0
        %1153 = vmatprep.subr.mxu0 0.0
        %1154 = vmatpush1.msra.mxu0 0.0
        %1155 = vmatprep.subr.mxu0 0.0
        %1156 = vmatpush1.msra.mxu0 0.0
        %1157 = vmatprep.subr.mxu0 0.0
        %1158 = vmatpush1.msra.mxu0 0.0
        %1159 = vmatprep.subr.mxu0 0.0
        %1160 = vmatpush1.msra.mxu0 0.0
        %1161 = vmatprep.subr.mxu0 0.0
        %1162 = vmatpush1.msra.mxu0 0.0
        %1163 = vmatprep.subr.mxu0 0.0
        %1164 = vmatpush1.msra.mxu0 0.0
        %1165 = vmatprep.subr.mxu0 0.0
        %1166 = vmatpush1.msra.mxu0 0.0
        %1167 = vmatprep.subr.mxu0 0.0
        %1168 = vmatpush1.msra.mxu0 0.0
        %1169 = vmatprep.subr.mxu0 0.0
        %1170 = vmatpush1.msra.mxu0 0.0
        %1171 = vmatprep.subr.mxu0 0.0
        %1172 = vmatpush1.msra.mxu0 0.0
        %1173 = vmatprep.subr.mxu0 0.0
        %1174 = vmatpush1.msra.mxu0 0.0
        %1175 = vmatprep.subr.mxu0 0.0
        %1176 = vmatpush1.msra.mxu0 0.0
        %1177 = vmatprep.mubr.f32.mxu0 0.0
        %1178 = vmatmul.mubr.f32.gmra.mrb[0].mxu0 %v1111
        %v1179 = vpop.f32.mrb[0].mxu0
        %v1180 = vadd.f32 0.0, %v1179
        %v1181 = vpop.f32.mrb[0].mxu0
        %v1182 = vadd.f32 0.0, %v1181
        %1183 = vdwg.mxu0
        %v1185 = vsel %vm246, %v1099, 0
        %1187 = vmatprep.subr.mxu0 %v1098
        %1188 = vmatpush1.msra.mxu0 %v1097
        %1189 = vmatprep.subr.mxu0 0.0
        %1190 = vmatpush1.msra.mxu0 0.0
        %1191 = vmatprep.subr.mxu0 0.0
        %1192 = vmatpush1.msra.mxu0 0.0
        %1193 = vmatprep.subr.mxu0 0.0
        %1194 = vmatpush1.msra.mxu0 0.0
        %1195 = vmatprep.subr.mxu0 0.0
        %1196 = vmatpush1.msra.mxu0 0.0
        %1197 = vmatprep.subr.mxu0 0.0
        %1198 = vmatpush1.msra.mxu0 0.0
        %1199 = vmatprep.subr.mxu0 0.0
        %1200 = vmatpush1.msra.mxu0 0.0
        %1201 = vmatprep.subr.mxu0 0.0
        %1202 = vmatpush1.msra.mxu0 0.0
        %1203 = vmatprep.subr.mxu0 0.0
        %1204 = vmatpush1.msra.mxu0 0.0
        %1205 = vmatprep.subr.mxu0 0.0
        %1206 = vmatpush1.msra.mxu0 0.0
        %1207 = vmatprep.subr.mxu0 0.0
        %1208 = vmatpush1.msra.mxu0 0.0
        %1209 = vmatprep.subr.mxu0 0.0
        %1210 = vmatpush1.msra.mxu0 0.0
        %1211 = vmatprep.subr.mxu0 0.0
        %1212 = vmatpush1.msra.mxu0 0.0
        %1213 = vmatprep.subr.mxu0 0.0
        %1214 = vmatpush1.msra.mxu0 0.0
        %1215 = vmatprep.subr.mxu0 0.0
        %1216 = vmatpush1.msra.mxu0 0.0
        %1217 = vmatprep.subr.mxu0 0.0
        %1218 = vmatpush1.msra.mxu0 0.0
        %1219 = vmatprep.subr.mxu0 0.0
        %1220 = vmatpush1.msra.mxu0 0.0
        %1221 = vmatprep.subr.mxu0 0.0
        %1222 = vmatpush1.msra.mxu0 0.0
        %1223 = vmatprep.subr.mxu0 0.0
        %1224 = vmatpush1.msra.mxu0 0.0
        %1225 = vmatprep.subr.mxu0 0.0
        %1226 = vmatpush1.msra.mxu0 0.0
        %1227 = vmatprep.subr.mxu0 0.0
        %1228 = vmatpush1.msra.mxu0 0.0
        %1229 = vmatprep.subr.mxu0 0.0
        %1230 = vmatpush1.msra.mxu0 0.0
        %1231 = vmatprep.subr.mxu0 0.0
        %1232 = vmatpush1.msra.mxu0 0.0
        %1233 = vmatprep.subr.mxu0 0.0
        %1234 = vmatpush1.msra.mxu0 0.0
        %1235 = vmatprep.subr.mxu0 0.0
        %1236 = vmatpush1.msra.mxu0 0.0
        %1237 = vmatprep.subr.mxu0 0.0
        %1238 = vmatpush1.msra.mxu0 0.0
        %1239 = vmatprep.subr.mxu0 0.0
        %1240 = vmatpush1.msra.mxu0 0.0
        %1241 = vmatprep.subr.mxu0 0.0
        %1242 = vmatpush1.msra.mxu0 0.0
        %1243 = vmatprep.subr.mxu0 0.0
        %1244 = vmatpush1.msra.mxu0 0.0
        %1245 = vmatprep.subr.mxu0 0.0
        %1246 = vmatpush1.msra.mxu0 0.0
        %1247 = vmatprep.subr.mxu0 0.0
        %1248 = vmatpush1.msra.mxu0 0.0
        %1249 = vmatprep.subr.mxu0 0.0
        %1250 = vmatpush1.msra.mxu0 0.0
        %1251 = vmatprep.mubr.f32.mxu0 0.0
        %1252 = vmatmul.mubr.f32.gmra.mrb[0].mxu0 %v1185
        %v1253 = vpop.f32.mrb[0].mxu0
        %v1254 = vadd.f32 %v1180, %v1253
        %v1255 = vpop.f32.mrb[0].mxu0
        %v1256 = vadd.f32 %v1182, %v1255
        %1257 = vdwg.mxu0
        %1258 = vrot.lane.b32.xlu0 %v1089, 15
        %v1259 = vpop.permute.xlu0 %1258
        %1260 = vrot.lane.b32.xlu0 %v1090, 15
        %v1261 = vpop.permute.xlu0 %1260
        %v1262 = vsel %vm399, %v1259, %v1261
        %v1263 = vsel %vm399, %v1261, %v1259
        %v1264 = vmul.f32 %v1263, %v408
        %v1265 = vmul.f32 %v1262, %v412
        %s1266 = scalar_lea.vmem %s2, 16
        %v1267 = vld [vmem:[%s1266] sm:$0xff]
        %v1269 = vsel %vm246, %v1267, 0
        %1271 = vmatprep.subr.mxu0 %v1265
        %1272 = vmatpush1.msra.mxu0 %v1264
        %1273 = vmatprep.subr.mxu0 0.0
        %1274 = vmatpush1.msra.mxu0 0.0
        %1275 = vmatprep.subr.mxu0 0.0
        %1276 = vmatpush1.msra.mxu0 0.0
        %1277 = vmatprep.subr.mxu0 0.0
        %1278 = vmatpush1.msra.mxu0 0.0
        %1279 = vmatprep.subr.mxu0 0.0
        %1280 = vmatpush1.msra.mxu0 0.0
        %1281 = vmatprep.subr.mxu0 0.0
        %1282 = vmatpush1.msra.mxu0 0.0
        %1283 = vmatprep.subr.mxu0 0.0
        %1284 = vmatpush1.msra.mxu0 0.0
        %1285 = vmatprep.subr.mxu0 0.0
        %1286 = vmatpush1.msra.mxu0 0.0
        %1287 = vmatprep.subr.mxu0 0.0
        %1288 = vmatpush1.msra.mxu0 0.0
        %1289 = vmatprep.subr.mxu0 0.0
        %1290 = vmatpush1.msra.mxu0 0.0
        %1291 = vmatprep.subr.mxu0 0.0
        %1292 = vmatpush1.msra.mxu0 0.0
        %1293 = vmatprep.subr.mxu0 0.0
        %1294 = vmatpush1.msra.mxu0 0.0
        %1295 = vmatprep.subr.mxu0 0.0
        %1296 = vmatpush1.msra.mxu0 0.0
        %1297 = vmatprep.subr.mxu0 0.0
        %1298 = vmatpush1.msra.mxu0 0.0
        %1299 = vmatprep.subr.mxu0 0.0
        %1300 = vmatpush1.msra.mxu0 0.0
        %1301 = vmatprep.subr.mxu0 0.0
        %1302 = vmatpush1.msra.mxu0 0.0
        %1303 = vmatprep.subr.mxu0 0.0
        %1304 = vmatpush1.msra.mxu0 0.0
        %1305 = vmatprep.subr.mxu0 0.0
        %1306 = vmatpush1.msra.mxu0 0.0
        %1307 = vmatprep.subr.mxu0 0.0
        %1308 = vmatpush1.msra.mxu0 0.0
        %1309 = vmatprep.subr.mxu0 0.0
        %1310 = vmatpush1.msra.mxu0 0.0
        %1311 = vmatprep.subr.mxu0 0.0
        %1312 = vmatpush1.msra.mxu0 0.0
        %1313 = vmatprep.subr.mxu0 0.0
        %1314 = vmatpush1.msra.mxu0 0.0
        %1315 = vmatprep.subr.mxu0 0.0
        %1316 = vmatpush1.msra.mxu0 0.0
        %1317 = vmatprep.subr.mxu0 0.0
        %1318 = vmatpush1.msra.mxu0 0.0
        %1319 = vmatprep.subr.mxu0 0.0
        %1320 = vmatpush1.msra.mxu0 0.0
        %1321 = vmatprep.subr.mxu0 0.0
        %1322 = vmatpush1.msra.mxu0 0.0
        %1323 = vmatprep.subr.mxu0 0.0
        %1324 = vmatpush1.msra.mxu0 0.0
        %1325 = vmatprep.subr.mxu0 0.0
        %1326 = vmatpush1.msra.mxu0 0.0
        %1327 = vmatprep.subr.mxu0 0.0
        %1328 = vmatpush1.msra.mxu0 0.0
        %1329 = vmatprep.subr.mxu0 0.0
        %1330 = vmatpush1.msra.mxu0 0.0
        %1331 = vmatprep.subr.mxu0 0.0
        %1332 = vmatpush1.msra.mxu0 0.0
        %1333 = vmatprep.subr.mxu0 0.0
        %1334 = vmatpush1.msra.mxu0 0.0
        %1335 = vmatprep.mubr.f32.mxu0 0.0
        %1336 = vmatmul.mubr.f32.gmra.mrb[0].mxu0 %v1269
        %v1337 = vpop.f32.mrb[0].mxu0
        %v1338 = vadd.f32 0.0, %v1337
        %v1339 = vpop.f32.mrb[0].mxu0
        %v1340 = vadd.f32 0.0, %v1339
        %1341 = vdwg.mxu0
        %v1342 = vadd.f32 %v1254, %v1338
        %v1343 = vadd.f32 %v1256, %v1340
        %1344 = vrot.lane.b32.xlu0 %v1089, 1
        %v1345 = vpop.permute.xlu0 %1344
        %1346 = vrot.lane.b32.xlu0 %v1090, 1
        %v1347 = vpop.permute.xlu0 %1346
        %v1348 = vsel %vm499, %v1345, %v1347
        %v1349 = vsel %vm499, %v1347, %v1345
        %v1350 = vmul.f32 %v1349, %v508
        %v1351 = vmul.f32 %v1348, %v512
        %s1352 = scalar_lea.vmem %s2, 24
        %v1353 = vld [vmem:[%s1352] sm:$0xff]
        %v1355 = vsel %vm246, %v1353, 0
        %1357 = vmatprep.subr.mxu0 %v1351
        %1358 = vmatpush1.msra.mxu0 %v1350
        %1359 = vmatprep.subr.mxu0 0.0
        %1360 = vmatpush1.msra.mxu0 0.0
        %1361 = vmatprep.subr.mxu0 0.0
        %1362 = vmatpush1.msra.mxu0 0.0
        %1363 = vmatprep.subr.mxu0 0.0
        %1364 = vmatpush1.msra.mxu0 0.0
        %1365 = vmatprep.subr.mxu0 0.0
        %1366 = vmatpush1.msra.mxu0 0.0
        %1367 = vmatprep.subr.mxu0 0.0
        %1368 = vmatpush1.msra.mxu0 0.0
        %1369 = vmatprep.subr.mxu0 0.0
        %1370 = vmatpush1.msra.mxu0 0.0
        %1371 = vmatprep.subr.mxu0 0.0
        %1372 = vmatpush1.msra.mxu0 0.0
        %1373 = vmatprep.subr.mxu0 0.0
        %1374 = vmatpush1.msra.mxu0 0.0
        %1375 = vmatprep.subr.mxu0 0.0
        %1376 = vmatpush1.msra.mxu0 0.0
        %1377 = vmatprep.subr.mxu0 0.0
        %1378 = vmatpush1.msra.mxu0 0.0
        %1379 = vmatprep.subr.mxu0 0.0
        %1380 = vmatpush1.msra.mxu0 0.0
        %1381 = vmatprep.subr.mxu0 0.0
        %1382 = vmatpush1.msra.mxu0 0.0
        %1383 = vmatprep.subr.mxu0 0.0
        %1384 = vmatpush1.msra.mxu0 0.0
        %1385 = vmatprep.subr.mxu0 0.0
        %1386 = vmatpush1.msra.mxu0 0.0
        %1387 = vmatprep.subr.mxu0 0.0
        %1388 = vmatpush1.msra.mxu0 0.0
        %1389 = vmatprep.subr.mxu0 0.0
        %1390 = vmatpush1.msra.mxu0 0.0
        %1391 = vmatprep.subr.mxu0 0.0
        %1392 = vmatpush1.msra.mxu0 0.0
        %1393 = vmatprep.subr.mxu0 0.0
        %1394 = vmatpush1.msra.mxu0 0.0
        %1395 = vmatprep.subr.mxu0 0.0
        %1396 = vmatpush1.msra.mxu0 0.0
        %1397 = vmatprep.subr.mxu0 0.0
        %1398 = vmatpush1.msra.mxu0 0.0
        %1399 = vmatprep.subr.mxu0 0.0
        %1400 = vmatpush1.msra.mxu0 0.0
        %1401 = vmatprep.subr.mxu0 0.0
        %1402 = vmatpush1.msra.mxu0 0.0
        %1403 = vmatprep.subr.mxu0 0.0
        %1404 = vmatpush1.msra.mxu0 0.0
        %1405 = vmatprep.subr.mxu0 0.0
        %1406 = vmatpush1.msra.mxu0 0.0
        %1407 = vmatprep.subr.mxu0 0.0
        %1408 = vmatpush1.msra.mxu0 0.0
        %1409 = vmatprep.subr.mxu0 0.0
        %1410 = vmatpush1.msra.mxu0 0.0
        %1411 = vmatprep.subr.mxu0 0.0
        %1412 = vmatpush1.msra.mxu0 0.0
        %1413 = vmatprep.subr.mxu0 0.0
        %1414 = vmatpush1.msra.mxu0 0.0
        %1415 = vmatprep.subr.mxu0 0.0
        %1416 = vmatpush1.msra.mxu0 0.0
        %1417 = vmatprep.subr.mxu0 0.0
        %1418 = vmatpush1.msra.mxu0 0.0
        %1419 = vmatprep.subr.mxu0 0.0
        %1420 = vmatpush1.msra.mxu0 0.0
        %1421 = vmatprep.mubr.f32.mxu0 0.0
        %1422 = vmatmul.mubr.f32.gmra.mrb[0].mxu0 %v1355
        %v1423 = vpop.f32.mrb[0].mxu0
        %v1424 = vadd.f32 0.0, %v1423
        %v1425 = vpop.f32.mrb[0].mxu0
        %v1426 = vadd.f32 0.0, %v1425
        %1427 = vdwg.mxu0
        %v1428 = vadd.f32 %v1342, %v1424
        %v1429 = vadd.f32 %v1343, %v1426
        %s1430 = scalar_lea.vmem %s2, 32
        %v1431 = vld [vmem:[%s1430] sm:$0xff]
        %v1433 = vsel %vm246, %v1431, 0
        %1435 = vmatprep.subr.mxu0 %v1090
        %1436 = vmatpush1.msra.mxu0 %v1089
        %1437 = vmatprep.subr.mxu0 0.0
        %1438 = vmatpush1.msra.mxu0 0.0
        %1439 = vmatprep.subr.mxu0 0.0
        %1440 = vmatpush1.msra.mxu0 0.0
        %1441 = vmatprep.subr.mxu0 0.0
        %1442 = vmatpush1.msra.mxu0 0.0
        %1443 = vmatprep.subr.mxu0 0.0
        %1444 = vmatpush1.msra.mxu0 0.0
        %1445 = vmatprep.subr.mxu0 0.0
        %1446 = vmatpush1.msra.mxu0 0.0
        %1447 = vmatprep.subr.mxu0 0.0
        %1448 = vmatpush1.msra.mxu0 0.0
        %1449 = vmatprep.subr.mxu0 0.0
        %1450 = vmatpush1.msra.mxu0 0.0
        %1451 = vmatprep.subr.mxu0 0.0
        %1452 = vmatpush1.msra.mxu0 0.0
        %1453 = vmatprep.subr.mxu0 0.0
        %1454 = vmatpush1.msra.mxu0 0.0
        %1455 = vmatprep.subr.mxu0 0.0
        %1456 = vmatpush1.msra.mxu0 0.0
        %1457 = vmatprep.subr.mxu0 0.0
        %1458 = vmatpush1.msra.mxu0 0.0
        %1459 = vmatprep.subr.mxu0 0.0
        %1460 = vmatpush1.msra.mxu0 0.0
        %1461 = vmatprep.subr.mxu0 0.0
        %1462 = vmatpush1.msra.mxu0 0.0
        %1463 = vmatprep.subr.mxu0 0.0
        %1464 = vmatpush1.msra.mxu0 0.0
        %1465 = vmatprep.subr.mxu0 0.0
        %1466 = vmatpush1.msra.mxu0 0.0
        %1467 = vmatprep.subr.mxu0 0.0
        %1468 = vmatpush1.msra.mxu0 0.0
        %1469 = vmatprep.subr.mxu0 0.0
        %1470 = vmatpush1.msra.mxu0 0.0
        %1471 = vmatprep.subr.mxu0 0.0
        %1472 = vmatpush1.msra.mxu0 0.0
        %1473 = vmatprep.subr.mxu0 0.0
        %1474 = vmatpush1.msra.mxu0 0.0
        %1475 = vmatprep.subr.mxu0 0.0
        %1476 = vmatpush1.msra.mxu0 0.0
        %1477 = vmatprep.subr.mxu0 0.0
        %1478 = vmatpush1.msra.mxu0 0.0
        %1479 = vmatprep.subr.mxu0 0.0
        %1480 = vmatpush1.msra.mxu0 0.0
        %1481 = vmatprep.subr.mxu0 0.0
        %1482 = vmatpush1.msra.mxu0 0.0
        %1483 = vmatprep.subr.mxu0 0.0
        %1484 = vmatpush1.msra.mxu0 0.0
        %1485 = vmatprep.subr.mxu0 0.0
        %1486 = vmatpush1.msra.mxu0 0.0
        %1487 = vmatprep.subr.mxu0 0.0
        %1488 = vmatpush1.msra.mxu0 0.0
        %1489 = vmatprep.subr.mxu0 0.0
        %1490 = vmatpush1.msra.mxu0 0.0
        %1491 = vmatprep.subr.mxu0 0.0
        %1492 = vmatpush1.msra.mxu0 0.0
        %1493 = vmatprep.subr.mxu0 0.0
        %1494 = vmatpush1.msra.mxu0 0.0
        %1495 = vmatprep.subr.mxu0 0.0
        %1496 = vmatpush1.msra.mxu0 0.0
        %1497 = vmatprep.subr.mxu0 0.0
        %1498 = vmatpush1.msra.mxu0 0.0
        %1499 = vmatprep.mubr.f32.mxu0 0.0
        %1500 = vmatmul.mubr.f32.gmra.mrb[0].mxu0 %v1433
        %v1501 = vpop.f32.mrb[0].mxu0
        %v1502 = vadd.f32 0.0, %v1501
        %v1503 = vpop.f32.mrb[0].mxu0
        %v1504 = vadd.f32 0.0, %v1503
        %1505 = vdwg.mxu0
        %v1506 = vadd.f32 %v1428, %v1502
        %v1507 = vadd.f32 %v1429, %v1504
        %1508 = vrot.lane.b32.xlu0 %v1089, 127
        %v1509 = vpop.permute.xlu0 %1508
        %1510 = vrot.lane.b32.xlu0 %v1090, 127
        %v1511 = vpop.permute.xlu0 %1510
        %v1512 = vsel %vm677, %v1509, %v1511
        %v1513 = vsel %vm677, %v1511, %v1509
        %v1514 = vmul.f32 %v1512, %v686
        %v1515 = vmul.f32 %v1513, %v690
        %s1516 = scalar_lea.vmem %s2, 40
        %v1517 = vld [vmem:[%s1516] sm:$0xff]
        %v1519 = vsel %vm246, %v1517, 0
        %1521 = vmatprep.subr.mxu0 %v1515
        %1522 = vmatpush1.msra.mxu0 %v1514
        %1523 = vmatprep.subr.mxu0 0.0
        %1524 = vmatpush1.msra.mxu0 0.0
        %1525 = vmatprep.subr.mxu0 0.0
        %1526 = vmatpush1.msra.mxu0 0.0
        %1527 = vmatprep.subr.mxu0 0.0
        %1528 = vmatpush1.msra.mxu0 0.0
        %1529 = vmatprep.subr.mxu0 0.0
        %1530 = vmatpush1.msra.mxu0 0.0
        %1531 = vmatprep.subr.mxu0 0.0
        %1532 = vmatpush1.msra.mxu0 0.0
        %1533 = vmatprep.subr.mxu0 0.0
        %1534 = vmatpush1.msra.mxu0 0.0
        %1535 = vmatprep.subr.mxu0 0.0
        %1536 = vmatpush1.msra.mxu0 0.0
        %1537 = vmatprep.subr.mxu0 0.0
        %1538 = vmatpush1.msra.mxu0 0.0
        %1539 = vmatprep.subr.mxu0 0.0
        %1540 = vmatpush1.msra.mxu0 0.0
        %1541 = vmatprep.subr.mxu0 0.0
        %1542 = vmatpush1.msra.mxu0 0.0
        %1543 = vmatprep.subr.mxu0 0.0
        %1544 = vmatpush1.msra.mxu0 0.0
        %1545 = vmatprep.subr.mxu0 0.0
        %1546 = vmatpush1.msra.mxu0 0.0
        %1547 = vmatprep.subr.mxu0 0.0
        %1548 = vmatpush1.msra.mxu0 0.0
        %1549 = vmatprep.subr.mxu0 0.0
        %1550 = vmatpush1.msra.mxu0 0.0
        %1551 = vmatprep.subr.mxu0 0.0
        %1552 = vmatpush1.msra.mxu0 0.0
        %1553 = vmatprep.subr.mxu0 0.0
        %1554 = vmatpush1.msra.mxu0 0.0
        %1555 = vmatprep.subr.mxu0 0.0
        %1556 = vmatpush1.msra.mxu0 0.0
        %1557 = vmatprep.subr.mxu0 0.0
        %1558 = vmatpush1.msra.mxu0 0.0
        %1559 = vmatprep.subr.mxu0 0.0
        %1560 = vmatpush1.msra.mxu0 0.0
        %1561 = vmatprep.subr.mxu0 0.0
        %1562 = vmatpush1.msra.mxu0 0.0
        %1563 = vmatprep.subr.mxu0 0.0
        %1564 = vmatpush1.msra.mxu0 0.0
        %1565 = vmatprep.subr.mxu0 0.0
        %1566 = vmatpush1.msra.mxu0 0.0
        %1567 = vmatprep.subr.mxu0 0.0
        %1568 = vmatpush1.msra.mxu0 0.0
        %1569 = vmatprep.subr.mxu0 0.0
        %1570 = vmatpush1.msra.mxu0 0.0
        %1571 = vmatprep.subr.mxu0 0.0
        %1572 = vmatpush1.msra.mxu0 0.0
        %1573 = vmatprep.subr.mxu0 0.0
        %1574 = vmatpush1.msra.mxu0 0.0
        %1575 = vmatprep.subr.mxu0 0.0
        %1576 = vmatpush1.msra.mxu0 0.0
        %1577 = vmatprep.subr.mxu0 0.0
        %1578 = vmatpush1.msra.mxu0 0.0
        %1579 = vmatprep.subr.mxu0 0.0
        %1580 = vmatpush1.msra.mxu0 0.0
        %1581 = vmatprep.subr.mxu0 0.0
        %1582 = vmatpush1.msra.mxu0 0.0
        %1583 = vmatprep.subr.mxu0 0.0
        %1584 = vmatpush1.msra.mxu0 0.0
        %1585 = vmatprep.mubr.f32.mxu0 0.0
        %1586 = vmatmul.mubr.f32.gmra.mrb[0].mxu0 %v1519
        %v1587 = vpop.f32.mrb[0].mxu0
        %v1588 = vadd.f32 0.0, %v1587
        %v1589 = vpop.f32.mrb[0].mxu0
        %v1590 = vadd.f32 0.0, %v1589
        %1591 = vdwg.mxu0
        %v1592 = vadd.f32 %v1506, %v1588
        %v1593 = vadd.f32 %v1507, %v1590
        %1594 = vrot.lane.b32.xlu0 %v1089, 113
        %v1595 = vpop.permute.xlu0 %1594
        %1596 = vrot.lane.b32.xlu0 %v1090, 113
        %v1597 = vpop.permute.xlu0 %1596
        %v1598 = vsel %vm777, %v1595, %v1597
        %v1599 = vsel %vm777, %v1597, %v1595
        %v1600 = vmul.f32 %v1598, %v786
        %v1601 = vmul.f32 %v1599, %v790
        %s1602 = scalar_lea.vmem %s2, 48
        %v1603 = vld [vmem:[%s1602] sm:$0xff]
        %v1605 = vsel %vm246, %v1603, 0
        %1607 = vmatprep.subr.mxu0 %v1601
        %1608 = vmatpush1.msra.mxu0 %v1600
        %1609 = vmatprep.subr.mxu0 0.0
        %1610 = vmatpush1.msra.mxu0 0.0
        %1611 = vmatprep.subr.mxu0 0.0
        %1612 = vmatpush1.msra.mxu0 0.0
        %1613 = vmatprep.subr.mxu0 0.0
        %1614 = vmatpush1.msra.mxu0 0.0
        %1615 = vmatprep.subr.mxu0 0.0
        %1616 = vmatpush1.msra.mxu0 0.0
        %1617 = vmatprep.subr.mxu0 0.0
        %1618 = vmatpush1.msra.mxu0 0.0
        %1619 = vmatprep.subr.mxu0 0.0
        %1620 = vmatpush1.msra.mxu0 0.0
        %1621 = vmatprep.subr.mxu0 0.0
        %1622 = vmatpush1.msra.mxu0 0.0
        %1623 = vmatprep.subr.mxu0 0.0
        %1624 = vmatpush1.msra.mxu0 0.0
        %1625 = vmatprep.subr.mxu0 0.0
        %1626 = vmatpush1.msra.mxu0 0.0
        %1627 = vmatprep.subr.mxu0 0.0
        %1628 = vmatpush1.msra.mxu0 0.0
        %1629 = vmatprep.subr.mxu0 0.0
        %1630 = vmatpush1.msra.mxu0 0.0
        %1631 = vmatprep.subr.mxu0 0.0
        %1632 = vmatpush1.msra.mxu0 0.0
        %1633 = vmatprep.subr.mxu0 0.0
        %1634 = vmatpush1.msra.mxu0 0.0
        %1635 = vmatprep.subr.mxu0 0.0
        %1636 = vmatpush1.msra.mxu0 0.0
        %1637 = vmatprep.subr.mxu0 0.0
        %1638 = vmatpush1.msra.mxu0 0.0
        %1639 = vmatprep.subr.mxu0 0.0
        %1640 = vmatpush1.msra.mxu0 0.0
        %1641 = vmatprep.subr.mxu0 0.0
        %1642 = vmatpush1.msra.mxu0 0.0
        %1643 = vmatprep.subr.mxu0 0.0
        %1644 = vmatpush1.msra.mxu0 0.0
        %1645 = vmatprep.subr.mxu0 0.0
        %1646 = vmatpush1.msra.mxu0 0.0
        %1647 = vmatprep.subr.mxu0 0.0
        %1648 = vmatpush1.msra.mxu0 0.0
        %1649 = vmatprep.subr.mxu0 0.0
        %1650 = vmatpush1.msra.mxu0 0.0
        %1651 = vmatprep.subr.mxu0 0.0
        %1652 = vmatpush1.msra.mxu0 0.0
        %1653 = vmatprep.subr.mxu0 0.0
        %1654 = vmatpush1.msra.mxu0 0.0
        %1655 = vmatprep.subr.mxu0 0.0
        %1656 = vmatpush1.msra.mxu0 0.0
        %1657 = vmatprep.subr.mxu0 0.0
        %1658 = vmatpush1.msra.mxu0 0.0
        %1659 = vmatprep.subr.mxu0 0.0
        %1660 = vmatpush1.msra.mxu0 0.0
        %1661 = vmatprep.subr.mxu0 0.0
        %1662 = vmatpush1.msra.mxu0 0.0
        %1663 = vmatprep.subr.mxu0 0.0
        %1664 = vmatpush1.msra.mxu0 0.0
        %1665 = vmatprep.subr.mxu0 0.0
        %1666 = vmatpush1.msra.mxu0 0.0
        %1667 = vmatprep.subr.mxu0 0.0
        %1668 = vmatpush1.msra.mxu0 0.0
        %1669 = vmatprep.subr.mxu0 0.0
        %1670 = vmatpush1.msra.mxu0 0.0
        %1671 = vmatprep.mubr.f32.mxu0 0.0
        %1672 = vmatmul.mubr.f32.gmra.mrb[0].mxu0 %v1605
        %v1673 = vpop.f32.mrb[0].mxu0
        %v1674 = vadd.f32 0.0, %v1673
        %v1675 = vpop.f32.mrb[0].mxu0
        %v1676 = vadd.f32 0.0, %v1675
        %1677 = vdwg.mxu0
        %v1678 = vadd.f32 %v1592, %v1674
        %v1679 = vadd.f32 %v1593, %v1676
        %1680 = vrot.lane.b32.xlu0 %v1089, 112
        %v1681 = vpop.permute.xlu0 %1680
        %1682 = vrot.lane.b32.xlu0 %v1090, 112
        %v1683 = vpop.permute.xlu0 %1682
        %v1684 = vsel %vm877, %v1681, %v1683
        %v1685 = vsel %vm877, %v1683, %v1681
        %v1686 = vmul.f32 %v1684, %v886
        %v1687 = vmul.f32 %v1685, %v890
        %s1688 = scalar_lea.vmem %s2, 56
        %v1689 = vld [vmem:[%s1688] sm:$0xff]
        %v1691 = vsel %vm246, %v1689, 0
        %1693 = vmatprep.subr.mxu0 %v1687
        %1694 = vmatpush1.msra.mxu0 %v1686
        %1695 = vmatprep.subr.mxu0 0.0
        %1696 = vmatpush1.msra.mxu0 0.0
        %1697 = vmatprep.subr.mxu0 0.0
        %1698 = vmatpush1.msra.mxu0 0.0
        %1699 = vmatprep.subr.mxu0 0.0
        %1700 = vmatpush1.msra.mxu0 0.0
        %1701 = vmatprep.subr.mxu0 0.0
        %1702 = vmatpush1.msra.mxu0 0.0
        %1703 = vmatprep.subr.mxu0 0.0
        %1704 = vmatpush1.msra.mxu0 0.0
        %1705 = vmatprep.subr.mxu0 0.0
        %1706 = vmatpush1.msra.mxu0 0.0
        %1707 = vmatprep.subr.mxu0 0.0
        %1708 = vmatpush1.msra.mxu0 0.0
        %1709 = vmatprep.subr.mxu0 0.0
        %1710 = vmatpush1.msra.mxu0 0.0
        %1711 = vmatprep.subr.mxu0 0.0
        %1712 = vmatpush1.msra.mxu0 0.0
        %1713 = vmatprep.subr.mxu0 0.0
        %1714 = vmatpush1.msra.mxu0 0.0
        %1715 = vmatprep.subr.mxu0 0.0
        %1716 = vmatpush1.msra.mxu0 0.0
        %1717 = vmatprep.subr.mxu0 0.0
        %1718 = vmatpush1.msra.mxu0 0.0
        %1719 = vmatprep.subr.mxu0 0.0
        %1720 = vmatpush1.msra.mxu0 0.0
        %1721 = vmatprep.subr.mxu0 0.0
        %1722 = vmatpush1.msra.mxu0 0.0
        %1723 = vmatprep.subr.mxu0 0.0
        %1724 = vmatpush1.msra.mxu0 0.0
        %1725 = vmatprep.subr.mxu0 0.0
        %1726 = vmatpush1.msra.mxu0 0.0
        %1727 = vmatprep.subr.mxu0 0.0
        %1728 = vmatpush1.msra.mxu0 0.0
        %1729 = vmatprep.subr.mxu0 0.0
        %1730 = vmatpush1.msra.mxu0 0.0
        %1731 = vmatprep.subr.mxu0 0.0
        %1732 = vmatpush1.msra.mxu0 0.0
        %1733 = vmatprep.subr.mxu0 0.0
        %1734 = vmatpush1.msra.mxu0 0.0
        %1735 = vmatprep.subr.mxu0 0.0
        %1736 = vmatpush1.msra.mxu0 0.0
        %1737 = vmatprep.subr.mxu0 0.0
        %1738 = vmatpush1.msra.mxu0 0.0
        %1739 = vmatprep.subr.mxu0 0.0
        %1740 = vmatpush1.msra.mxu0 0.0
        %1741 = vmatprep.subr.mxu0 0.0
        %1742 = vmatpush1.msra.mxu0 0.0
        %1743 = vmatprep.subr.mxu0 0.0
        %1744 = vmatpush1.msra.mxu0 0.0
        %1745 = vmatprep.subr.mxu0 0.0
        %1746 = vmatpush1.msra.mxu0 0.0
        %1747 = vmatprep.subr.mxu0 0.0
        %1748 = vmatpush1.msra.mxu0 0.0
        %1749 = vmatprep.subr.mxu0 0.0
        %1750 = vmatpush1.msra.mxu0 0.0
        %1751 = vmatprep.subr.mxu0 0.0
        %1752 = vmatpush1.msra.mxu0 0.0
        %1753 = vmatprep.subr.mxu0 0.0
        %1754 = vmatpush1.msra.mxu0 0.0
        %1755 = vmatprep.subr.mxu0 0.0
        %1756 = vmatpush1.msra.mxu0 0.0
        %1757 = vmatprep.mubr.f32.mxu0 0.0
        %1758 = vmatmul.mubr.f32.gmra.mrb[0].mxu0 %v1691
        %v1759 = vpop.f32.mrb[0].mxu0
        %v1760 = vadd.f32 0.0, %v1759
        %v1761 = vpop.f32.mrb[0].mxu0
        %v1762 = vadd.f32 0.0, %v1761
        %1763 = vdwg.mxu0
        %v1764 = vadd.f32 %v1678, %v1760
        %v1765 = vadd.f32 %v1679, %v1762
        %1766 = vrot.lane.b32.xlu0 %v1089, 111
        %v1767 = vpop.permute.xlu0 %1766
        %1768 = vrot.lane.b32.xlu0 %v1090, 111
        %v1769 = vpop.permute.xlu0 %1768
        %v1770 = vsel %vm977, %v1767, %v1769
        %v1771 = vsel %vm977, %v1769, %v1767
        %v1772 = vmul.f32 %v1770, %v986
        %v1773 = vmul.f32 %v1771, %v990
        %s1774 = scalar_lea.vmem %s2, 64
        %v1775 = vld [vmem:[%s1774] sm:$0xff]
        %v1777 = vsel %vm246, %v1775, 0
        %1779 = vmatprep.subr.mxu0 %v1773
        %1780 = vmatpush1.msra.mxu0 %v1772
        %1781 = vmatprep.subr.mxu0 0.0
        %1782 = vmatpush1.msra.mxu0 0.0
        %1783 = vmatprep.subr.mxu0 0.0
        %1784 = vmatpush1.msra.mxu0 0.0
        %1785 = vmatprep.subr.mxu0 0.0
        %1786 = vmatpush1.msra.mxu0 0.0
        %1787 = vmatprep.subr.mxu0 0.0
        %1788 = vmatpush1.msra.mxu0 0.0
        %1789 = vmatprep.subr.mxu0 0.0
        %1790 = vmatpush1.msra.mxu0 0.0
        %1791 = vmatprep.subr.mxu0 0.0
        %1792 = vmatpush1.msra.mxu0 0.0
        %1793 = vmatprep.subr.mxu0 0.0
        %1794 = vmatpush1.msra.mxu0 0.0
        %1795 = vmatprep.subr.mxu0 0.0
        %1796 = vmatpush1.msra.mxu0 0.0
        %1797 = vmatprep.subr.mxu0 0.0
        %1798 = vmatpush1.msra.mxu0 0.0
        %1799 = vmatprep.subr.mxu0 0.0
        %1800 = vmatpush1.msra.mxu0 0.0
        %1801 = vmatprep.subr.mxu0 0.0
        %1802 = vmatpush1.msra.mxu0 0.0
        %1803 = vmatprep.subr.mxu0 0.0
        %1804 = vmatpush1.msra.mxu0 0.0
        %1805 = vmatprep.subr.mxu0 0.0
        %1806 = vmatpush1.msra.mxu0 0.0
        %1807 = vmatprep.subr.mxu0 0.0
        %1808 = vmatpush1.msra.mxu0 0.0
        %1809 = vmatprep.subr.mxu0 0.0
        %1810 = vmatpush1.msra.mxu0 0.0
        %1811 = vmatprep.subr.mxu0 0.0
        %1812 = vmatpush1.msra.mxu0 0.0
        %1813 = vmatprep.subr.mxu0 0.0
        %1814 = vmatpush1.msra.mxu0 0.0
        %1815 = vmatprep.subr.mxu0 0.0
        %1816 = vmatpush1.msra.mxu0 0.0
        %1817 = vmatprep.subr.mxu0 0.0
        %1818 = vmatpush1.msra.mxu0 0.0
        %1819 = vmatprep.subr.mxu0 0.0
        %1820 = vmatpush1.msra.mxu0 0.0
        %1821 = vmatprep.subr.mxu0 0.0
        %1822 = vmatpush1.msra.mxu0 0.0
        %1823 = vmatprep.subr.mxu0 0.0
        %1824 = vmatpush1.msra.mxu0 0.0
        %1825 = vmatprep.subr.mxu0 0.0
        %1826 = vmatpush1.msra.mxu0 0.0
        %1827 = vmatprep.subr.mxu0 0.0
        %1828 = vmatpush1.msra.mxu0 0.0
        %1829 = vmatprep.subr.mxu0 0.0
        %1830 = vmatpush1.msra.mxu0 0.0
        %1831 = vmatprep.subr.mxu0 0.0
        %1832 = vmatpush1.msra.mxu0 0.0
        %1833 = vmatprep.subr.mxu0 0.0
        %1834 = vmatpush1.msra.mxu0 0.0
        %1835 = vmatprep.subr.mxu0 0.0
        %1836 = vmatpush1.msra.mxu0 0.0
        %1837 = vmatprep.subr.mxu0 0.0
        %1838 = vmatpush1.msra.mxu0 0.0
        %1839 = vmatprep.subr.mxu0 0.0
        %1840 = vmatpush1.msra.mxu0 0.0
        %1841 = vmatprep.subr.mxu0 0.0
        %1842 = vmatpush1.msra.mxu0 0.0
        %1843 = vmatprep.mubr.f32.mxu0 0.0
        %1844 = vmatmul.mubr.f32.gmra.mrb[0].mxu0 %v1777
        %v1845 = vpop.f32.mrb[0].mxu0
        %v1846 = vadd.f32 0.0, %v1845
        %v1847 = vpop.f32.mrb[0].mxu0
        %v1848 = vadd.f32 0.0, %v1847
        %1849 = vdwg.mxu0
        %v1850 = vadd.f32 %v1764, %v1846
        %v1851 = vadd.f32 %v1765, %v1848
        %v1852 = vadd.f32 %v1850, %v1851
        %1853 = vadd.xlane.f32.xlu0 %v1852
        %v1854 = vpop.xlane.xlu0 %1853
        %v1855 = vmul.f32 %v1854, 0.00390625
        %v1856 = vsub.f32 %v1850, %v1855
        %v1857 = vsub.f32 %v1851, %v1855
        %v1858 = vmul.f32 %v1856, %v1856
        %v1859 = vmul.f32 %v1857, %v1857
        %v1860 = vadd.f32 %v1858, %v1859
        %1861 = vadd.xlane.f32.xlu0 %v1860
        %v1862 = vpop.xlane.xlu0 %1861
        %v1863 = vmul.f32 %v1862, 0.00390625
        %v1864 = vadd.f32 %v1863, 1e-05
        %v1865 = vrsqrt.pop %v1864
        %v1866 = vmul.f32 %v1856, %v1865
        %v1867 = vmul.f32 %v1857, %v1865
        %v1868 = vadd.f32 %v1866, %v196
        %v1869 = vadd.f32 %v1867, %v197
        %1870 = vst [vmem:[%s190] sm:$0xff] %v1868
        %1871 = vst [vmem:[%s190 + $0x8] sm:$0xff] %v1869
        %s1872 = sand.u32 %s115, 1
        %s1873 = scalar_lea.sflag [#allocation3], %s1872
        %s1874 = sand.u32 %s115, 1
        %s1875 = smul.addr %s1874, 16
        %s1876 = scalar_lea.vmem [#allocation2], %s1875
        // Predicated region
        $region37: #{tpu_custom_call.1} parent=35 // pred_check
          %p1877 = pneg %p125
        $region38: #{tpu_custom_call.1} parent=35 // pred_check_branch
          %1879 = sbr.rel (%p1877) target = $region40
        $region39: #{tpu_custom_call.1} parent=35 // pred_region
          %s1881 = ssub.s32 256, 256
          %1882 = vsyncadd %s1873, %s1881
          %s1883 = smul.addr %s18, 2
          %s1884 = smul.addr %s1883, 128
          %s1885 = scalar_lea.hbm %s4, %s1884
          %s1887 = sshll.u32 %s1876, 4
          %s1888 = int_to_ptr.vmem [resolvable:$true] %s1887
          %1890 = dma.vmem_to_hbm [thread:$0]  %s1888, 256, %s1885, %s1873
        $region40: #{tpu_custom_call.1} parent=35 // pred_fallthru
          _
      $region36: #{tpu_custom_call.1} parent=5 // pred_fallthru
        _
      %p1891 = scmp.le.s32.totalorder 2, %s13
      // Predicated region
      $region41: #{tpu_custom_call.1} parent=5 // pred_check
        %p1892 = pneg %p1891
      $region42: #{tpu_custom_call.1} parent=5 // pred_check_branch
        %1894 = sbr.rel (%p1892) target = $region44
      $region43: #{tpu_custom_call.1} parent=5 // pred_region
        %s1895 = ssub.s32 %s13, 2
        // Predicated region
        $region45: #{tpu_custom_call.1} parent=43 // pred_check
          %p1896 = pneg %p131
        $region46: #{tpu_custom_call.1} parent=43 // pred_check_branch
          %1898 = sbr.rel (%p1896) target = $region48
        $region47: #{tpu_custom_call.1} parent=43 // pred_region
          %s1899 = sand.u32 %s116, 1
          %s1900 = scalar_lea.sflag [#allocation3], %s1899
          %s1901 = sand.u32 %s116, 1
          %s1902 = smul.addr %s1901, 16
          %s1903 = scalar_lea.vmem [#allocation2], %s1902
          %1904 = dma.done %s1900, 256
        $region48: #{tpu_custom_call.1} parent=43 // pred_fallthru
          _
      $region44: #{tpu_custom_call.1} parent=5 // pred_fallthru
        _
    $region6: #{tpu_custom_call.1} parent=1 // loop_footer
      %s17 = sadd.s32 1, %s13
    $region7: #{tpu_custom_call.1} parent=1 // loop_footer_branch
      %12 = sbr.rel target = $region3
    $region8: #{tpu_custom_call.1} parent=1 // loop_exit
      _
    %1905 = vsyncpa [#allocation3], 1
    %s1906 = scalar_lea.sflag [#allocation3], 1
    %1907 = vsyncpa %s1906, 1

// kernel: tpu_custom_call.1
$region0: #{tpu_custom_call.1}
  #allocation0 [shape = 'u32[]', space=smem, size = 0x4, offset = 0x4, fixed_abs, tag = 'smem constant byte address 0x4 - core index']
  #allocation1 [shape = 'u32[144,128]{1,0:T(1,128)}', space=vmem, size = 0x12000, scoped, tag = 'internal scratch']
  %s0 = inlined_call_operand.vmem [shape: f32[2,8,256], index: 0, kind: input, shape index: {}]
  %s1 = inlined_call_operand.vmem [shape: f32[9,8,8], index: 1, kind: input, shape index: {}]
  %s2 = inlined_call_operand.vmem [shape: f32[9,8,8], index: 2, kind: input, shape index: {}]
  %s3 = inlined_call_operand.vmem [shape: f32[9,1,256], index: 3, kind: input, shape index: {}]
  %s4 = inlined_call_operand.hbm [shape: f32[2,8,256], index: 4, kind: output, shape index: {}]
  %s5 = sld [smem:[#allocation0]]
  $region49: #{tpu_custom_call.1} parent=0
    _
  %s7 = ssub.s32 1, %s5
  %s8 = scalar_select 0, %s7, %s5
  $region1: #{tpu_custom_call.1} parent=0
    #allocation2 [shape = 'u8[16384]{0}', space=vmem, size = 0x4000, scoped, tag = 'output window, operand 0']
    #allocation3 [shape = 's32[2]{0}', space=sflag, size = 0x8, scoped, tag = 'scoped memory for tpu_custom_call.1']
    %9 = vsyncpa [#allocation3], 0
    %s10 = scalar_lea.sflag [#allocation3], 1
    %11 = vsyncpa %s10, 0
    loop: start=0, step=1, limit=4
    $region2: #{tpu_custom_call.1} parent=1 // loop_pre_header
      _
    $region3: #{tpu_custom_call.1} parent=1 // loop_header
      %s13 = sphi 0, %s17
      %p14 = scmp.ge.s32.totalorder %s13, 4
      %s23 = sphi 0, %s25
      %s26 = sphi 0, %s23
      %s27 = sphi 0, %s26
      %s43 = sphi 0, %s27
      %s47 = sphi 0, %s47
      %s49 = sphi 0, %s47
      %s50 = sphi 0, %s49
      %s64 = sphi 0, %s50
      %s68 = sphi 0, %s68
      %s70 = sphi 0, %s68
      %s71 = sphi 0, %s70
      %s85 = sphi 0, %s71
      %s89 = sphi 0, %s89
      %s91 = sphi 0, %s89
      %s92 = sphi 0, %s91
      %s106 = sphi 0, %s92
      %s112 = sphi 0, %s114
      %s115 = sphi 0, %s112
      %s116 = sphi 0, %s115
      %s132 = sphi 0, %s116
    $region4: #{tpu_custom_call.1} parent=1 // loop_header_branch
      %16 = sbr.rel (%p14) target = $region8
    $region5: #{tpu_custom_call.1} parent=1 // loop_body
      %s18 = ssub.s32 %s13, 1
      %s19 = ssub.s32 %s13, 2
      %s20 = sadd.s32 %s13, 1
      %s21 = ssub.s32 %s13, %s20
      %p22 = scmp.eq.s32.totalorder %s21, 0
      %s24 = sadd.s32 %s23, 1
      %s25 = scalar_select %p22, %s23, %s24
      %p28 = pneg %p22
      %p29 = scmp.eq.s32.totalorder %s13, 1
      %p30 = por %p28, %p29
      %p31 = scmp.ne.s32.totalorder %s23, %s26
      %p32 = scmp.eq.s32.totalorder %s13, 0
      %p33 = por %p31, %p32
      %p34 = scmp.ne.s32.totalorder %s23, %s26
      %p35 = scmp.eq.s32.totalorder %s18, 1
      %p36 = por %p34, %p35
      %p37 = scmp.ne.s32.totalorder %s26, %s27
      %p38 = scmp.eq.s32.totalorder %s18, 0
      %p39 = por %p37, %p38
      %p40 = scmp.ne.s32.totalorder %s26, %s27
      %p41 = scmp.eq.s32.totalorder %s19, 1
      %p42 = por %p40, %p41
      %p44 = scmp.ne.s32.totalorder %s27, %s43
      %p45 = scmp.eq.s32.totalorder %s19, 0
      %p46 = por %p44, %p45
      %s48 = sadd.s32 %s47, 1
      %p51 = scmp.eq.s32.totalorder %s13, 1
      %p52 = scmp.ne.s32.totalorder %s47, %s49
      %p53 = scmp.eq.s32.totalorder %s13, 0
      %p54 = por %p52, %p53
      %p55 = scmp.ne.s32.totalorder %s47, %s49
      %p56 = scmp.eq.s32.totalorder %s18, 1
      %p57 = por %p55, %p56
      %p58 = scmp.ne.s32.totalorder %s49, %s50
      %p59 = scmp.eq.s32.totalorder %s18, 0
      %p60 = por %p58, %p59
      %p61 = scmp.ne.s32.totalorder %s49, %s50
      %p62 = scmp.eq.s32.totalorder %s19, 1
      %p63 = por %p61, %p62
      %p65 = scmp.ne.s32.totalorder %s50, %s64
      %p66 = scmp.eq.s32.totalorder %s19, 0
      %p67 = por %p65, %p66
      %s69 = sadd.s32 %s68, 1
      %p72 = scmp.eq.s32.totalorder %s13, 1
      %p73 = scmp.ne.s32.totalorder %s68, %s70
      %p74 = scmp.eq.s32.totalorder %s13, 0
      %p75 = por %p73, %p74
      %p76 = scmp.ne.s32.totalorder %s68, %s70
      %p77 = scmp.eq.s32.totalorder %s18, 1
      %p78 = por %p76, %p77
      %p79 = scmp.ne.s32.totalorder %s70, %s71
      %p80 = scmp.eq.s32.totalorder %s18, 0
      %p81 = por %p79, %p80
      %p82 = scmp.ne.s32.totalorder %s70, %s71
      %p83 = scmp.eq.s32.totalorder %s19, 1
      %p84 = por %p82, %p83
      %p86 = scmp.ne.s32.totalorder %s71, %s85
      %p87 = scmp.eq.s32.totalorder %s19, 0
      %p88 = por %p86, %p87
      %s90 = sadd.s32 %s89, 1
      %p93 = scmp.eq.s32.totalorder %s13, 1
      %p94 = scmp.ne.s32.totalorder %s89, %s91
      %p95 = scmp.eq.s32.totalorder %s13, 0
      %p96 = por %p94, %p95
      %p97 = scmp.ne.s32.totalorder %s89, %s91
      %p98 = scmp.eq.s32.totalorder %s18, 1
      %p99 = por %p97, %p98
      %p100 = scmp.ne.s32.totalorder %s91, %s92
      %p101 = scmp.eq.s32.totalorder %s18, 0
      %p102 = por %p100, %p101
      %p103 = scmp.ne.s32.totalorder %s91, %s92
      %p104 = scmp.eq.s32.totalorder %s19, 1
      %p105 = por %p103, %p104
      %p107 = scmp.ne.s32.totalorder %s92, %s106
      %p108 = scmp.eq.s32.totalorder %s19, 0
      %p109 = por %p107, %p108
      %s110 = ssub.s32 %s13, %s20
      %p111 = scmp.eq.s32.totalorder %s110, 0
      %s113 = sadd.s32 %s112, 1
      %s114 = scalar_select %p111, %s112, %s113
      %p117 = pneg %p111
      %p118 = scmp.eq.s32.totalorder %s13, 1
      %p119 = por %p117, %p118
      %p120 = scmp.ne.s32.totalorder %s112, %s115
      %p121 = scmp.eq.s32.totalorder %s13, 0
      %p122 = por %p120, %p121
      %p123 = scmp.ne.s32.totalorder %s112, %s115
      %p124 = scmp.eq.s32.totalorder %s18, 1
      %p125 = por %p123, %p124
      %p126 = scmp.ne.s32.totalorder %s115, %s116
      %p127 = scmp.eq.s32.totalorder %s18, 0
      %p128 = por %p126, %p127
      %p129 = scmp.ne.s32.totalorder %s115, %s116
      %p130 = scmp.eq.s32.totalorder %s19, 1
      %p131 = por %p129, %p130
      %p133 = scmp.ne.s32.totalorder %s116, %s132
      %p134 = scmp.eq.s32.totalorder %s19, 0
      %p135 = por %p133, %p134
      %p136 = scmp.le.s32.totalorder 1, %s13
      %p137 = scmp.lt.s32.totalorder %s13, 3
      %p138 = pnand %p136, %p137
      %p139 = pneg %p138
      // Predicated region
      $region9: #{tpu_custom_call.1} parent=5 // pred_check
        _
      $region10: #{tpu_custom_call.1} parent=5 // pred_check_branch
        %141 = sbr.rel (%p138) target = $region12
      $region11: #{tpu_custom_call.1} parent=5 // pred_region
        %s142 = ssub.s32 %s13, 1
        // Predicated region
        $region13: #{tpu_custom_call.1} parent=11 // pred_check
          %p143 = pneg %p60
        $region14: #{tpu_custom_call.1} parent=11 // pred_check_branch
          %145 = sbr.rel (%p143) target = $region16
        $region15: #{tpu_custom_call.1} parent=11 // pred_region
          _
        $region16: #{tpu_custom_call.1} parent=11 // pred_fallthru
          _
        // Predicated region
        $region17: #{tpu_custom_call.1} parent=11 // pred_check
          %p146 = pneg %p81
        $region18: #{tpu_custom_call.1} parent=11 // pred_check_branch
          %148 = sbr.rel (%p146) target = $region20
        $region19: #{tpu_custom_call.1} parent=11 // pred_region
          _
        $region20: #{tpu_custom_call.1} parent=11 // pred_fallthru
          _
        // Predicated region
        $region21: #{tpu_custom_call.1} parent=11 // pred_check
          %p149 = pneg %p102
        $region22: #{tpu_custom_call.1} parent=11 // pred_check_branch
          %151 = sbr.rel (%p149) target = $region24
        $region23: #{tpu_custom_call.1} parent=11 // pred_region
          _
        $region24: #{tpu_custom_call.1} parent=11 // pred_fallthru
          _
      $region12: #{tpu_custom_call.1} parent=5 // pred_fallthru
        _
      %p152 = scmp.lt.s32.totalorder %s13, 2
      // Predicated region
      $region25: #{tpu_custom_call.1} parent=5 // pred_check
        %p153 = pneg %p152
      $region26: #{tpu_custom_call.1} parent=5 // pred_check_branch
        %155 = sbr.rel (%p153) target = $region28
      $region27: #{tpu_custom_call.1} parent=5 // pred_region
        // Predicated region
        $region29: #{tpu_custom_call.1} parent=27 // pred_check
          %p156 = pneg %p33
        $region30: #{tpu_custom_call.1} parent=27 // pred_check_branch
          %158 = sbr.rel (%p156) target = $region32
        $region31: #{tpu_custom_call.1} parent=27 // pred_region
          %p159 = scmp.lt.s32.totalorder %s13, 1
          %s160 = scalar_select %p159, %s13, 1
          %s161 = smul.addr %s160, 2
          %s162 = smul.addr %s161, 8
          %s163 = scalar_lea.vmem %s0, %s162
        $region32: #{tpu_custom_call.1} parent=27 // pred_fallthru
          _
      $region28: #{tpu_custom_call.1} parent=5 // pred_fallthru
        _
      %p164 = scmp.le.s32.totalorder 1, %s13
      %p165 = scmp.lt.s32.totalorder %s13, 3
      %p166 = pnand %p164, %p165
      %p167 = pneg %p166
      // Predicated region
      $region33: #{tpu_custom_call.1} parent=5 // pred_check
        _
      $region34: #{tpu_custom_call.1} parent=5 // pred_check_branch
        %169 = sbr.rel (%p166) target = $region36
      $region35: #{tpu_custom_call.1} parent=5 // pred_region
        %s170 = ssub.s32 %s13, 1
        %p171 = scmp.lt.s32.totalorder %s18, 1
        %s172 = scalar_select %p171, %s18, 1
        %s173 = smul.addr %s172, 2
        %s174 = smul.addr %s173, 8
        %s175 = scalar_lea.vmem %s0, %s174
        %p176 = pneg %p39
        %p177 = pneg %p36
        %p178 = pneg %p60
        %p179 = pneg %p57
        %p180 = pneg %p81
        %p181 = pneg %p78
        %p182 = pneg %p102
        %p183 = pneg %p99
        %p184 = pneg %p128
        %p185 = pneg %p125
        %s186 = sand.u32 %s115, 1
        %s187 = scalar_lea.sflag [#allocation3], %s186
        %s188 = sand.u32 %s115, 1
        %s189 = smul.addr %s188, 16
        %s190 = scalar_lea.vmem [#allocation2], %s189
        %p191 = scmp.lt.s32.totalorder %s18, 1
        %s192 = scalar_select %p191, %s18, 1
        %s193 = smul.addr %s192, 2
        %s194 = smul.addr %s193, 8
        %s195 = scalar_lea.vmem %s0, %s194
        %v196 = vld [vmem:[%s195] sm:$0xff]
        %v197 = vld [vmem:[%s195 + $0x8] sm:$0xff]
        %198 = vrot.lane.b32.xlu0 %v196, 17
        %v199 = vpop.permute.xlu0 %198
        %200 = vrot.lane.b32.xlu0 %v197, 17
        %v201 = vpop.permute.xlu0 %200
        %v202 = vlaneseq
        %v203 = vand.u32 %v202, 127
        %vm204 = vcmp.lt.s32.totalorder %v203, 17
        %v205 = vsel %vm204, %v199, %v201
        %v206 = vsel %vm204, %v201, %v199
        %v207 = vld [vmem:[%s3] sm:$0x3]
        %v209 = vlaneseq
        %v210 = vshrl.u32 %v209, 7
        %v211 = vsub.s32 0, %v210
        %v212 = vrot.slane %v207, %v211
        %v213 = vlaneseq
        %v214 = vshrl.u32 %v213, 7
        %v215 = vsub.s32 1, %v214
        %v216 = vrot.slane %v207, %v215
        %v219 = vmul.f32 %v206, %v212
        %v220 = vmul.f32 %v205, %v216
        %v221 = vld [vmem:[%s1] sm:$0xff]
        %222 = vrot.lane.b32.xlu0 %v196, 16
        %v223 = vpop.permute.xlu0 %222
        %224 = vrot.lane.b32.xlu0 %v197, 16
        %v225 = vpop.permute.xlu0 %224
        %vm226 = vcmp.lt.s32.totalorder %v203, 16
        %v227 = vsel %vm226, %v223, %v225
        %v228 = vsel %vm226, %v225, %v223
        %s229 = scalar_lea.vmem %s3, 2
        %v230 = vld [vmem:[%s229] sm:$0x3]
        %v232 = vlaneseq
        %v233 = vshrl.u32 %v232, 7
        %v234 = vsub.s32 0, %v233
        %v235 = vrot.slane %v230, %v234
        %v236 = vlaneseq
        %v237 = vshrl.u32 %v236, 7
        %v238 = vsub.s32 1, %v237
        %v239 = vrot.slane %v230, %v238
        %v242 = vmul.f32 %v228, %v235
        %v243 = vmul.f32 %v227, %v239
        %s244 = scalar_lea.vmem %s1, 8
        %v245 = vld [vmem:[%s244] sm:$0xff]
        %vm246 = vcmask 64512
        %v248 = vsel %vm246, %v245, 0
        %250 = vmatprep.subr.mxu0 %v243
        %251 = vmatpush1.msra.mxu0 %v242
        %252 = vmatprep.subr.mxu0 0.0
        %253 = vmatpush1.msra.mxu0 0.0
        %254 = vmatprep.subr.mxu0 0.0
        %255 = vmatpush1.msra.mxu0 0.0
        %256 = vmatprep.subr.mxu0 0.0
        %257 = vmatpush1.msra.mxu0 0.0
        %258 = vmatprep.subr.mxu0 0.0
        %259 = vmatpush1.msra.mxu0 0.0
        %260 = vmatprep.subr.mxu0 0.0
        %261 = vmatpush1.msra.mxu0 0.0
        %262 = vmatprep.subr.mxu0 0.0
        %263 = vmatpush1.msra.mxu0 0.0
        %264 = vmatprep.subr.mxu0 0.0
        %265 = vmatpush1.msra.mxu0 0.0
        %266 = vmatprep.subr.mxu0 0.0
        %267 = vmatpush1.msra.mxu0 0.0
        %268 = vmatprep.subr.mxu0 0.0
        %269 = vmatpush1.msra.mxu0 0.0
        %270 = vmatprep.subr.mxu0 0.0
        %271 = vmatpush1.msra.mxu0 0.0
        %272 = vmatprep.subr.mxu0 0.0
        %273 = vmatpush1.msra.mxu0 0.0
        %274 = vmatprep.subr.mxu0 0.0
        %275 = vmatpush1.msra.mxu0 0.0
        %276 = vmatprep.subr.mxu0 0.0
        %277 = vmatpush1.msra.mxu0 0.0
        %278 = vmatprep.subr.mxu0 0.0
        %279 = vmatpush1.msra.mxu0 0.0
        %280 = vmatprep.subr.mxu0 0.0
        %281 = vmatpush1.msra.mxu0 0.0
        %282 = vmatprep.subr.mxu0 0.0
        %283 = vmatpush1.msra.mxu0 0.0
        %284 = vmatprep.subr.mxu0 0.0
        %285 = vmatpush1.msra.mxu0 0.0
        %286 = vmatprep.subr.mxu0 0.0
        %287 = vmatpush1.msra.mxu0 0.0
        %288 = vmatprep.subr.mxu0 0.0
        %289 = vmatpush1.msra.mxu0 0.0
        %290 = vmatprep.subr.mxu0 0.0
        %291 = vmatpush1.msra.mxu0 0.0
        %292 = vmatprep.subr.mxu0 0.0
        %293 = vmatpush1.msra.mxu0 0.0
        %294 = vmatprep.subr.mxu0 0.0
        %295 = vmatpush1.msra.mxu0 0.0
        %296 = vmatprep.subr.mxu0 0.0
        %297 = vmatpush1.msra.mxu0 0.0
        %298 = vmatprep.subr.mxu0 0.0
        %299 = vmatpush1.msra.mxu0 0.0
        %300 = vmatprep.subr.mxu0 0.0
        %301 = vmatpush1.msra.mxu0 0.0
        %302 = vmatprep.subr.mxu0 0.0
        %303 = vmatpush1.msra.mxu0 0.0
        %304 = vmatprep.subr.mxu0 0.0
        %305 = vmatpush1.msra.mxu0 0.0
        %306 = vmatprep.subr.mxu0 0.0
        %307 = vmatpush1.msra.mxu0 0.0
        %308 = vmatprep.subr.mxu0 0.0
        %309 = vmatpush1.msra.mxu0 0.0
        %310 = vmatprep.subr.mxu0 0.0
        %311 = vmatpush1.msra.mxu0 0.0
        %312 = vmatprep.subr.mxu0 0.0
        %313 = vmatpush1.msra.mxu0 0.0
        %314 = vmatprep.mubr.f32.mxu0 0.0
        %315 = vmatmul.mubr.f32.gmra.mrb[0].mxu0 %v248
        %v316 = vpop.f32.mrb[0].mxu0
        %v317 = vadd.f32 0.0, %v316
        %v318 = vpop.f32.mrb[0].mxu0
        %v319 = vadd.f32 0.0, %v318
        %320 = vdwg.mxu0
        %v322 = vsel %vm246, %v221, 0
        %324 = vmatprep.subr.mxu0 %v220
        %325 = vmatpush1.msra.mxu0 %v219
        %326 = vmatprep.subr.mxu0 0.0
        %327 = vmatpush1.msra.mxu0 0.0
        %328 = vmatprep.subr.mxu0 0.0
        %329 = vmatpush1.msra.mxu0 0.0
        %330 = vmatprep.subr.mxu0 0.0
        %331 = vmatpush1.msra.mxu0 0.0
        %332 = vmatprep.subr.mxu0 0.0
        %333 = vmatpush1.msra.mxu0 0.0
        %334 = vmatprep.subr.mxu0 0.0
        %335 = vmatpush1.msra.mxu0 0.0
        %336 = vmatprep.subr.mxu0 0.0
        %337 = vmatpush1.msra.mxu0 0.0
        %338 = vmatprep.subr.mxu0 0.0
        %339 = vmatpush1.msra.mxu0 0.0
        %340 = vmatprep.subr.mxu0 0.0
        %341 = vmatpush1.msra.mxu0 0.0
        %342 = vmatprep.subr.mxu0 0.0
        %343 = vmatpush1.msra.mxu0 0.0
        %344 = vmatprep.subr.mxu0 0.0
        %345 = vmatpush1.msra.mxu0 0.0
        %346 = vmatprep.subr.mxu0 0.0
        %347 = vmatpush1.msra.mxu0 0.0
        %348 = vmatprep.subr.mxu0 0.0
        %349 = vmatpush1.msra.mxu0 0.0
        %350 = vmatprep.subr.mxu0 0.0
        %351 = vmatpush1.msra.mxu0 0.0
        %352 = vmatprep.subr.mxu0 0.0
        %353 = vmatpush1.msra.mxu0 0.0
        %354 = vmatprep.subr.mxu0 0.0
        %355 = vmatpush1.msra.mxu0 0.0
        %356 = vmatprep.subr.mxu0 0.0
        %357 = vmatpush1.msra.mxu0 0.0
        %358 = vmatprep.subr.mxu0 0.0
        %359 = vmatpush1.msra.mxu0 0.0
        %360 = vmatprep.subr.mxu0 0.0
        %361 = vmatpush1.msra.mxu0 0.0
        %362 = vmatprep.subr.mxu0 0.0
        %363 = vmatpush1.msra.mxu0 0.0
        %364 = vmatprep.subr.mxu0 0.0
        %365 = vmatpush1.msra.mxu0 0.0
        %366 = vmatprep.subr.mxu0 0.0
        %367 = vmatpush1.msra.mxu0 0.0
        %368 = vmatprep.subr.mxu0 0.0
        %369 = vmatpush1.msra.mxu0 0.0
        %370 = vmatprep.subr.mxu0 0.0
        %371 = vmatpush1.msra.mxu0 0.0
        %372 = vmatprep.subr.mxu0 0.0
        %373 = vmatpush1.msra.mxu0 0.0
        %374 = vmatprep.subr.mxu0 0.0
        %375 = vmatpush1.msra.mxu0 0.0
        %376 = vmatprep.subr.mxu0 0.0
        %377 = vmatpush1.msra.mxu0 0.0
        %378 = vmatprep.subr.mxu0 0.0
        %379 = vmatpush1.msra.mxu0 0.0
        %380 = vmatprep.subr.mxu0 0.0
        %381 = vmatpush1.msra.mxu0 0.0
        %382 = vmatprep.subr.mxu0 0.0
        %383 = vmatpush1.msra.mxu0 0.0
        %384 = vmatprep.subr.mxu0 0.0
        %385 = vmatpush1.msra.mxu0 0.0
        %386 = vmatprep.subr.mxu0 0.0
        %387 = vmatpush1.msra.mxu0 0.0
        %388 = vmatprep.mubr.f32.mxu0 0.0
        %389 = vmatmul.mubr.f32.gmra.mrb[0].mxu0 %v322
        %v390 = vpop.f32.mrb[0].mxu0
        %v391 = vadd.f32 %v317, %v390
        %v392 = vpop.f32.mrb[0].mxu0
        %v393 = vadd.f32 %v319, %v392
        %394 = vdwg.mxu0
        %395 = vrot.lane.b32.xlu0 %v196, 15
        %v396 = vpop.permute.xlu0 %395
        %397 = vrot.lane.b32.xlu0 %v197, 15
        %v398 = vpop.permute.xlu0 %397
        %vm399 = vcmp.lt.s32.totalorder %v203, 15
        %v400 = vsel %vm399, %v396, %v398
        %v401 = vsel %vm399, %v398, %v396
        %s402 = scalar_lea.vmem %s3, 4
        %v403 = vld [vmem:[%s402] sm:$0x3]
        %v405 = vlaneseq
        %v406 = vshrl.u32 %v405, 7
        %v407 = vsub.s32 0, %v406
        %v408 = vrot.slane %v403, %v407
        %v409 = vlaneseq
        %v410 = vshrl.u32 %v409, 7
        %v411 = vsub.s32 1, %v410
        %v412 = vrot.slane %v403, %v411
        %v415 = vmul.f32 %v401, %v408
        %v416 = vmul.f32 %v400, %v412
        %s417 = scalar_lea.vmem %s1, 16
        %v418 = vld [vmem:[%s417] sm:$0xff]
        %v420 = vsel %vm246, %v418, 0
        %422 = vmatprep.subr.mxu0 %v416
        %423 = vmatpush1.msra.mxu0 %v415
        %424 = vmatprep.subr.mxu0 0.0
        %425 = vmatpush1.msra.mxu0 0.0
        %426 = vmatprep.subr.mxu0 0.0
        %427 = vmatpush1.msra.mxu0 0.0
        %428 = vmatprep.subr.mxu0 0.0
        %429 = vmatpush1.msra.mxu0 0.0
        %430 = vmatprep.subr.mxu0 0.0
        %431 = vmatpush1.msra.mxu0 0.0
        %432 = vmatprep.subr.mxu0 0.0
        %433 = vmatpush1.msra.mxu0 0.0
        %434 = vmatprep.subr.mxu0 0.0
        %435 = vmatpush1.msra.mxu0 0.0
        %436 = vmatprep.subr.mxu0 0.0
        %437 = vmatpush1.msra.mxu0 0.0
        %438 = vmatprep.subr.mxu0 0.0
        %439 = vmatpush1.msra.mxu0 0.0
        %440 = vmatprep.subr.mxu0 0.0
        %441 = vmatpush1.msra.mxu0 0.0
        %442 = vmatprep.subr.mxu0 0.0
        %443 = vmatpush1.msra.mxu0 0.0
        %444 = vmatprep.subr.mxu0 0.0
        %445 = vmatpush1.msra.mxu0 0.0
        %446 = vmatprep.subr.mxu0 0.0
        %447 = vmatpush1.msra.mxu0 0.0
        %448 = vmatprep.subr.mxu0 0.0
        %449 = vmatpush1.msra.mxu0 0.0
        %450 = vmatprep.subr.mxu0 0.0
        %451 = vmatpush1.msra.mxu0 0.0
        %452 = vmatprep.subr.mxu0 0.0
        %453 = vmatpush1.msra.mxu0 0.0
        %454 = vmatprep.subr.mxu0 0.0
        %455 = vmatpush1.msra.mxu0 0.0
        %456 = vmatprep.subr.mxu0 0.0
        %457 = vmatpush1.msra.mxu0 0.0
        %458 = vmatprep.subr.mxu0 0.0
        %459 = vmatpush1.msra.mxu0 0.0
        %460 = vmatprep.subr.mxu0 0.0
        %461 = vmatpush1.msra.mxu0 0.0
        %462 = vmatprep.subr.mxu0 0.0
        %463 = vmatpush1.msra.mxu0 0.0
        %464 = vmatprep.subr.mxu0 0.0
        %465 = vmatpush1.msra.mxu0 0.0
        %466 = vmatprep.subr.mxu0 0.0
        %467 = vmatpush1.msra.mxu0 0.0
        %468 = vmatprep.subr.mxu0 0.0
        %469 = vmatpush1.msra.mxu0 0.0
        %470 = vmatprep.subr.mxu0 0.0
        %471 = vmatpush1.msra.mxu0 0.0
        %472 = vmatprep.subr.mxu0 0.0
        %473 = vmatpush1.msra.mxu0 0.0
        %474 = vmatprep.subr.mxu0 0.0
        %475 = vmatpush1.msra.mxu0 0.0
        %476 = vmatprep.subr.mxu0 0.0
        %477 = vmatpush1.msra.mxu0 0.0
        %478 = vmatprep.subr.mxu0 0.0
        %479 = vmatpush1.msra.mxu0 0.0
        %480 = vmatprep.subr.mxu0 0.0
        %481 = vmatpush1.msra.mxu0 0.0
        %482 = vmatprep.subr.mxu0 0.0
        %483 = vmatpush1.msra.mxu0 0.0
        %484 = vmatprep.subr.mxu0 0.0
        %485 = vmatpush1.msra.mxu0 0.0
        %486 = vmatprep.mubr.f32.mxu0 0.0
        %487 = vmatmul.mubr.f32.gmra.mrb[0].mxu0 %v420
        %v488 = vpop.f32.mrb[0].mxu0
        %v489 = vadd.f32 0.0, %v488
        %v490 = vpop.f32.mrb[0].mxu0
        %v491 = vadd.f32 0.0, %v490
        %492 = vdwg.mxu0
        %v493 = vadd.f32 %v391, %v489
        %v494 = vadd.f32 %v393, %v491
        %495 = vrot.lane.b32.xlu0 %v196, 1
        %v496 = vpop.permute.xlu0 %495
        %497 = vrot.lane.b32.xlu0 %v197, 1
        %v498 = vpop.permute.xlu0 %497
        %vm499 = vcmp.lt.s32.totalorder %v203, 1
        %v500 = vsel %vm499, %v496, %v498
        %v501 = vsel %vm499, %v498, %v496
        %s502 = scalar_lea.vmem %s3, 6
        %v503 = vld [vmem:[%s502] sm:$0x3]
        %v505 = vlaneseq
        %v506 = vshrl.u32 %v505, 7
        %v507 = vsub.s32 0, %v506
        %v508 = vrot.slane %v503, %v507
        %v509 = vlaneseq
        %v510 = vshrl.u32 %v509, 7
        %v511 = vsub.s32 1, %v510
        %v512 = vrot.slane %v503, %v511
        %v515 = vmul.f32 %v501, %v508
        %v516 = vmul.f32 %v500, %v512
        %s517 = scalar_lea.vmem %s1, 24
        %v518 = vld [vmem:[%s517] sm:$0xff]
        %v520 = vsel %vm246, %v518, 0
        %522 = vmatprep.subr.mxu0 %v516
        %523 = vmatpush1.msra.mxu0 %v515
        %524 = vmatprep.subr.mxu0 0.0
        %525 = vmatpush1.msra.mxu0 0.0
        %526 = vmatprep.subr.mxu0 0.0
        %527 = vmatpush1.msra.mxu0 0.0
        %528 = vmatprep.subr.mxu0 0.0
        %529 = vmatpush1.msra.mxu0 0.0
        %530 = vmatprep.subr.mxu0 0.0
        %531 = vmatpush1.msra.mxu0 0.0
        %532 = vmatprep.subr.mxu0 0.0
        %533 = vmatpush1.msra.mxu0 0.0
        %534 = vmatprep.subr.mxu0 0.0
        %535 = vmatpush1.msra.mxu0 0.0
        %536 = vmatprep.subr.mxu0 0.0
        %537 = vmatpush1.msra.mxu0 0.0
        %538 = vmatprep.subr.mxu0 0.0
        %539 = vmatpush1.msra.mxu0 0.0
        %540 = vmatprep.subr.mxu0 0.0
        %541 = vmatpush1.msra.mxu0 0.0
        %542 = vmatprep.subr.mxu0 0.0
        %543 = vmatpush1.msra.mxu0 0.0
        %544 = vmatprep.subr.mxu0 0.0
        %545 = vmatpush1.msra.mxu0 0.0
        %546 = vmatprep.subr.mxu0 0.0
        %547 = vmatpush1.msra.mxu0 0.0
        %548 = vmatprep.subr.mxu0 0.0
        %549 = vmatpush1.msra.mxu0 0.0
        %550 = vmatprep.subr.mxu0 0.0
        %551 = vmatpush1.msra.mxu0 0.0
        %552 = vmatprep.subr.mxu0 0.0
        %553 = vmatpush1.msra.mxu0 0.0
        %554 = vmatprep.subr.mxu0 0.0
        %555 = vmatpush1.msra.mxu0 0.0
        %556 = vmatprep.subr.mxu0 0.0
        %557 = vmatpush1.msra.mxu0 0.0
        %558 = vmatprep.subr.mxu0 0.0
        %559 = vmatpush1.msra.mxu0 0.0
        %560 = vmatprep.subr.mxu0 0.0
        %561 = vmatpush1.msra.mxu0 0.0
        %562 = vmatprep.subr.mxu0 0.0
        %563 = vmatpush1.msra.mxu0 0.0
        %564 = vmatprep.subr.mxu0 0.0
        %565 = vmatpush1.msra.mxu0 0.0
        %566 = vmatprep.subr.mxu0 0.0
        %567 = vmatpush1.msra.mxu0 0.0
        %568 = vmatprep.subr.mxu0 0.0
        %569 = vmatpush1.msra.mxu0 0.0
        %570 = vmatprep.subr.mxu0 0.0
        %571 = vmatpush1.msra.mxu0 0.0
        %572 = vmatprep.subr.mxu0 0.0
        %573 = vmatpush1.msra.mxu0 0.0
        %574 = vmatprep.subr.mxu0 0.0
        %575 = vmatpush1.msra.mxu0 0.0
        %576 = vmatprep.subr.mxu0 0.0
        %577 = vmatpush1.msra.mxu0 0.0
        %578 = vmatprep.subr.mxu0 0.0
        %579 = vmatpush1.msra.mxu0 0.0
        %580 = vmatprep.subr.mxu0 0.0
        %581 = vmatpush1.msra.mxu0 0.0
        %582 = vmatprep.subr.mxu0 0.0
        %583 = vmatpush1.msra.mxu0 0.0
        %584 = vmatprep.subr.mxu0 0.0
        %585 = vmatpush1.msra.mxu0 0.0
        %586 = vmatprep.mubr.f32.mxu0 0.0
        %587 = vmatmul.mubr.f32.gmra.mrb[0].mxu0 %v520
        %v588 = vpop.f32.mrb[0].mxu0
        %v589 = vadd.f32 0.0, %v588
        %v590 = vpop.f32.mrb[0].mxu0
        %v591 = vadd.f32 0.0, %v590
        %592 = vdwg.mxu0
        %v593 = vadd.f32 %v493, %v589
        %v594 = vadd.f32 %v494, %v591
        %s595 = scalar_lea.vmem %s1, 32
        %v596 = vld [vmem:[%s595] sm:$0xff]
        %v598 = vsel %vm246, %v596, 0
        %600 = vmatprep.subr.mxu0 %v197
        %601 = vmatpush1.msra.mxu0 %v196
        %602 = vmatprep.subr.mxu0 0.0
        %603 = vmatpush1.msra.mxu0 0.0
        %604 = vmatprep.subr.mxu0 0.0
        %605 = vmatpush1.msra.mxu0 0.0
        %606 = vmatprep.subr.mxu0 0.0
        %607 = vmatpush1.msra.mxu0 0.0
        %608 = vmatprep.subr.mxu0 0.0
        %609 = vmatpush1.msra.mxu0 0.0
        %610 = vmatprep.subr.mxu0 0.0
        %611 = vmatpush1.msra.mxu0 0.0
        %612 = vmatprep.subr.mxu0 0.0
        %613 = vmatpush1.msra.mxu0 0.0
        %614 = vmatprep.subr.mxu0 0.0
        %615 = vmatpush1.msra.mxu0 0.0
        %616 = vmatprep.subr.mxu0 0.0
        %617 = vmatpush1.msra.mxu0 0.0
        %618 = vmatprep.subr.mxu0 0.0
        %619 = vmatpush1.msra.mxu0 0.0
        %620 = vmatprep.subr.mxu0 0.0
        %621 = vmatpush1.msra.mxu0 0.0
        %622 = vmatprep.subr.mxu0 0.0
        %623 = vmatpush1.msra.mxu0 0.0
        %624 = vmatprep.subr.mxu0 0.0
        %625 = vmatpush1.msra.mxu0 0.0
        %626 = vmatprep.subr.mxu0 0.0
        %627 = vmatpush1.msra.mxu0 0.0
        %628 = vmatprep.subr.mxu0 0.0
        %629 = vmatpush1.msra.mxu0 0.0
        %630 = vmatprep.subr.mxu0 0.0
        %631 = vmatpush1.msra.mxu0 0.0
        %632 = vmatprep.subr.mxu0 0.0
        %633 = vmatpush1.msra.mxu0 0.0
        %634 = vmatprep.subr.mxu0 0.0
        %635 = vmatpush1.msra.mxu0 0.0
        %636 = vmatprep.subr.mxu0 0.0
        %637 = vmatpush1.msra.mxu0 0.0
        %638 = vmatprep.subr.mxu0 0.0
        %639 = vmatpush1.msra.mxu0 0.0
        %640 = vmatprep.subr.mxu0 0.0
        %641 = vmatpush1.msra.mxu0 0.0
        %642 = vmatprep.subr.mxu0 0.0
        %643 = vmatpush1.msra.mxu0 0.0
        %644 = vmatprep.subr.mxu0 0.0
        %645 = vmatpush1.msra.mxu0 0.0
        %646 = vmatprep.subr.mxu0 0.0
        %647 = vmatpush1.msra.mxu0 0.0
        %648 = vmatprep.subr.mxu0 0.0
        %649 = vmatpush1.msra.mxu0 0.0
        %650 = vmatprep.subr.mxu0 0.0
        %651 = vmatpush1.msra.mxu0 0.0
        %652 = vmatprep.subr.mxu0 0.0
        %653 = vmatpush1.msra.mxu0 0.0
        %654 = vmatprep.subr.mxu0 0.0
        %655 = vmatpush1.msra.mxu0 0.0
        %656 = vmatprep.subr.mxu0 0.0
        %657 = vmatpush1.msra.mxu0 0.0
        %658 = vmatprep.subr.mxu0 0.0
        %659 = vmatpush1.msra.mxu0 0.0
        %660 = vmatprep.subr.mxu0 0.0
        %661 = vmatpush1.msra.mxu0 0.0
        %662 = vmatprep.subr.mxu0 0.0
        %663 = vmatpush1.msra.mxu0 0.0
        %664 = vmatprep.mubr.f32.mxu0 0.0
        %665 = vmatmul.mubr.f32.gmra.mrb[0].mxu0 %v598
        %v666 = vpop.f32.mrb[0].mxu0
        %v667 = vadd.f32 0.0, %v666
        %v668 = vpop.f32.mrb[0].mxu0
        %v669 = vadd.f32 0.0, %v668
        %670 = vdwg.mxu0
        %v671 = vadd.f32 %v593, %v667
        %v672 = vadd.f32 %v594, %v669
        %673 = vrot.lane.b32.xlu0 %v196, 127
        %v674 = vpop.permute.xlu0 %673
        %675 = vrot.lane.b32.xlu0 %v197, 127
        %v676 = vpop.permute.xlu0 %675
        %vm677 = vcmp.lt.s32.totalorder %v203, 127
        %v678 = vsel %vm677, %v674, %v676
        %v679 = vsel %vm677, %v676, %v674
        %s680 = scalar_lea.vmem %s3, 10
        %v681 = vld [vmem:[%s680] sm:$0x3]
        %v683 = vlaneseq
        %v684 = vshrl.u32 %v683, 7
        %v685 = vsub.s32 0, %v684
        %v686 = vrot.slane %v681, %v685
        %v687 = vlaneseq
        %v688 = vshrl.u32 %v687, 7
        %v689 = vsub.s32 1, %v688
        %v690 = vrot.slane %v681, %v689
        %v693 = vmul.f32 %v678, %v686
        %v694 = vmul.f32 %v679, %v690
        %s695 = scalar_lea.vmem %s1, 40
        %v696 = vld [vmem:[%s695] sm:$0xff]
        %v698 = vsel %vm246, %v696, 0
        %700 = vmatprep.subr.mxu0 %v694
        %701 = vmatpush1.msra.mxu0 %v693
        %702 = vmatprep.subr.mxu0 0.0
        %703 = vmatpush1.msra.mxu0 0.0
        %704 = vmatprep.subr.mxu0 0.0
        %705 = vmatpush1.msra.mxu0 0.0
        %706 = vmatprep.subr.mxu0 0.0
        %707 = vmatpush1.msra.mxu0 0.0
        %708 = vmatprep.subr.mxu0 0.0
        %709 = vmatpush1.msra.mxu0 0.0
        %710 = vmatprep.subr.mxu0 0.0
        %711 = vmatpush1.msra.mxu0 0.0
        %712 = vmatprep.subr.mxu0 0.0
        %713 = vmatpush1.msra.mxu0 0.0
        %714 = vmatprep.subr.mxu0 0.0
        %715 = vmatpush1.msra.mxu0 0.0
        %716 = vmatprep.subr.mxu0 0.0
        %717 = vmatpush1.msra.mxu0 0.0
        %718 = vmatprep.subr.mxu0 0.0
        %719 = vmatpush1.msra.mxu0 0.0
        %720 = vmatprep.subr.mxu0 0.0
        %721 = vmatpush1.msra.mxu0 0.0
        %722 = vmatprep.subr.mxu0 0.0
        %723 = vmatpush1.msra.mxu0 0.0
        %724 = vmatprep.subr.mxu0 0.0
        %725 = vmatpush1.msra.mxu0 0.0
        %726 = vmatprep.subr.mxu0 0.0
        %727 = vmatpush1.msra.mxu0 0.0
        %728 = vmatprep.subr.mxu0 0.0
        %729 = vmatpush1.msra.mxu0 0.0
        %730 = vmatprep.subr.mxu0 0.0
        %731 = vmatpush1.msra.mxu0 0.0
        %732 = vmatprep.subr.mxu0 0.0
        %733 = vmatpush1.msra.mxu0 0.0
        %734 = vmatprep.subr.mxu0 0.0
        %735 = vmatpush1.msra.mxu0 0.0
        %736 = vmatprep.subr.mxu0 0.0
        %737 = vmatpush1.msra.mxu0 0.0
        %738 = vmatprep.subr.mxu0 0.0
        %739 = vmatpush1.msra.mxu0 0.0
        %740 = vmatprep.subr.mxu0 0.0
        %741 = vmatpush1.msra.mxu0 0.0
        %742 = vmatprep.subr.mxu0 0.0
        %743 = vmatpush1.msra.mxu0 0.0
        %744 = vmatprep.subr.mxu0 0.0
        %745 = vmatpush1.msra.mxu0 0.0
        %746 = vmatprep.subr.mxu0 0.0
        %747 = vmatpush1.msra.mxu0 0.0
        %748 = vmatprep.subr.mxu0 0.0
        %749 = vmatpush1.msra.mxu0 0.0
        %750 = vmatprep.subr.mxu0 0.0
        %751 = vmatpush1.msra.mxu0 0.0
        %752 = vmatprep.subr.mxu0 0.0
        %753 = vmatpush1.msra.mxu0 0.0
        %754 = vmatprep.subr.mxu0 0.0
        %755 = vmatpush1.msra.mxu0 0.0
        %756 = vmatprep.subr.mxu0 0.0
        %757 = vmatpush1.msra.mxu0 0.0
        %758 = vmatprep.subr.mxu0 0.0
        %759 = vmatpush1.msra.mxu0 0.0
        %760 = vmatprep.subr.mxu0 0.0
        %761 = vmatpush1.msra.mxu0 0.0
        %762 = vmatprep.subr.mxu0 0.0
        %763 = vmatpush1.msra.mxu0 0.0
        %764 = vmatprep.mubr.f32.mxu0 0.0
        %765 = vmatmul.mubr.f32.gmra.mrb[0].mxu0 %v698
        %v766 = vpop.f32.mrb[0].mxu0
        %v767 = vadd.f32 0.0, %v766
        %v768 = vpop.f32.mrb[0].mxu0
        %v769 = vadd.f32 0.0, %v768
        %770 = vdwg.mxu0
        %v771 = vadd.f32 %v671, %v767
        %v772 = vadd.f32 %v672, %v769
        %773 = vrot.lane.b32.xlu0 %v196, 113
        %v774 = vpop.permute.xlu0 %773
        %775 = vrot.lane.b32.xlu0 %v197, 113
        %v776 = vpop.permute.xlu0 %775
        %vm777 = vcmp.lt.s32.totalorder %v203, 113
        %v778 = vsel %vm777, %v774, %v776
        %v779 = vsel %vm777, %v776, %v774
        %s780 = scalar_lea.vmem %s3, 12
        %v781 = vld [vmem:[%s780] sm:$0x3]
        %v783 = vlaneseq
        %v784 = vshrl.u32 %v783, 7
        %v785 = vsub.s32 0, %v784
        %v786 = vrot.slane %v781, %v785
        %v787 = vlaneseq
        %v788 = vshrl.u32 %v787, 7
        %v789 = vsub.s32 1, %v788
        %v790 = vrot.slane %v781, %v789
        %v793 = vmul.f32 %v778, %v786
        %v794 = vmul.f32 %v779, %v790
        %s795 = scalar_lea.vmem %s1, 48
        %v796 = vld [vmem:[%s795] sm:$0xff]
        %v798 = vsel %vm246, %v796, 0
        %800 = vmatprep.subr.mxu0 %v794
        %801 = vmatpush1.msra.mxu0 %v793
        %802 = vmatprep.subr.mxu0 0.0
        %803 = vmatpush1.msra.mxu0 0.0
        %804 = vmatprep.subr.mxu0 0.0
        %805 = vmatpush1.msra.mxu0 0.0
        %806 = vmatprep.subr.mxu0 0.0
        %807 = vmatpush1.msra.mxu0 0.0
        %808 = vmatprep.subr.mxu0 0.0
        %809 = vmatpush1.msra.mxu0 0.0
        %810 = vmatprep.subr.mxu0 0.0
        %811 = vmatpush1.msra.mxu0 0.0
        %812 = vmatprep.subr.mxu0 0.0
        %813 = vmatpush1.msra.mxu0 0.0
        %814 = vmatprep.subr.mxu0 0.0
        %815 = vmatpush1.msra.mxu0 0.0
        %816 = vmatprep.subr.mxu0 0.0
        %817 = vmatpush1.msra.mxu0 0.0
        %818 = vmatprep.subr.mxu0 0.0
        %819 = vmatpush1.msra.mxu0 0.0
        %820 = vmatprep.subr.mxu0 0.0
        %821 = vmatpush1.msra.mxu0 0.0
        %822 = vmatprep.subr.mxu0 0.0
        %823 = vmatpush1.msra.mxu0 0.0
        %824 = vmatprep.subr.mxu0 0.0
        %825 = vmatpush1.msra.mxu0 0.0
        %826 = vmatprep.subr.mxu0 0.0
        %827 = vmatpush1.msra.mxu0 0.0
        %828 = vmatprep.subr.mxu0 0.0
        %829 = vmatpush1.msra.mxu0 0.0
        %830 = vmatprep.subr.mxu0 0.0
        %831 = vmatpush1.msra.mxu0 0.0
        %832 = vmatprep.subr.mxu0 0.0
        %833 = vmatpush1.msra.mxu0 0.0
        %834 = vmatprep.subr.mxu0 0.0
        %835 = vmatpush1.msra.mxu0 0.0
        %836 = vmatprep.subr.mxu0 0.0
        %837 = vmatpush1.msra.mxu0 0.0
        %838 = vmatprep.subr.mxu0 0.0
        %839 = vmatpush1.msra.mxu0 0.0
        %840 = vmatprep.subr.mxu0 0.0
        %841 = vmatpush1.msra.mxu0 0.0
        %842 = vmatprep.subr.mxu0 0.0
        %843 = vmatpush1.msra.mxu0 0.0
        %844 = vmatprep.subr.mxu0 0.0
        %845 = vmatpush1.msra.mxu0 0.0
        %846 = vmatprep.subr.mxu0 0.0
        %847 = vmatpush1.msra.mxu0 0.0
        %848 = vmatprep.subr.mxu0 0.0
        %849 = vmatpush1.msra.mxu0 0.0
        %850 = vmatprep.subr.mxu0 0.0
        %851 = vmatpush1.msra.mxu0 0.0
        %852 = vmatprep.subr.mxu0 0.0
        %853 = vmatpush1.msra.mxu0 0.0
        %854 = vmatprep.subr.mxu0 0.0
        %855 = vmatpush1.msra.mxu0 0.0
        %856 = vmatprep.subr.mxu0 0.0
        %857 = vmatpush1.msra.mxu0 0.0
        %858 = vmatprep.subr.mxu0 0.0
        %859 = vmatpush1.msra.mxu0 0.0
        %860 = vmatprep.subr.mxu0 0.0
        %861 = vmatpush1.msra.mxu0 0.0
        %862 = vmatprep.subr.mxu0 0.0
        %863 = vmatpush1.msra.mxu0 0.0
        %864 = vmatprep.mubr.f32.mxu0 0.0
        %865 = vmatmul.mubr.f32.gmra.mrb[0].mxu0 %v798
        %v866 = vpop.f32.mrb[0].mxu0
        %v867 = vadd.f32 0.0, %v866
        %v868 = vpop.f32.mrb[0].mxu0
        %v869 = vadd.f32 0.0, %v868
        %870 = vdwg.mxu0
        %v871 = vadd.f32 %v771, %v867
        %v872 = vadd.f32 %v772, %v869
        %873 = vrot.lane.b32.xlu0 %v196, 112
        %v874 = vpop.permute.xlu0 %873
        %875 = vrot.lane.b32.xlu0 %v197, 112
        %v876 = vpop.permute.xlu0 %875
        %vm877 = vcmp.lt.s32.totalorder %v203, 112
        %v878 = vsel %vm877, %v874, %v876
        %v879 = vsel %vm877, %v876, %v874
        %s880 = scalar_lea.vmem %s3, 14
        %v881 = vld [vmem:[%s880] sm:$0x3]
        %v883 = vlaneseq
        %v884 = vshrl.u32 %v883, 7
        %v885 = vsub.s32 0, %v884
        %v886 = vrot.slane %v881, %v885
        %v887 = vlaneseq
        %v888 = vshrl.u32 %v887, 7
        %v889 = vsub.s32 1, %v888
        %v890 = vrot.slane %v881, %v889
        %v893 = vmul.f32 %v878, %v886
        %v894 = vmul.f32 %v879, %v890
        %s895 = scalar_lea.vmem %s1, 56
        %v896 = vld [vmem:[%s895] sm:$0xff]
        %v898 = vsel %vm246, %v896, 0
        %900 = vmatprep.subr.mxu0 %v894
        %901 = vmatpush1.msra.mxu0 %v893
        %902 = vmatprep.subr.mxu0 0.0
        %903 = vmatpush1.msra.mxu0 0.0
        %904 = vmatprep.subr.mxu0 0.0
        %905 = vmatpush1.msra.mxu0 0.0
        %906 = vmatprep.subr.mxu0 0.0
        %907 = vmatpush1.msra.mxu0 0.0
        %908 = vmatprep.subr.mxu0 0.0
        %909 = vmatpush1.msra.mxu0 0.0
        %910 = vmatprep.subr.mxu0 0.0
        %911 = vmatpush1.msra.mxu0 0.0
        %912 = vmatprep.subr.mxu0 0.0
        %913 = vmatpush1.msra.mxu0 0.0
        %914 = vmatprep.subr.mxu0 0.0
        %915 = vmatpush1.msra.mxu0 0.0
        %916 = vmatprep.subr.mxu0 0.0
        %917 = vmatpush1.msra.mxu0 0.0
        %918 = vmatprep.subr.mxu0 0.0
        %919 = vmatpush1.msra.mxu0 0.0
        %920 = vmatprep.subr.mxu0 0.0
        %921 = vmatpush1.msra.mxu0 0.0
        %922 = vmatprep.subr.mxu0 0.0
        %923 = vmatpush1.msra.mxu0 0.0
        %924 = vmatprep.subr.mxu0 0.0
        %925 = vmatpush1.msra.mxu0 0.0
        %926 = vmatprep.subr.mxu0 0.0
        %927 = vmatpush1.msra.mxu0 0.0
        %928 = vmatprep.subr.mxu0 0.0
        %929 = vmatpush1.msra.mxu0 0.0
        %930 = vmatprep.subr.mxu0 0.0
        %931 = vmatpush1.msra.mxu0 0.0
        %932 = vmatprep.subr.mxu0 0.0
        %933 = vmatpush1.msra.mxu0 0.0
        %934 = vmatprep.subr.mxu0 0.0
        %935 = vmatpush1.msra.mxu0 0.0
        %936 = vmatprep.subr.mxu0 0.0
        %937 = vmatpush1.msra.mxu0 0.0
        %938 = vmatprep.subr.mxu0 0.0
        %939 = vmatpush1.msra.mxu0 0.0
        %940 = vmatprep.subr.mxu0 0.0
        %941 = vmatpush1.msra.mxu0 0.0
        %942 = vmatprep.subr.mxu0 0.0
        %943 = vmatpush1.msra.mxu0 0.0
        %944 = vmatprep.subr.mxu0 0.0
        %945 = vmatpush1.msra.mxu0 0.0
        %946 = vmatprep.subr.mxu0 0.0
        %947 = vmatpush1.msra.mxu0 0.0
        %948 = vmatprep.subr.mxu0 0.0
        %949 = vmatpush1.msra.mxu0 0.0
        %950 = vmatprep.subr.mxu0 0.0
        %951 = vmatpush1.msra.mxu0 0.0
        %952 = vmatprep.subr.mxu0 0.0
        %953 = vmatpush1.msra.mxu0 0.0
        %954 = vmatprep.subr.mxu0 0.0
        %955 = vmatpush1.msra.mxu0 0.0
        %956 = vmatprep.subr.mxu0 0.0
        %957 = vmatpush1.msra.mxu0 0.0
        %958 = vmatprep.subr.mxu0 0.0
        %959 = vmatpush1.msra.mxu0 0.0
        %960 = vmatprep.subr.mxu0 0.0
        %961 = vmatpush1.msra.mxu0 0.0
        %962 = vmatprep.subr.mxu0 0.0
        %963 = vmatpush1.msra.mxu0 0.0
        %964 = vmatprep.mubr.f32.mxu0 0.0
        %965 = vmatmul.mubr.f32.gmra.mrb[0].mxu0 %v898
        %v966 = vpop.f32.mrb[0].mxu0
        %v967 = vadd.f32 0.0, %v966
        %v968 = vpop.f32.mrb[0].mxu0
        %v969 = vadd.f32 0.0, %v968
        %970 = vdwg.mxu0
        %v971 = vadd.f32 %v871, %v967
        %v972 = vadd.f32 %v872, %v969
        %973 = vrot.lane.b32.xlu0 %v196, 111
        %v974 = vpop.permute.xlu0 %973
        %975 = vrot.lane.b32.xlu0 %v197, 111
        %v976 = vpop.permute.xlu0 %975
        %vm977 = vcmp.lt.s32.totalorder %v203, 111
        %v978 = vsel %vm977, %v974, %v976
        %v979 = vsel %vm977, %v976, %v974
        %s980 = scalar_lea.vmem %s3, 16
        %v981 = vld [vmem:[%s980] sm:$0x3]
        %v983 = vlaneseq
        %v984 = vshrl.u32 %v983, 7
        %v985 = vsub.s32 0, %v984
        %v986 = vrot.slane %v981, %v985
        %v987 = vlaneseq
        %v988 = vshrl.u32 %v987, 7
        %v989 = vsub.s32 1, %v988
        %v990 = vrot.slane %v981, %v989
        %v993 = vmul.f32 %v978, %v986
        %v994 = vmul.f32 %v979, %v990
        %s995 = scalar_lea.vmem %s1, 64
        %v996 = vld [vmem:[%s995] sm:$0xff]
        %v998 = vsel %vm246, %v996, 0
        %1000 = vmatprep.subr.mxu0 %v994
        %1001 = vmatpush1.msra.mxu0 %v993
        %1002 = vmatprep.subr.mxu0 0.0
        %1003 = vmatpush1.msra.mxu0 0.0
        %1004 = vmatprep.subr.mxu0 0.0
        %1005 = vmatpush1.msra.mxu0 0.0
        %1006 = vmatprep.subr.mxu0 0.0
        %1007 = vmatpush1.msra.mxu0 0.0
        %1008 = vmatprep.subr.mxu0 0.0
        %1009 = vmatpush1.msra.mxu0 0.0
        %1010 = vmatprep.subr.mxu0 0.0
        %1011 = vmatpush1.msra.mxu0 0.0
        %1012 = vmatprep.subr.mxu0 0.0
        %1013 = vmatpush1.msra.mxu0 0.0
        %1014 = vmatprep.subr.mxu0 0.0
        %1015 = vmatpush1.msra.mxu0 0.0
        %1016 = vmatprep.subr.mxu0 0.0
        %1017 = vmatpush1.msra.mxu0 0.0
        %1018 = vmatprep.subr.mxu0 0.0
        %1019 = vmatpush1.msra.mxu0 0.0
        %1020 = vmatprep.subr.mxu0 0.0
        %1021 = vmatpush1.msra.mxu0 0.0
        %1022 = vmatprep.subr.mxu0 0.0
        %1023 = vmatpush1.msra.mxu0 0.0
        %1024 = vmatprep.subr.mxu0 0.0
        %1025 = vmatpush1.msra.mxu0 0.0
        %1026 = vmatprep.subr.mxu0 0.0
        %1027 = vmatpush1.msra.mxu0 0.0
        %1028 = vmatprep.subr.mxu0 0.0
        %1029 = vmatpush1.msra.mxu0 0.0
        %1030 = vmatprep.subr.mxu0 0.0
        %1031 = vmatpush1.msra.mxu0 0.0
        %1032 = vmatprep.subr.mxu0 0.0
        %1033 = vmatpush1.msra.mxu0 0.0
        %1034 = vmatprep.subr.mxu0 0.0
        %1035 = vmatpush1.msra.mxu0 0.0
        %1036 = vmatprep.subr.mxu0 0.0
        %1037 = vmatpush1.msra.mxu0 0.0
        %1038 = vmatprep.subr.mxu0 0.0
        %1039 = vmatpush1.msra.mxu0 0.0
        %1040 = vmatprep.subr.mxu0 0.0
        %1041 = vmatpush1.msra.mxu0 0.0
        %1042 = vmatprep.subr.mxu0 0.0
        %1043 = vmatpush1.msra.mxu0 0.0
        %1044 = vmatprep.subr.mxu0 0.0
        %1045 = vmatpush1.msra.mxu0 0.0
        %1046 = vmatprep.subr.mxu0 0.0
        %1047 = vmatpush1.msra.mxu0 0.0
        %1048 = vmatprep.subr.mxu0 0.0
        %1049 = vmatpush1.msra.mxu0 0.0
        %1050 = vmatprep.subr.mxu0 0.0
        %1051 = vmatpush1.msra.mxu0 0.0
        %1052 = vmatprep.subr.mxu0 0.0
        %1053 = vmatpush1.msra.mxu0 0.0
        %1054 = vmatprep.subr.mxu0 0.0
        %1055 = vmatpush1.msra.mxu0 0.0
        %1056 = vmatprep.subr.mxu0 0.0
        %1057 = vmatpush1.msra.mxu0 0.0
        %1058 = vmatprep.subr.mxu0 0.0
        %1059 = vmatpush1.msra.mxu0 0.0
        %1060 = vmatprep.subr.mxu0 0.0
        %1061 = vmatpush1.msra.mxu0 0.0
        %1062 = vmatprep.subr.mxu0 0.0
        %1063 = vmatpush1.msra.mxu0 0.0
        %1064 = vmatprep.mubr.f32.mxu0 0.0
        %1065 = vmatmul.mubr.f32.gmra.mrb[0].mxu0 %v998
        %v1066 = vpop.f32.mrb[0].mxu0
        %v1067 = vadd.f32 0.0, %v1066
        %v1068 = vpop.f32.mrb[0].mxu0
        %v1069 = vadd.f32 0.0, %v1068
        %1070 = vdwg.mxu0
        %v1071 = vadd.f32 %v971, %v1067
        %v1072 = vadd.f32 %v972, %v1069
        %v1073 = vadd.f32 %v1071, %v1072
        %1074 = vadd.xlane.f32.xlu0 %v1073
        %v1075 = vpop.xlane.xlu0 %1074
        %v1076 = vmul.f32 %v1075, 0.00390625
        %v1077 = vsub.f32 %v1071, %v1076
        %v1078 = vsub.f32 %v1072, %v1076
        %v1079 = vmul.f32 %v1077, %v1077
        %v1080 = vmul.f32 %v1078, %v1078
        %v1081 = vadd.f32 %v1079, %v1080
        %1082 = vadd.xlane.f32.xlu0 %v1081
        %v1083 = vpop.xlane.xlu0 %1082
        %v1084 = vmul.f32 %v1083, 0.00390625
        %v1085 = vadd.f32 %v1084, 1e-05
        %v1086 = vrsqrt.pop %v1085
        %v1087 = vmul.f32 %v1077, %v1086
        %v1088 = vmul.f32 %v1078, %v1086
        %v1089 = vmax.f32 %v1087, 0.0
        %v1090 = vmax.f32 %v1088, 0.0
        %1091 = vrot.lane.b32.xlu0 %v1089, 17
        %v1092 = vpop.permute.xlu0 %1091
        %1093 = vrot.lane.b32.xlu0 %v1090, 17
        %v1094 = vpop.permute.xlu0 %1093
        %v1095 = vsel %vm204, %v1092, %v1094
        %v1096 = vsel %vm204, %v1094, %v1092
        %v1097 = vmul.f32 %v1096, %v212
        %v1098 = vmul.f32 %v1095, %v216
        %v1099 = vld [vmem:[%s2] sm:$0xff]
        %1100 = vrot.lane.b32.xlu0 %v1089, 16
        %v1101 = vpop.permute.xlu0 %1100
        %1102 = vrot.lane.b32.xlu0 %v1090, 16
        %v1103 = vpop.permute.xlu0 %1102
        %v1104 = vsel %vm226, %v1101, %v1103
        %v1105 = vsel %vm226, %v1103, %v1101
        %v1106 = vmul.f32 %v1105, %v235
        %v1107 = vmul.f32 %v1104, %v239
        %s1108 = scalar_lea.vmem %s2, 8
        %v1109 = vld [vmem:[%s1108] sm:$0xff]
        %v1111 = vsel %vm246, %v1109, 0
        %1113 = vmatprep.subr.mxu0 %v1107
        %1114 = vmatpush1.msra.mxu0 %v1106
        %1115 = vmatprep.subr.mxu0 0.0
        %1116 = vmatpush1.msra.mxu0 0.0
        %1117 = vmatprep.subr.mxu0 0.0
        %1118 = vmatpush1.msra.mxu0 0.0
        %1119 = vmatprep.subr.mxu0 0.0
        %1120 = vmatpush1.msra.mxu0 0.0
        %1121 = vmatprep.subr.mxu0 0.0
        %1122 = vmatpush1.msra.mxu0 0.0
        %1123 = vmatprep.subr.mxu0 0.0
        %1124 = vmatpush1.msra.mxu0 0.0
        %1125 = vmatprep.subr.mxu0 0.0
        %1126 = vmatpush1.msra.mxu0 0.0
        %1127 = vmatprep.subr.mxu0 0.0
        %1128 = vmatpush1.msra.mxu0 0.0
        %1129 = vmatprep.subr.mxu0 0.0
        %1130 = vmatpush1.msra.mxu0 0.0
        %1131 = vmatprep.subr.mxu0 0.0
        %1132 = vmatpush1.msra.mxu0 0.0
        %1133 = vmatprep.subr.mxu0 0.0
        %1134 = vmatpush1.msra.mxu0 0.0
        %1135 = vmatprep.subr.mxu0 0.0
        %1136 = vmatpush1.msra.mxu0 0.0
        %1137 = vmatprep.subr.mxu0 0.0
        %1138 = vmatpush1.msra.mxu0 0.0
        %1139 = vmatprep.subr.mxu0 0.0
        %1140 = vmatpush1.msra.mxu0 0.0
        %1141 = vmatprep.subr.mxu0 0.0
        %1142 = vmatpush1.msra.mxu0 0.0
        %1143 = vmatprep.subr.mxu0 0.0
        %1144 = vmatpush1.msra.mxu0 0.0
        %1145 = vmatprep.subr.mxu0 0.0
        %1146 = vmatpush1.msra.mxu0 0.0
        %1147 = vmatprep.subr.mxu0 0.0
        %1148 = vmatpush1.msra.mxu0 0.0
        %1149 = vmatprep.subr.mxu0 0.0
        %1150 = vmatpush1.msra.mxu0 0.0
        %1151 = vmatprep.subr.mxu0 0.0
        %1152 = vmatpush1.msra.mxu0 0.0
        %1153 = vmatprep.subr.mxu0 0.0
        %1154 = vmatpush1.msra.mxu0 0.0
        %1155 = vmatprep.subr.mxu0 0.0
        %1156 = vmatpush1.msra.mxu0 0.0
        %1157 = vmatprep.subr.mxu0 0.0
        %1158 = vmatpush1.msra.mxu0 0.0
        %1159 = vmatprep.subr.mxu0 0.0
        %1160 = vmatpush1.msra.mxu0 0.0
        %1161 = vmatprep.subr.mxu0 0.0
        %1162 = vmatpush1.msra.mxu0 0.0
        %1163 = vmatprep.subr.mxu0 0.0
        %1164 = vmatpush1.msra.mxu0 0.0
        %1165 = vmatprep.subr.mxu0 0.0
        %1166 = vmatpush1.msra.mxu0 0.0
        %1167 = vmatprep.subr.mxu0 0.0
        %1168 = vmatpush1.msra.mxu0 0.0
        %1169 = vmatprep.subr.mxu0 0.0
        %1170 = vmatpush1.msra.mxu0 0.0
        %1171 = vmatprep.subr.mxu0 0.0
        %1172 = vmatpush1.msra.mxu0 0.0
        %1173 = vmatprep.subr.mxu0 0.0
        %1174 = vmatpush1.msra.mxu0 0.0
        %1175 = vmatprep.subr.mxu0 0.0
        %1176 = vmatpush1.msra.mxu0 0.0
        %1177 = vmatprep.mubr.f32.mxu0 0.0
        %1178 = vmatmul.mubr.f32.gmra.mrb[0].mxu0 %v1111
        %v1179 = vpop.f32.mrb[0].mxu0
        %v1180 = vadd.f32 0.0, %v1179
        %v1181 = vpop.f32.mrb[0].mxu0
        %v1182 = vadd.f32 0.0, %v1181
        %1183 = vdwg.mxu0
        %v1185 = vsel %vm246, %v1099, 0
        %1187 = vmatprep.subr.mxu0 %v1098
        %1188 = vmatpush1.msra.mxu0 %v1097
        %1189 = vmatprep.subr.mxu0 0.0
        %1190 = vmatpush1.msra.mxu0 0.0
        %1191 = vmatprep.subr.mxu0 0.0
        %1192 = vmatpush1.msra.mxu0 0.0
        %1193 = vmatprep.subr.mxu0 0.0
        %1194 = vmatpush1.msra.mxu0 0.0
        %1195 = vmatprep.subr.mxu0 0.0
        %1196 = vmatpush1.msra.mxu0 0.0
        %1197 = vmatprep.subr.mxu0 0.0
        %1198 = vmatpush1.msra.mxu0 0.0
        %1199 = vmatprep.subr.mxu0 0.0
        %1200 = vmatpush1.msra.mxu0 0.0
        %1201 = vmatprep.subr.mxu0 0.0
        %1202 = vmatpush1.msra.mxu0 0.0
        %1203 = vmatprep.subr.mxu0 0.0
        %1204 = vmatpush1.msra.mxu0 0.0
        %1205 = vmatprep.subr.mxu0 0.0
        %1206 = vmatpush1.msra.mxu0 0.0
        %1207 = vmatprep.subr.mxu0 0.0
        %1208 = vmatpush1.msra.mxu0 0.0
        %1209 = vmatprep.subr.mxu0 0.0
        %1210 = vmatpush1.msra.mxu0 0.0
        %1211 = vmatprep.subr.mxu0 0.0
        %1212 = vmatpush1.msra.mxu0 0.0
        %1213 = vmatprep.subr.mxu0 0.0
        %1214 = vmatpush1.msra.mxu0 0.0
        %1215 = vmatprep.subr.mxu0 0.0
        %1216 = vmatpush1.msra.mxu0 0.0
        %1217 = vmatprep.subr.mxu0 0.0
        %1218 = vmatpush1.msra.mxu0 0.0
        %1219 = vmatprep.subr.mxu0 0.0
        %1220 = vmatpush1.msra.mxu0 0.0
        %1221 = vmatprep.subr.mxu0 0.0
        %1222 = vmatpush1.msra.mxu0 0.0
        %1223 = vmatprep.subr.mxu0 0.0
        %1224 = vmatpush1.msra.mxu0 0.0
        %1225 = vmatprep.subr.mxu0 0.0
        %1226 = vmatpush1.msra.mxu0 0.0
        %1227 = vmatprep.subr.mxu0 0.0
        %1228 = vmatpush1.msra.mxu0 0.0
        %1229 = vmatprep.subr.mxu0 0.0
        %1230 = vmatpush1.msra.mxu0 0.0
        %1231 = vmatprep.subr.mxu0 0.0
        %1232 = vmatpush1.msra.mxu0 0.0
        %1233 = vmatprep.subr.mxu0 0.0
        %1234 = vmatpush1.msra.mxu0 0.0
        %1235 = vmatprep.subr.mxu0 0.0
        %1236 = vmatpush1.msra.mxu0 0.0
        %1237 = vmatprep.subr.mxu0 0.0
        %1238 = vmatpush1.msra.mxu0 0.0
        %1239 = vmatprep.subr.mxu0 0.0
        %1240 = vmatpush1.msra.mxu0 0.0
        %1241 = vmatprep.subr.mxu0 0.0
        %1242 = vmatpush1.msra.mxu0 0.0
        %1243 = vmatprep.subr.mxu0 0.0
        %1244 = vmatpush1.msra.mxu0 0.0
        %1245 = vmatprep.subr.mxu0 0.0
        %1246 = vmatpush1.msra.mxu0 0.0
        %1247 = vmatprep.subr.mxu0 0.0
        %1248 = vmatpush1.msra.mxu0 0.0
        %1249 = vmatprep.subr.mxu0 0.0
        %1250 = vmatpush1.msra.mxu0 0.0
        %1251 = vmatprep.mubr.f32.mxu0 0.0
        %1252 = vmatmul.mubr.f32.gmra.mrb[0].mxu0 %v1185
        %v1253 = vpop.f32.mrb[0].mxu0
        %v1254 = vadd.f32 %v1180, %v1253
        %v1255 = vpop.f32.mrb[0].mxu0
        %v1256 = vadd.f32 %v1182, %v1255
        %1257 = vdwg.mxu0
        %1258 = vrot.lane.b32.xlu0 %v1089, 15
        %v1259 = vpop.permute.xlu0 %1258
        %1260 = vrot.lane.b32.xlu0 %v1090, 15
        %v1261 = vpop.permute.xlu0 %1260
        %v1262 = vsel %vm399, %v1259, %v1261
        %v1263 = vsel %vm399, %v1261, %v1259
        %v1264 = vmul.f32 %v1263, %v408
        %v1265 = vmul.f32 %v1262, %v412
        %s1266 = scalar_lea.vmem %s2, 16
        %v1267 = vld [vmem:[%s1266] sm:$0xff]
        %v1269 = vsel %vm246, %v1267, 0
        %1271 = vmatprep.subr.mxu0 %v1265
        %1272 = vmatpush1.msra.mxu0 %v1264
        %1273 = vmatprep.subr.mxu0 0.0
        %1274 = vmatpush1.msra.mxu0 0.0
        %1275 = vmatprep.subr.mxu0 0.0
        %1276 = vmatpush1.msra.mxu0 0.0
        %1277 = vmatprep.subr.mxu0 0.0
        %1278 = vmatpush1.msra.mxu0 0.0
        %1279 = vmatprep.subr.mxu0 0.0
        %1280 = vmatpush1.msra.mxu0 0.0
        %1281 = vmatprep.subr.mxu0 0.0
        %1282 = vmatpush1.msra.mxu0 0.0
        %1283 = vmatprep.subr.mxu0 0.0
        %1284 = vmatpush1.msra.mxu0 0.0
        %1285 = vmatprep.subr.mxu0 0.0
        %1286 = vmatpush1.msra.mxu0 0.0
        %1287 = vmatprep.subr.mxu0 0.0
        %1288 = vmatpush1.msra.mxu0 0.0
        %1289 = vmatprep.subr.mxu0 0.0
        %1290 = vmatpush1.msra.mxu0 0.0
        %1291 = vmatprep.subr.mxu0 0.0
        %1292 = vmatpush1.msra.mxu0 0.0
        %1293 = vmatprep.subr.mxu0 0.0
        %1294 = vmatpush1.msra.mxu0 0.0
        %1295 = vmatprep.subr.mxu0 0.0
        %1296 = vmatpush1.msra.mxu0 0.0
        %1297 = vmatprep.subr.mxu0 0.0
        %1298 = vmatpush1.msra.mxu0 0.0
        %1299 = vmatprep.subr.mxu0 0.0
        %1300 = vmatpush1.msra.mxu0 0.0
        %1301 = vmatprep.subr.mxu0 0.0
        %1302 = vmatpush1.msra.mxu0 0.0
        %1303 = vmatprep.subr.mxu0 0.0
        %1304 = vmatpush1.msra.mxu0 0.0
        %1305 = vmatprep.subr.mxu0 0.0
        %1306 = vmatpush1.msra.mxu0 0.0
        %1307 = vmatprep.subr.mxu0 0.0
        %1308 = vmatpush1.msra.mxu0 0.0
        %1309 = vmatprep.subr.mxu0 0.0
        %1310 = vmatpush1.msra.mxu0 0.0
        %1311 = vmatprep.subr.mxu0 0.0
        %1312 = vmatpush1.msra.mxu0 0.0
        %1313 = vmatprep.subr.mxu0 0.0
        %1314 = vmatpush1.msra.mxu0 0.0
        %1315 = vmatprep.subr.mxu0 0.0
        %1316 = vmatpush1.msra.mxu0 0.0
        %1317 = vmatprep.subr.mxu0 0.0
        %1318 = vmatpush1.msra.mxu0 0.0
        %1319 = vmatprep.subr.mxu0 0.0
        %1320 = vmatpush1.msra.mxu0 0.0
        %1321 = vmatprep.subr.mxu0 0.0
        %1322 = vmatpush1.msra.mxu0 0.0
        %1323 = vmatprep.subr.mxu0 0.0
        %1324 = vmatpush1.msra.mxu0 0.0
        %1325 = vmatprep.subr.mxu0 0.0
        %1326 = vmatpush1.msra.mxu0 0.0
        %1327 = vmatprep.subr.mxu0 0.0
        %1328 = vmatpush1.msra.mxu0 0.0
        %1329 = vmatprep.subr.mxu0 0.0
        %1330 = vmatpush1.msra.mxu0 0.0
        %1331 = vmatprep.subr.mxu0 0.0
        %1332 = vmatpush1.msra.mxu0 0.0
        %1333 = vmatprep.subr.mxu0 0.0
        %1334 = vmatpush1.msra.mxu0 0.0
        %1335 = vmatprep.mubr.f32.mxu0 0.0
        %1336 = vmatmul.mubr.f32.gmra.mrb[0].mxu0 %v1269
        %v1337 = vpop.f32.mrb[0].mxu0
        %v1338 = vadd.f32 0.0, %v1337
        %v1339 = vpop.f32.mrb[0].mxu0
        %v1340 = vadd.f32 0.0, %v1339
        %1341 = vdwg.mxu0
        %v1342 = vadd.f32 %v1254, %v1338
        %v1343 = vadd.f32 %v1256, %v1340
        %1344 = vrot.lane.b32.xlu0 %v1089, 1
        %v1345 = vpop.permute.xlu0 %1344
        %1346 = vrot.lane.b32.xlu0 %v1090, 1
        %v1347 = vpop.permute.xlu0 %1346
        %v1348 = vsel %vm499, %v1345, %v1347
        %v1349 = vsel %vm499, %v1347, %v1345
        %v1350 = vmul.f32 %v1349, %v508
        %v1351 = vmul.f32 %v1348, %v512
        %s1352 = scalar_lea.vmem %s2, 24
        %v1353 = vld [vmem:[%s1352] sm:$0xff]
        %v1355 = vsel %vm246, %v1353, 0
        %1357 = vmatprep.subr.mxu0 %v1351
        %1358 = vmatpush1.msra.mxu0 %v1350
        %1359 = vmatprep.subr.mxu0 0.0
        %1360 = vmatpush1.msra.mxu0 0.0
        %1361 = vmatprep.subr.mxu0 0.0
        %1362 = vmatpush1.msra.mxu0 0.0
        %1363 = vmatprep.subr.mxu0 0.0
        %1364 = vmatpush1.msra.mxu0 0.0
        %1365 = vmatprep.subr.mxu0 0.0
        %1366 = vmatpush1.msra.mxu0 0.0
        %1367 = vmatprep.subr.mxu0 0.0
        %1368 = vmatpush1.msra.mxu0 0.0
        %1369 = vmatprep.subr.mxu0 0.0
        %1370 = vmatpush1.msra.mxu0 0.0
        %1371 = vmatprep.subr.mxu0 0.0
        %1372 = vmatpush1.msra.mxu0 0.0
        %1373 = vmatprep.subr.mxu0 0.0
        %1374 = vmatpush1.msra.mxu0 0.0
        %1375 = vmatprep.subr.mxu0 0.0
        %1376 = vmatpush1.msra.mxu0 0.0
        %1377 = vmatprep.subr.mxu0 0.0
        %1378 = vmatpush1.msra.mxu0 0.0
        %1379 = vmatprep.subr.mxu0 0.0
        %1380 = vmatpush1.msra.mxu0 0.0
        %1381 = vmatprep.subr.mxu0 0.0
        %1382 = vmatpush1.msra.mxu0 0.0
        %1383 = vmatprep.subr.mxu0 0.0
        %1384 = vmatpush1.msra.mxu0 0.0
        %1385 = vmatprep.subr.mxu0 0.0
        %1386 = vmatpush1.msra.mxu0 0.0
        %1387 = vmatprep.subr.mxu0 0.0
        %1388 = vmatpush1.msra.mxu0 0.0
        %1389 = vmatprep.subr.mxu0 0.0
        %1390 = vmatpush1.msra.mxu0 0.0
        %1391 = vmatprep.subr.mxu0 0.0
        %1392 = vmatpush1.msra.mxu0 0.0
        %1393 = vmatprep.subr.mxu0 0.0
        %1394 = vmatpush1.msra.mxu0 0.0
        %1395 = vmatprep.subr.mxu0 0.0
        %1396 = vmatpush1.msra.mxu0 0.0
        %1397 = vmatprep.subr.mxu0 0.0
        %1398 = vmatpush1.msra.mxu0 0.0
        %1399 = vmatprep.subr.mxu0 0.0
        %1400 = vmatpush1.msra.mxu0 0.0
        %1401 = vmatprep.subr.mxu0 0.0
        %1402 = vmatpush1.msra.mxu0 0.0
        %1403 = vmatprep.subr.mxu0 0.0
        %1404 = vmatpush1.msra.mxu0 0.0
        %1405 = vmatprep.subr.mxu0 0.0
        %1406 = vmatpush1.msra.mxu0 0.0
        %1407 = vmatprep.subr.mxu0 0.0
        %1408 = vmatpush1.msra.mxu0 0.0
        %1409 = vmatprep.subr.mxu0 0.0
        %1410 = vmatpush1.msra.mxu0 0.0
        %1411 = vmatprep.subr.mxu0 0.0
        %1412 = vmatpush1.msra.mxu0 0.0
        %1413 = vmatprep.subr.mxu0 0.0
        %1414 = vmatpush1.msra.mxu0 0.0
        %1415 = vmatprep.subr.mxu0 0.0
        %1416 = vmatpush1.msra.mxu0 0.0
        %1417 = vmatprep.subr.mxu0 0.0
        %1418 = vmatpush1.msra.mxu0 0.0
        %1419 = vmatprep.subr.mxu0 0.0
        %1420 = vmatpush1.msra.mxu0 0.0
        %1421 = vmatprep.mubr.f32.mxu0 0.0
        %1422 = vmatmul.mubr.f32.gmra.mrb[0].mxu0 %v1355
        %v1423 = vpop.f32.mrb[0].mxu0
        %v1424 = vadd.f32 0.0, %v1423
        %v1425 = vpop.f32.mrb[0].mxu0
        %v1426 = vadd.f32 0.0, %v1425
        %1427 = vdwg.mxu0
        %v1428 = vadd.f32 %v1342, %v1424
        %v1429 = vadd.f32 %v1343, %v1426
        %s1430 = scalar_lea.vmem %s2, 32
        %v1431 = vld [vmem:[%s1430] sm:$0xff]
        %v1433 = vsel %vm246, %v1431, 0
        %1435 = vmatprep.subr.mxu0 %v1090
        %1436 = vmatpush1.msra.mxu0 %v1089
        %1437 = vmatprep.subr.mxu0 0.0
        %1438 = vmatpush1.msra.mxu0 0.0
        %1439 = vmatprep.subr.mxu0 0.0
        %1440 = vmatpush1.msra.mxu0 0.0
        %1441 = vmatprep.subr.mxu0 0.0
        %1442 = vmatpush1.msra.mxu0 0.0
        %1443 = vmatprep.subr.mxu0 0.0
        %1444 = vmatpush1.msra.mxu0 0.0
        %1445 = vmatprep.subr.mxu0 0.0
        %1446 = vmatpush1.msra.mxu0 0.0
        %1447 = vmatprep.subr.mxu0 0.0
        %1448 = vmatpush1.msra.mxu0 0.0
        %1449 = vmatprep.subr.mxu0 0.0
        %1450 = vmatpush1.msra.mxu0 0.0
        %1451 = vmatprep.subr.mxu0 0.0
        %1452 = vmatpush1.msra.mxu0 0.0
        %1453 = vmatprep.subr.mxu0 0.0
        %1454 = vmatpush1.msra.mxu0 0.0
        %1455 = vmatprep.subr.mxu0 0.0
        %1456 = vmatpush1.msra.mxu0 0.0
        %1457 = vmatprep.subr.mxu0 0.0
        %1458 = vmatpush1.msra.mxu0 0.0
        %1459 = vmatprep.subr.mxu0 0.0
        %1460 = vmatpush1.msra.mxu0 0.0
        %1461 = vmatprep.subr.mxu0 0.0
        %1462 = vmatpush1.msra.mxu0 0.0
        %1463 = vmatprep.subr.mxu0 0.0
        %1464 = vmatpush1.msra.mxu0 0.0
        %1465 = vmatprep.subr.mxu0 0.0
        %1466 = vmatpush1.msra.mxu0 0.0
        %1467 = vmatprep.subr.mxu0 0.0
        %1468 = vmatpush1.msra.mxu0 0.0
        %1469 = vmatprep.subr.mxu0 0.0
        %1470 = vmatpush1.msra.mxu0 0.0
        %1471 = vmatprep.subr.mxu0 0.0
        %1472 = vmatpush1.msra.mxu0 0.0
        %1473 = vmatprep.subr.mxu0 0.0
        %1474 = vmatpush1.msra.mxu0 0.0
        %1475 = vmatprep.subr.mxu0 0.0
        %1476 = vmatpush1.msra.mxu0 0.0
        %1477 = vmatprep.subr.mxu0 0.0
        %1478 = vmatpush1.msra.mxu0 0.0
        %1479 = vmatprep.subr.mxu0 0.0
        %1480 = vmatpush1.msra.mxu0 0.0
        %1481 = vmatprep.subr.mxu0 0.0
        %1482 = vmatpush1.msra.mxu0 0.0
        %1483 = vmatprep.subr.mxu0 0.0
        %1484 = vmatpush1.msra.mxu0 0.0
        %1485 = vmatprep.subr.mxu0 0.0
        %1486 = vmatpush1.msra.mxu0 0.0
        %1487 = vmatprep.subr.mxu0 0.0
        %1488 = vmatpush1.msra.mxu0 0.0
        %1489 = vmatprep.subr.mxu0 0.0
        %1490 = vmatpush1.msra.mxu0 0.0
        %1491 = vmatprep.subr.mxu0 0.0
        %1492 = vmatpush1.msra.mxu0 0.0
        %1493 = vmatprep.subr.mxu0 0.0
        %1494 = vmatpush1.msra.mxu0 0.0
        %1495 = vmatprep.subr.mxu0 0.0
        %1496 = vmatpush1.msra.mxu0 0.0
        %1497 = vmatprep.subr.mxu0 0.0
        %1498 = vmatpush1.msra.mxu0 0.0
        %1499 = vmatprep.mubr.f32.mxu0 0.0
        %1500 = vmatmul.mubr.f32.gmra.mrb[0].mxu0 %v1433
        %v1501 = vpop.f32.mrb[0].mxu0
        %v1502 = vadd.f32 0.0, %v1501
        %v1503 = vpop.f32.mrb[0].mxu0
        %v1504 = vadd.f32 0.0, %v1503
        %1505 = vdwg.mxu0
        %v1506 = vadd.f32 %v1428, %v1502
        %v1507 = vadd.f32 %v1429, %v1504
        %1508 = vrot.lane.b32.xlu0 %v1089, 127
        %v1509 = vpop.permute.xlu0 %1508
        %1510 = vrot.lane.b32.xlu0 %v1090, 127
        %v1511 = vpop.permute.xlu0 %1510
        %v1512 = vsel %vm677, %v1509, %v1511
        %v1513 = vsel %vm677, %v1511, %v1509
        %v1514 = vmul.f32 %v1512, %v686
        %v1515 = vmul.f32 %v1513, %v690
        %s1516 = scalar_lea.vmem %s2, 40
        %v1517 = vld [vmem:[%s1516] sm:$0xff]
        %v1519 = vsel %vm246, %v1517, 0
        %1521 = vmatprep.subr.mxu0 %v1515
        %1522 = vmatpush1.msra.mxu0 %v1514
        %1523 = vmatprep.subr.mxu0 0.0
        %1524 = vmatpush1.msra.mxu0 0.0
        %1525 = vmatprep.subr.mxu0 0.0
        %1526 = vmatpush1.msra.mxu0 0.0
        %1527 = vmatprep.subr.mxu0 0.0
        %1528 = vmatpush1.msra.mxu0 0.0
        %1529 = vmatprep.subr.mxu0 0.0
        %1530 = vmatpush1.msra.mxu0 0.0
        %1531 = vmatprep.subr.mxu0 0.0
        %1532 = vmatpush1.msra.mxu0 0.0
        %1533 = vmatprep.subr.mxu0 0.0
        %1534 = vmatpush1.msra.mxu0 0.0
        %1535 = vmatprep.subr.mxu0 0.0
        %1536 = vmatpush1.msra.mxu0 0.0
        %1537 = vmatprep.subr.mxu0 0.0
        %1538 = vmatpush1.msra.mxu0 0.0
        %1539 = vmatprep.subr.mxu0 0.0
        %1540 = vmatpush1.msra.mxu0 0.0
        %1541 = vmatprep.subr.mxu0 0.0
        %1542 = vmatpush1.msra.mxu0 0.0
        %1543 = vmatprep.subr.mxu0 0.0
        %1544 = vmatpush1.msra.mxu0 0.0
        %1545 = vmatprep.subr.mxu0 0.0
        %1546 = vmatpush1.msra.mxu0 0.0
        %1547 = vmatprep.subr.mxu0 0.0
        %1548 = vmatpush1.msra.mxu0 0.0
        %1549 = vmatprep.subr.mxu0 0.0
        %1550 = vmatpush1.msra.mxu0 0.0
        %1551 = vmatprep.subr.mxu0 0.0
        %1552 = vmatpush1.msra.mxu0 0.0
        %1553 = vmatprep.subr.mxu0 0.0
        %1554 = vmatpush1.msra.mxu0 0.0
        %1555 = vmatprep.subr.mxu0 0.0
        %1556 = vmatpush1.msra.mxu0 0.0
        %1557 = vmatprep.subr.mxu0 0.0
        %1558 = vmatpush1.msra.mxu0 0.0
        %1559 = vmatprep.subr.mxu0 0.0
        %1560 = vmatpush1.msra.mxu0 0.0
        %1561 = vmatprep.subr.mxu0 0.0
        %1562 = vmatpush1.msra.mxu0 0.0
        %1563 = vmatprep.subr.mxu0 0.0
        %1564 = vmatpush1.msra.mxu0 0.0
        %1565 = vmatprep.subr.mxu0 0.0
        %1566 = vmatpush1.msra.mxu0 0.0
        %1567 = vmatprep.subr.mxu0 0.0
        %1568 = vmatpush1.msra.mxu0 0.0
        %1569 = vmatprep.subr.mxu0 0.0
        %1570 = vmatpush1.msra.mxu0 0.0
        %1571 = vmatprep.subr.mxu0 0.0
        %1572 = vmatpush1.msra.mxu0 0.0
        %1573 = vmatprep.subr.mxu0 0.0
        %1574 = vmatpush1.msra.mxu0 0.0
        %1575 = vmatprep.subr.mxu0 0.0
        %1576 = vmatpush1.msra.mxu0 0.0
        %1577 = vmatprep.subr.mxu0 0.0
        %1578 = vmatpush1.msra.mxu0 0.0
        %1579 = vmatprep.subr.mxu0 0.0
        %1580 = vmatpush1.msra.mxu0 0.0
        %1581 = vmatprep.subr.mxu0 0.0
        %1582 = vmatpush1.msra.mxu0 0.0
        %1583 = vmatprep.subr.mxu0 0.0
        %1584 = vmatpush1.msra.mxu0 0.0
        %1585 = vmatprep.mubr.f32.mxu0 0.0
        %1586 = vmatmul.mubr.f32.gmra.mrb[0].mxu0 %v1519
        %v1587 = vpop.f32.mrb[0].mxu0
        %v1588 = vadd.f32 0.0, %v1587
        %v1589 = vpop.f32.mrb[0].mxu0
        %v1590 = vadd.f32 0.0, %v1589
        %1591 = vdwg.mxu0
        %v1592 = vadd.f32 %v1506, %v1588
        %v1593 = vadd.f32 %v1507, %v1590
        %1594 = vrot.lane.b32.xlu0 %v1089, 113
        %v1595 = vpop.permute.xlu0 %1594
        %1596 = vrot.lane.b32.xlu0 %v1090, 113
        %v1597 = vpop.permute.xlu0 %1596
        %v1598 = vsel %vm777, %v1595, %v1597
        %v1599 = vsel %vm777, %v1597, %v1595
        %v1600 = vmul.f32 %v1598, %v786
        %v1601 = vmul.f32 %v1599, %v790
        %s1602 = scalar_lea.vmem %s2, 48
        %v1603 = vld [vmem:[%s1602] sm:$0xff]
        %v1605 = vsel %vm246, %v1603, 0
        %1607 = vmatprep.subr.mxu0 %v1601
        %1608 = vmatpush1.msra.mxu0 %v1600
        %1609 = vmatprep.subr.mxu0 0.0
        %1610 = vmatpush1.msra.mxu0 0.0
        %1611 = vmatprep.subr.mxu0 0.0
        %1612 = vmatpush1.msra.mxu0 0.0
        %1613 = vmatprep.subr.mxu0 0.0
        %1614 = vmatpush1.msra.mxu0 0.0
        %1615 = vmatprep.subr.mxu0 0.0
        %1616 = vmatpush1.msra.mxu0 0.0
        %1617 = vmatprep.subr.mxu0 0.0
        %1618 = vmatpush1.msra.mxu0 0.0
        %1619 = vmatprep.subr.mxu0 0.0
        %1620 = vmatpush1.msra.mxu0 0.0
        %1621 = vmatprep.subr.mxu0 0.0
        %1622 = vmatpush1.msra.mxu0 0.0
        %1623 = vmatprep.subr.mxu0 0.0
        %1624 = vmatpush1.msra.mxu0 0.0
        %1625 = vmatprep.subr.mxu0 0.0
        %1626 = vmatpush1.msra.mxu0 0.0
        %1627 = vmatprep.subr.mxu0 0.0
        %1628 = vmatpush1.msra.mxu0 0.0
        %1629 = vmatprep.subr.mxu0 0.0
        %1630 = vmatpush1.msra.mxu0 0.0
        %1631 = vmatprep.subr.mxu0 0.0
        %1632 = vmatpush1.msra.mxu0 0.0
        %1633 = vmatprep.subr.mxu0 0.0
        %1634 = vmatpush1.msra.mxu0 0.0
        %1635 = vmatprep.subr.mxu0 0.0
        %1636 = vmatpush1.msra.mxu0 0.0
        %1637 = vmatprep.subr.mxu0 0.0
        %1638 = vmatpush1.msra.mxu0 0.0
        %1639 = vmatprep.subr.mxu0 0.0
        %1640 = vmatpush1.msra.mxu0 0.0
        %1641 = vmatprep.subr.mxu0 0.0
        %1642 = vmatpush1.msra.mxu0 0.0
        %1643 = vmatprep.subr.mxu0 0.0
        %1644 = vmatpush1.msra.mxu0 0.0
        %1645 = vmatprep.subr.mxu0 0.0
        %1646 = vmatpush1.msra.mxu0 0.0
        %1647 = vmatprep.subr.mxu0 0.0
        %1648 = vmatpush1.msra.mxu0 0.0
        %1649 = vmatprep.subr.mxu0 0.0
        %1650 = vmatpush1.msra.mxu0 0.0
        %1651 = vmatprep.subr.mxu0 0.0
        %1652 = vmatpush1.msra.mxu0 0.0
        %1653 = vmatprep.subr.mxu0 0.0
        %1654 = vmatpush1.msra.mxu0 0.0
        %1655 = vmatprep.subr.mxu0 0.0
        %1656 = vmatpush1.msra.mxu0 0.0
        %1657 = vmatprep.subr.mxu0 0.0
        %1658 = vmatpush1.msra.mxu0 0.0
        %1659 = vmatprep.subr.mxu0 0.0
        %1660 = vmatpush1.msra.mxu0 0.0
        %1661 = vmatprep.subr.mxu0 0.0
        %1662 = vmatpush1.msra.mxu0 0.0
        %1663 = vmatprep.subr.mxu0 0.0
        %1664 = vmatpush1.msra.mxu0 0.0
        %1665 = vmatprep.subr.mxu0 0.0
        %1666 = vmatpush1.msra.mxu0 0.0
        %1667 = vmatprep.subr.mxu0 0.0
        %1668 = vmatpush1.msra.mxu0 0.0
        %1669 = vmatprep.subr.mxu0 0.0
        %1670 = vmatpush1.msra.mxu0 0.0
        %1671 = vmatprep.mubr.f32.mxu0 0.0
        %1672 = vmatmul.mubr.f32.gmra.mrb[0].mxu0 %v1605
        %v1673 = vpop.f32.mrb[0].mxu0
        %v1674 = vadd.f32 0.0, %v1673
        %v1675 = vpop.f32.mrb[0].mxu0
        %v1676 = vadd.f32 0.0, %v1675
        %1677 = vdwg.mxu0
        %v1678 = vadd.f32 %v1592, %v1674
        %v1679 = vadd.f32 %v1593, %v1676
        %1680 = vrot.lane.b32.xlu0 %v1089, 112
        %v1681 = vpop.permute.xlu0 %1680
        %1682 = vrot.lane.b32.xlu0 %v1090, 112
        %v1683 = vpop.permute.xlu0 %1682
        %v1684 = vsel %vm877, %v1681, %v1683
        %v1685 = vsel %vm877, %v1683, %v1681
        %v1686 = vmul.f32 %v1684, %v886
        %v1687 = vmul.f32 %v1685, %v890
        %s1688 = scalar_lea.vmem %s2, 56
        %v1689 = vld [vmem:[%s1688] sm:$0xff]
        %v1691 = vsel %vm246, %v1689, 0
        %1693 = vmatprep.subr.mxu0 %v1687
        %1694 = vmatpush1.msra.mxu0 %v1686
        %1695 = vmatprep.subr.mxu0 0.0
        %1696 = vmatpush1.msra.mxu0 0.0
        %1697 = vmatprep.subr.mxu0 0.0
        %1698 = vmatpush1.msra.mxu0 0.0
        %1699 = vmatprep.subr.mxu0 0.0
        %1700 = vmatpush1.msra.mxu0 0.0
        %1701 = vmatprep.subr.mxu0 0.0
        %1702 = vmatpush1.msra.mxu0 0.0
        %1703 = vmatprep.subr.mxu0 0.0
        %1704 = vmatpush1.msra.mxu0 0.0
        %1705 = vmatprep.subr.mxu0 0.0
        %1706 = vmatpush1.msra.mxu0 0.0
        %1707 = vmatprep.subr.mxu0 0.0
        %1708 = vmatpush1.msra.mxu0 0.0
        %1709 = vmatprep.subr.mxu0 0.0
        %1710 = vmatpush1.msra.mxu0 0.0
        %1711 = vmatprep.subr.mxu0 0.0
        %1712 = vmatpush1.msra.mxu0 0.0
        %1713 = vmatprep.subr.mxu0 0.0
        %1714 = vmatpush1.msra.mxu0 0.0
        %1715 = vmatprep.subr.mxu0 0.0
        %1716 = vmatpush1.msra.mxu0 0.0
        %1717 = vmatprep.subr.mxu0 0.0
        %1718 = vmatpush1.msra.mxu0 0.0
        %1719 = vmatprep.subr.mxu0 0.0
        %1720 = vmatpush1.msra.mxu0 0.0
        %1721 = vmatprep.subr.mxu0 0.0
        %1722 = vmatpush1.msra.mxu0 0.0
        %1723 = vmatprep.subr.mxu0 0.0
        %1724 = vmatpush1.msra.mxu0 0.0
        %1725 = vmatprep.subr.mxu0 0.0
        %1726 = vmatpush1.msra.mxu0 0.0
        %1727 = vmatprep.subr.mxu0 0.0
        %1728 = vmatpush1.msra.mxu0 0.0
        %1729 = vmatprep.subr.mxu0 0.0
        %1730 = vmatpush1.msra.mxu0 0.0
        %1731 = vmatprep.subr.mxu0 0.0
        %1732 = vmatpush1.msra.mxu0 0.0
        %1733 = vmatprep.subr.mxu0 0.0
        %1734 = vmatpush1.msra.mxu0 0.0
        %1735 = vmatprep.subr.mxu0 0.0
        %1736 = vmatpush1.msra.mxu0 0.0
        %1737 = vmatprep.subr.mxu0 0.0
        %1738 = vmatpush1.msra.mxu0 0.0
        %1739 = vmatprep.subr.mxu0 0.0
        %1740 = vmatpush1.msra.mxu0 0.0
        %1741 = vmatprep.subr.mxu0 0.0
        %1742 = vmatpush1.msra.mxu0 0.0
        %1743 = vmatprep.subr.mxu0 0.0
        %1744 = vmatpush1.msra.mxu0 0.0
        %1745 = vmatprep.subr.mxu0 0.0
        %1746 = vmatpush1.msra.mxu0 0.0
        %1747 = vmatprep.subr.mxu0 0.0
        %1748 = vmatpush1.msra.mxu0 0.0
        %1749 = vmatprep.subr.mxu0 0.0
        %1750 = vmatpush1.msra.mxu0 0.0
        %1751 = vmatprep.subr.mxu0 0.0
        %1752 = vmatpush1.msra.mxu0 0.0
        %1753 = vmatprep.subr.mxu0 0.0
        %1754 = vmatpush1.msra.mxu0 0.0
        %1755 = vmatprep.subr.mxu0 0.0
        %1756 = vmatpush1.msra.mxu0 0.0
        %1757 = vmatprep.mubr.f32.mxu0 0.0
        %1758 = vmatmul.mubr.f32.gmra.mrb[0].mxu0 %v1691
        %v1759 = vpop.f32.mrb[0].mxu0
        %v1760 = vadd.f32 0.0, %v1759
        %v1761 = vpop.f32.mrb[0].mxu0
        %v1762 = vadd.f32 0.0, %v1761
        %1763 = vdwg.mxu0
        %v1764 = vadd.f32 %v1678, %v1760
        %v1765 = vadd.f32 %v1679, %v1762
        %1766 = vrot.lane.b32.xlu0 %v1089, 111
        %v1767 = vpop.permute.xlu0 %1766
        %1768 = vrot.lane.b32.xlu0 %v1090, 111
        %v1769 = vpop.permute.xlu0 %1768
        %v1770 = vsel %vm977, %v1767, %v1769
        %v1771 = vsel %vm977, %v1769, %v1767
        %v1772 = vmul.f32 %v1770, %v986
        %v1773 = vmul.f32 %v1771, %v990
        %s1774 = scalar_lea.vmem %s2, 64
        %v1775 = vld [vmem:[%s1774] sm:$0xff]
        %v1777 = vsel %vm246, %v1775, 0
        %1779 = vmatprep.subr.mxu0 %v1773
        %1780 = vmatpush1.msra.mxu0 %v1772
        %1781 = vmatprep.subr.mxu0 0.0
        %1782 = vmatpush1.msra.mxu0 0.0
        %1783 = vmatprep.subr.mxu0 0.0
        %1784 = vmatpush1.msra.mxu0 0.0
        %1785 = vmatprep.subr.mxu0 0.0
        %1786 = vmatpush1.msra.mxu0 0.0
        %1787 = vmatprep.subr.mxu0 0.0
        %1788 = vmatpush1.msra.mxu0 0.0
        %1789 = vmatprep.subr.mxu0 0.0
        %1790 = vmatpush1.msra.mxu0 0.0
        %1791 = vmatprep.subr.mxu0 0.0
        %1792 = vmatpush1.msra.mxu0 0.0
        %1793 = vmatprep.subr.mxu0 0.0
        %1794 = vmatpush1.msra.mxu0 0.0
        %1795 = vmatprep.subr.mxu0 0.0
        %1796 = vmatpush1.msra.mxu0 0.0
        %1797 = vmatprep.subr.mxu0 0.0
        %1798 = vmatpush1.msra.mxu0 0.0
        %1799 = vmatprep.subr.mxu0 0.0
        %1800 = vmatpush1.msra.mxu0 0.0
        %1801 = vmatprep.subr.mxu0 0.0
        %1802 = vmatpush1.msra.mxu0 0.0
        %1803 = vmatprep.subr.mxu0 0.0
        %1804 = vmatpush1.msra.mxu0 0.0
        %1805 = vmatprep.subr.mxu0 0.0
        %1806 = vmatpush1.msra.mxu0 0.0
        %1807 = vmatprep.subr.mxu0 0.0
        %1808 = vmatpush1.msra.mxu0 0.0
        %1809 = vmatprep.subr.mxu0 0.0
        %1810 = vmatpush1.msra.mxu0 0.0
        %1811 = vmatprep.subr.mxu0 0.0
        %1812 = vmatpush1.msra.mxu0 0.0
        %1813 = vmatprep.subr.mxu0 0.0
        %1814 = vmatpush1.msra.mxu0 0.0
        %1815 = vmatprep.subr.mxu0 0.0
        %1816 = vmatpush1.msra.mxu0 0.0
        %1817 = vmatprep.subr.mxu0 0.0
        %1818 = vmatpush1.msra.mxu0 0.0
        %1819 = vmatprep.subr.mxu0 0.0
        %1820 = vmatpush1.msra.mxu0 0.0
        %1821 = vmatprep.subr.mxu0 0.0
        %1822 = vmatpush1.msra.mxu0 0.0
        %1823 = vmatprep.subr.mxu0 0.0
        %1824 = vmatpush1.msra.mxu0 0.0
        %1825 = vmatprep.subr.mxu0 0.0
        %1826 = vmatpush1.msra.mxu0 0.0
        %1827 = vmatprep.subr.mxu0 0.0
        %1828 = vmatpush1.msra.mxu0 0.0
        %1829 = vmatprep.subr.mxu0 0.0
        %1830 = vmatpush1.msra.mxu0 0.0
        %1831 = vmatprep.subr.mxu0 0.0
        %1832 = vmatpush1.msra.mxu0 0.0
        %1833 = vmatprep.subr.mxu0 0.0
        %1834 = vmatpush1.msra.mxu0 0.0
        %1835 = vmatprep.subr.mxu0 0.0
        %1836 = vmatpush1.msra.mxu0 0.0
        %1837 = vmatprep.subr.mxu0 0.0
        %1838 = vmatpush1.msra.mxu0 0.0
        %1839 = vmatprep.subr.mxu0 0.0
        %1840 = vmatpush1.msra.mxu0 0.0
        %1841 = vmatprep.subr.mxu0 0.0
        %1842 = vmatpush1.msra.mxu0 0.0
        %1843 = vmatprep.mubr.f32.mxu0 0.0
        %1844 = vmatmul.mubr.f32.gmra.mrb[0].mxu0 %v1777
        %v1845 = vpop.f32.mrb[0].mxu0
        %v1846 = vadd.f32 0.0, %v1845
        %v1847 = vpop.f32.mrb[0].mxu0
        %v1848 = vadd.f32 0.0, %v1847
        %1849 = vdwg.mxu0
        %v1850 = vadd.f32 %v1764, %v1846
        %v1851 = vadd.f32 %v1765, %v1848
        %v1852 = vadd.f32 %v1850, %v1851
        %1853 = vadd.xlane.f32.xlu0 %v1852
        %v1854 = vpop.xlane.xlu0 %1853
        %v1855 = vmul.f32 %v1854, 0.00390625
        %v1856 = vsub.f32 %v1850, %v1855
        %v1857 = vsub.f32 %v1851, %v1855
        %v1858 = vmul.f32 %v1856, %v1856
        %v1859 = vmul.f32 %v1857, %v1857
        %v1860 = vadd.f32 %v1858, %v1859
        %1861 = vadd.xlane.f32.xlu0 %v1860
        %v1862 = vpop.xlane.xlu0 %1861
        %v1863 = vmul.f32 %v1862, 0.00390625
        %v1864 = vadd.f32 %v1863, 1e-05
        %v1865 = vrsqrt.pop %v1864
        %v1866 = vmul.f32 %v1856, %v1865
        %v1867 = vmul.f32 %v1857, %v1865
        %v1868 = vadd.f32 %v1866, %v196
        %v1869 = vadd.f32 %v1867, %v197
        %1870 = vst [vmem:[%s190] sm:$0xff] %v1868
        %1871 = vst [vmem:[%s190 + $0x8] sm:$0xff] %v1869
        %s1872 = sand.u32 %s115, 1
        %s1873 = scalar_lea.sflag [#allocation3], %s1872
        %s1874 = sand.u32 %s115, 1
        %s1875 = smul.addr %s1874, 16
        %s1876 = scalar_lea.vmem [#allocation2], %s1875
        // Predicated region
        $region37: #{tpu_custom_call.1} parent=35 // pred_check
          %p1877 = pneg %p125
        $region38: #{tpu_custom_call.1} parent=35 // pred_check_branch
          %1879 = sbr.rel (%p1877) target = $region40
        $region39: #{tpu_custom_call.1} parent=35 // pred_region
          %s1881 = ssub.s32 256, 256
          %1882 = vsyncadd %s1873, %s1881
          %s1883 = smul.addr %s18, 2
          %s1884 = smul.addr %s1883, 128
          %s1885 = scalar_lea.hbm %s4, %s1884
          %s1887 = sshll.u32 %s1876, 4
          %s1888 = int_to_ptr.vmem [resolvable:$true] %s1887
          %1890 = dma.vmem_to_hbm [thread:$0]  %s1888, 256, %s1885, %s1873
        $region40: #{tpu_custom_call.1} parent=35 // pred_fallthru
          _
      $region36: #{tpu_custom_call.1} parent=5 // pred_fallthru
        _
      %p1891 = scmp.le.s32.totalorder 2, %s13
      // Predicated region
      $region41: #{tpu_custom_call.1} parent=5 // pred_check
        %p1892 = pneg %p1891
      $region42: #{tpu_custom_call.1} parent=5 // pred_check_branch
        %1894 = sbr.rel (%p1892) target = $region44
      $region43: #{tpu_custom_call.1} parent=5 // pred_region
        %s1895 = ssub.s32 %s13, 2
        // Predicated region
        $region45: #{tpu_custom_call.1} parent=43 // pred_check
          %p1896 = pneg %p131
        $region46: #{tpu_custom_call.1} parent=43 // pred_check_branch
          %1898 = sbr.rel (%p1896) target = $region48
        $region47: #{tpu_custom_call.1} parent=43 // pred_region
          %s1899 = sand.u32 %s116, 1
          %s1900 = scalar_lea.sflag [#allocation3], %s1899
          %s1901 = sand.u32 %s116, 1
          %s1902 = smul.addr %s1901, 16
          %s1903 = scalar_lea.vmem [#allocation2], %s1902
          %1904 = dma.done %s1900, 256
        $region48: #{tpu_custom_call.1} parent=43 // pred_fallthru
          _
      $region44: #{tpu_custom_call.1} parent=5 // pred_fallthru
        _
    $region6: #{tpu_custom_call.1} parent=1 // loop_footer
      %s17 = sadd.s32 1, %s13
    $region7: #{tpu_custom_call.1} parent=1 // loop_footer_branch
      %12 = sbr.rel target = $region3
    $region8: #{tpu_custom_call.1} parent=1 // loop_exit
      _
    %1905 = vsyncpa [#allocation3], 1
    %s1906 = scalar_lea.sflag [#allocation3], 1
    %1907 = vsyncpa %s1906, 1

</llo_original>
